<compile_context>
chip_gen: v5e
topology: v5e:2x2
jax: 0.10.0
libtpu: 0.0.40
codegen_flags: <defaults>
</compile_context>

<pallas_src>
import functools

import jax
import jax.numpy as jnp
from jax import lax
from jax.experimental import pallas as pl
from jax.experimental.pallas import tpu as pltpu

_MIB = 1024 * 1024
_MAX_ONEHOT_ENTITIES = 4096   # one-hot MXU gather only for modest tables
_VMEM_CEILING = 48 * _MIB     # leave pipeline headroom within v7x's 64 MiB/TC
_SMALL_PROBLEM_ELEMS = 64 * 1024  # below this, pallas_call fixed cost dominates


# ----------------------------------------------------------------------------
# Parameter init: deterministic synthetic Lorentz-manifold points.
# Mirrors `self.manifold.random(num_entities, dim + 1)` for curvature c:
# spatial part u ~ N(0,1) in R^dim, time component x0 = sqrt(1/c + ||u||^2),
# so that -x0^2 + ||u||^2 = -1/c (hyperboloid).
# ----------------------------------------------------------------------------
def lorentz_random(key, num_entities: int, dim: int, c: float = 1.0):
    u = jax.random.normal(key, (num_entities, dim), dtype=jnp.float32)
    x0 = jnp.sqrt(1.0 / c + jnp.sum(u * u, axis=-1, keepdims=True))
    return jnp.concatenate([x0, u], axis=-1)  # (num_entities, dim + 1)


# ----------------------------------------------------------------------------
# Kernel: vectorized gather of one block of indices.
#   idx_ref   : VMEM, (block_n, 1) int32 indices for this grid step
#   table_ref : VMEM, full (row-padded) embedding table, resident across grid
#   out_ref   : VMEM, (block_n, d1) output block
# The gather is done as sum over entity chunks of onehot @ table_chunk on the
# MXU; exactly one chunk contributes a nonzero (1.0 * row) term per output row,
# so the result is exact.
# ----------------------------------------------------------------------------
def _gather_block_kernel(idx_ref, table_ref, out_ref, *, ent_chunk: int):
    idx = idx_ref[...]                       # (block_n, 1) int32
    block_n = idx.shape[0]
    e_pad, d1 = table_ref.shape
    num_chunks = e_pad // ent_chunk          # static, small (<= 8)

    acc = jnp.zeros((block_n, d1), jnp.float32)
    for c in range(num_chunks):              # static unroll; static ref slices
        start = c * ent_chunk
        ent_ids = start + lax.broadcasted_iota(
            jnp.int32, (block_n, ent_chunk), 1)
        onehot = (idx == ent_ids).astype(jnp.float32)
        tbl = table_ref[start:start + ent_chunk, :].astype(jnp.float32)
        acc = acc + jnp.dot(onehot, tbl, preferred_element_type=jnp.float32)

    out_ref[...] = acc.astype(out_ref.dtype)


def lorentz_embedding_lookup(table: jax.Array, indices: jax.Array,
                             *, block_n: int | None = None) -> jax.Array:
    """Equivalent of LorentzEmbedding.forward: table[indices]."""
    num_entities, d1 = table.shape
    itemsize = jnp.dtype(table.dtype).itemsize

    # Clamp to valid range (avoids data-dependent OOB reads in the kernel).
    flat_idx = jnp.clip(indices.reshape(-1).astype(jnp.int32), 0,
                        num_entities - 1)
    n = flat_idx.shape[0]

    # ---- fallbacks: tiny problems / big tables -> XLA native gather --------
    if n * d1 < _SMALL_PROBLEM_ELEMS or num_entities > _MAX_ONEHOT_ENTITIES:
        # TODO(synk): large-table path — keep table HBM-resident (pl.ANY) and
        # DMA-gather rows with double-buffered make_async_copy; for now defer
        # to XLA's native gather which has no VMEM ceiling.
        return jnp.take(table, flat_idx, axis=0).reshape(indices.shape + (d1,))

    # ---- tiling -------------------------------------------------------------
    d1_pad = -(-d1 // 128) * 128                       # lane-padded columns
    if block_n is None:
        # Target ~0.5 MiB lane-padded output block per grid step.
        block_n = max(8, min(4096, (512 * 1024) // (d1_pad * itemsize)))
    block_n = max(8, (block_n // 8) * 8)               # sublane-aligned
    block_n = min(block_n, -(-n // 8) * 8)             # don't overshoot n
    n_blocks = pl.cdiv(n, block_n)
    n_pad = n_blocks * block_n

    ent_chunk = min(512, -(-num_entities // 8) * 8)    # bounds one-hot size
    e_pad = pl.cdiv(num_entities, ent_chunk) * ent_chunk

    # ---- VMEM accounting with real padded layout ----------------------------
    table_vmem = 2 * e_pad * d1_pad * itemsize         # conservative 2x buffer
    out_vmem = 2 * block_n * d1_pad * itemsize         # double-buffered output
    idx_vmem = 2 * block_n * 128 * 4                   # (block_n,1) lane-padded
    onehot_vmem = block_n * ent_chunk * 4
    acc_vmem = block_n * d1_pad * 4
    vmem_needed = table_vmem + out_vmem + idx_vmem + onehot_vmem + acc_vmem
    if vmem_needed > _VMEM_CEILING:
        # TODO(synk): HBM-resident table + DMA row gather instead of fallback.
        return jnp.take(table, flat_idx, axis=0).reshape(indices.shape + (d1,))
    vmem_limit = int(min(56 * _MIB, max(24 * _MIB, vmem_needed + 8 * _MIB)))

    # ---- pad inputs ----------------------------------------------------------
    if n_pad != n:
        flat_idx = jnp.pad(flat_idx, (0, n_pad - n))   # padded rows read row 0
    idx2d = flat_idx.reshape(n_pad, 1)
    table_p = table
    if e_pad != num_entities:
        table_p = jnp.pad(table, ((0, e_pad - num_entities), (0, 0)))

    cost = pl.CostEstimate(
        flops=2 * n_pad * e_pad * d1,
        transcendentals=0,
        bytes_accessed=e_pad * d1 * itemsize + n_pad * d1 * itemsize + n_pad * 4,
    )

    out = pl.pallas_call(
        functools.partial(_gather_block_kernel, ent_chunk=ent_chunk),
        out_shape=jax.ShapeDtypeStruct((n_pad, d1), table.dtype),
        grid_spec=pltpu.PrefetchScalarGridSpec(
            num_scalar_prefetch=0,
            grid=(n_blocks,),                 # one grid step per index block
            in_specs=[
                # Per-block indices, tiled into VMEM.
                pl.BlockSpec((block_n, 1), lambda b: (b, 0)),
                # Full table, constant block index -> fetched once, resident.
                pl.BlockSpec((e_pad, d1), lambda b: (0, 0)),
            ],
            out_specs=pl.BlockSpec((block_n, d1), lambda b: (b, 0)),
        ),
        compiler_params=pltpu.CompilerParams(
            dimension_semantics=("parallel",),   # independent output blocks
            vmem_limit_bytes=vmem_limit,
        ),
        cost_estimate=cost,
    )(idx2d, table_p)

    return out[:n].reshape(indices.shape + (d1,))


class LorentzEmbedding:
    """JAX/Pallas counterpart of the PyTorch LorentzEmbedding module."""

    def __init__(self, num_entities: int, dim: int = 128, c: float = 1.0,
                 *, key=None):
        key = jax.random.PRNGKey(0) if key is None else key
        self.num_entities = num_entities
        self.dim = dim
        self.c = c
        self.embeddings = lorentz_random(key, num_entities, dim, c)

    def __call__(self, indices: jax.Array) -> jax.Array:
        return lorentz_embedding_lookup(self.embeddings, indices)


# TODO(synk): `LorentzEmbedding.distance` (arccosh of the Minkowski inner
# product) is not part of forward(); only the forward gather is implemented.


if __name__ == "__main__":
    key = jax.random.PRNGKey(0)
    k_tab, k_idx, k_small = jax.random.split(key, 3)

    num_entities = 512
    dim = 32                                  # table columns = dim + 1 = 33
    model = LorentzEmbedding(num_entities, dim=dim, c=1.0, key=k_tab)

    # Large enough that the Pallas gather path is exercised (n*d1 >= 64K).
    indices = jax.random.randint(k_idx, (8, 512), 0, num_entities)
    emb = jax.block_until_ready(model(indices))
    ref = model.embeddings[indices]
    assert emb.shape == (8, 512, dim + 1), emb.shape
    assert jnp.allclose(emb, ref), "Pallas gather mismatch vs reference"

    # Tiny problem exercises the small-problem fallback path.
    small_idx = jax.random.randint(k_small, (2, 8), 0, num_entities)
    emb_small = jax.block_until_ready(model(small_idx))
    assert emb_small.shape == (2, 8, dim + 1)
    assert jnp.allclose(emb_small, model.embeddings[small_idx])

    print("KERNEL_OK")
</pallas_src>

<mosaic_0001>
module attributes {stable_mosaic.version = 11 : i64} {
  func.func @_gather_block_kernel(%arg0: i32, %arg1: memref<1024x1xi32, #tpu.memory_space<vmem>>, %arg2: memref<512x33xf32, #tpu.memory_space<vmem>>, %arg3: memref<1024x33xf32, #tpu.memory_space<vmem>>) attributes {dimension_semantics = [#tpu.dimension_semantics<parallel>], iteration_bounds = array<i64: 4>, scalar_prefetch = 0 : i64, scratch_operands = 0 : i64, tpu.core_type = #tpu.core_type<tc>, window_params = [{transform_indices = @transform_0, window_bounds = array<i64: 1024, 1>}, {pipeline_mode = #tpu.pipeline_mode<synchronous>, transform_indices = @transform_1, window_bounds = array<i64: 512, 33>}, {transform_indices = @transform_2, window_bounds = array<i64: 1024, 33>}]} {
    %c0 = arith.constant 0 : index
    %c0_0 = arith.constant 0 : index
    %0 = vector.load %arg1[%c0, %c0_0] : memref<1024x1xi32, #tpu.memory_space<vmem>>, vector<1024x1xi32>
    %cst = arith.constant 0.000000e+00 : f32
    %1 = vector.broadcast %cst : f32 to vector<1024x33xf32>
    %2 = tpu.iota {dimensions = array<i32: 1>} : vector<1024x512xi32>
    %c0_i32 = arith.constant 0 : i32
    %3 = vector.broadcast %c0_i32 : i32 to vector<1024x512xi32>
    %4 = arith.addi %3, %2 : vector<1024x512xi32>
    %5 = vector.broadcast %0 : vector<1024x1xi32> to vector<1024x512xi32>
    %6 = arith.cmpi eq, %5, %4 : vector<1024x512xi32>
    %7 = arith.extui %6 : vector<1024x512xi1> to vector<1024x512xi32>
    %8 = arith.sitofp %7 : vector<1024x512xi32> to vector<1024x512xf32>
    %c0_1 = arith.constant 0 : index
    %c0_2 = arith.constant 0 : index
    %9 = vector.load %arg2[%c0_1, %c0_2] : memref<512x33xf32, #tpu.memory_space<vmem>>, vector<512x33xf32>
    %cst_3 = arith.constant dense<0.000000e+00> : vector<1024x33xf32>
    %10 = tpu.matmul %8, %9, %cst_3 {dimension_numbers = #tpu.dot_dimension_numbers<[1], [0], [0], [1], [0, 0, 1, 1], [], []>} : vector<1024x512xf32>, vector<512x33xf32>, vector<1024x33xf32> -> vector<1024x33xf32>
    %11 = arith.addf %1, %10 : vector<1024x33xf32>
    %c0_4 = arith.constant 0 : index
    %c0_5 = arith.constant 0 : index
    %12 = vector.load %arg3[%c0_4, %c0_5] : memref<1024x33xf32, #tpu.memory_space<vmem>>, vector<1024x33xf32>
    tpu.vector_store %arg3[%c0_4, %c0_5], %11 {strides = array<i32>} : memref<1024x33xf32, #tpu.memory_space<vmem>>, vector<1024x33xf32>,
    return
  }
  func.func @transform_0(%arg0: i32) -> (i32, i32) {
    %c0_i32 = arith.constant 0 : i32
    %c0_i32_0 = arith.constant 0 : i32
    return %arg0, %c0_i32 : i32, i32
  }
  func.func @transform_1(%arg0: i32) -> (i32, i32) {
    %c0_i32 = arith.constant 0 : i32
    %c0_i32_0 = arith.constant 0 : i32
    %c0_i32_1 = arith.constant 0 : i32
    return %c0_i32, %c0_i32_0 : i32, i32
  }
  func.func @transform_2(%arg0: i32) -> (i32, i32) {
    %c0_i32 = arith.constant 0 : i32
    %c0_i32_0 = arith.constant 0 : i32
    return %arg0, %c0_i32 : i32, i32
  }
}

</mosaic_0001>

<llo_original>
// kernel: tpu_custom_call.1
$region0: #{tpu_custom_call.1}
  #allocation0 [shape = 'u32[]', space=smem, size = 0x4, offset = 0x4, fixed_abs, tag = 'smem constant byte address 0x4 - core index']
  #allocation1 [shape = 'u32[72,128]{1,0:T(1,128)}', space=vmem, size = 0x9000, scoped, tag = 'internal scratch']
  %s0 = inlined_call_operand.vmem [shape: s32[4096,1], index: 0, kind: input, shape index: {}]
  %s1 = inlined_call_operand.vmem [shape: f32[512,33], index: 1, kind: input, shape index: {}]
  %s2 = inlined_call_operand.vmem [shape: f32[4096,33], index: 2, kind: output, shape index: {}]
  %s3 = sld [smem:[#allocation0]]
  $region41: #{tpu_custom_call.1} parent=0
    _
  %s5 = ssub.s32 1, %s3
  %s6 = scalar_select 0, %s5, %s3
  loop: start=0, step=1, limit=6
  $region2: #{tpu_custom_call.1} parent=0 // loop_pre_header
    _
  $region3: #{tpu_custom_call.1} parent=0 // loop_header
    %s8 = sphi 0, %s12
    %p9 = scmp.ge.s32.totalorder %s8, 6
    %s18 = sphi 0, %s20
    %s21 = sphi 0, %s18
    %s22 = sphi 0, %s21
    %s38 = sphi 0, %s22
    %s42 = sphi 0, %s42
    %s44 = sphi 0, %s42
    %s45 = sphi 0, %s44
    %s59 = sphi 0, %s45
    %s65 = sphi 0, %s67
    %s68 = sphi 0, %s65
    %s69 = sphi 0, %s68
    %s85 = sphi 0, %s69
  $region4: #{tpu_custom_call.1} parent=0 // loop_header_branch
    %11 = sbr.rel (%p9) target = $region8
  $region5: #{tpu_custom_call.1} parent=0 // loop_body
    %s13 = ssub.s32 %s8, 1
    %s14 = ssub.s32 %s8, 2
    %s15 = sadd.s32 %s8, 1
    %s16 = ssub.s32 %s8, %s15
    %p17 = scmp.eq.s32.totalorder %s16, 0
    %s19 = sadd.s32 %s18, 1
    %s20 = scalar_select %p17, %s18, %s19
    %p23 = pneg %p17
    %p24 = scmp.eq.s32.totalorder %s8, 3
    %p25 = por %p23, %p24
    %p26 = scmp.ne.s32.totalorder %s18, %s21
    %p27 = scmp.eq.s32.totalorder %s8, 0
    %p28 = por %p26, %p27
    %p29 = scmp.ne.s32.totalorder %s18, %s21
    %p30 = scmp.eq.s32.totalorder %s13, 3
    %p31 = por %p29, %p30
    %p32 = scmp.ne.s32.totalorder %s21, %s22
    %p33 = scmp.eq.s32.totalorder %s13, 0
    %p34 = por %p32, %p33
    %p35 = scmp.ne.s32.totalorder %s21, %s22
    %p36 = scmp.eq.s32.totalorder %s14, 3
    %p37 = por %p35, %p36
    %p39 = scmp.ne.s32.totalorder %s22, %s38
    %p40 = scmp.eq.s32.totalorder %s14, 0
    %p41 = por %p39, %p40
    %s43 = sadd.s32 %s42, 1
    %p46 = scmp.eq.s32.totalorder %s8, 3
    %p47 = scmp.ne.s32.totalorder %s42, %s44
    %p48 = scmp.eq.s32.totalorder %s8, 0
    %p49 = por %p47, %p48
    %p50 = scmp.ne.s32.totalorder %s42, %s44
    %p51 = scmp.eq.s32.totalorder %s13, 3
    %p52 = por %p50, %p51
    %p53 = scmp.ne.s32.totalorder %s44, %s45
    %p54 = scmp.eq.s32.totalorder %s13, 0
    %p55 = por %p53, %p54
    %p56 = scmp.ne.s32.totalorder %s44, %s45
    %p57 = scmp.eq.s32.totalorder %s14, 3
    %p58 = por %p56, %p57
    %p60 = scmp.ne.s32.totalorder %s45, %s59
    %p61 = scmp.eq.s32.totalorder %s14, 0
    %p62 = por %p60, %p61
    %s63 = ssub.s32 %s8, %s15
    %p64 = scmp.eq.s32.totalorder %s63, 0
    %s66 = sadd.s32 %s65, 1
    %s67 = scalar_select %p64, %s65, %s66
    %p70 = pneg %p64
    %p71 = scmp.eq.s32.totalorder %s8, 3
    %p72 = por %p70, %p71
    %p73 = scmp.ne.s32.totalorder %s65, %s68
    %p74 = scmp.eq.s32.totalorder %s8, 0
    %p75 = por %p73, %p74
    %p76 = scmp.ne.s32.totalorder %s65, %s68
    %p77 = scmp.eq.s32.totalorder %s13, 3
    %p78 = por %p76, %p77
    %p79 = scmp.ne.s32.totalorder %s68, %s69
    %p80 = scmp.eq.s32.totalorder %s13, 0
    %p81 = por %p79, %p80
    %p82 = scmp.ne.s32.totalorder %s68, %s69
    %p83 = scmp.eq.s32.totalorder %s14, 3
    %p84 = por %p82, %p83
    %p86 = scmp.ne.s32.totalorder %s69, %s85
    %p87 = scmp.eq.s32.totalorder %s14, 0
    %p88 = por %p86, %p87
    %p89 = scmp.le.s32.totalorder 1, %s8
    %p90 = scmp.lt.s32.totalorder %s8, 5
    %p91 = pnand %p89, %p90
    %p92 = pneg %p91
    // Predicated region
    $region9: #{tpu_custom_call.1} parent=5 // pred_check
      _
    $region10: #{tpu_custom_call.1} parent=5 // pred_check_branch
      %94 = sbr.rel (%p91) target = $region12
    $region11: #{tpu_custom_call.1} parent=5 // pred_region
      %s95 = ssub.s32 %s8, 1
      // Predicated region
      $region13: #{tpu_custom_call.1} parent=11 // pred_check
        %p96 = pneg %p55
      $region14: #{tpu_custom_call.1} parent=11 // pred_check_branch
        %98 = sbr.rel (%p96) target = $region16
      $region15: #{tpu_custom_call.1} parent=11 // pred_region
        _
      $region16: #{tpu_custom_call.1} parent=11 // pred_fallthru
        _
    $region12: #{tpu_custom_call.1} parent=5 // pred_fallthru
      _
    %p99 = scmp.lt.s32.totalorder %s8, 4
    // Predicated region
    $region17: #{tpu_custom_call.1} parent=5 // pred_check
      %p100 = pneg %p99
    $region18: #{tpu_custom_call.1} parent=5 // pred_check_branch
      %102 = sbr.rel (%p100) target = $region20
    $region19: #{tpu_custom_call.1} parent=5 // pred_region
      // Predicated region
      $region21: #{tpu_custom_call.1} parent=19 // pred_check
        %p103 = pneg %p28
      $region22: #{tpu_custom_call.1} parent=19 // pred_check_branch
        %105 = sbr.rel (%p103) target = $region24
      $region23: #{tpu_custom_call.1} parent=19 // pred_region
        %s106 = smul.u32 128, %s8
        %p107 = scmp.lt.s32.totalorder %s106, 511
        %s108 = scalar_select %p107, %s106, 511
        %s109 = smul.addr %s108, 8
        %s110 = scalar_lea.vmem %s0, %s109
        %s111 = smul.u32 128, %s8
      $region24: #{tpu_custom_call.1} parent=19 // pred_fallthru
        _
    $region20: #{tpu_custom_call.1} parent=5 // pred_fallthru
      _
    %p112 = scmp.le.s32.totalorder 1, %s8
    %p113 = scmp.lt.s32.totalorder %s8, 5
    %p114 = pnand %p112, %p113
    %p115 = pneg %p114
    // Predicated region
    $region25: #{tpu_custom_call.1} parent=5 // pred_check
      _
    $region26: #{tpu_custom_call.1} parent=5 // pred_check_branch
      %117 = sbr.rel (%p114) target = $region28
    $region27: #{tpu_custom_call.1} parent=5 // pred_region
      %s118 = ssub.s32 %s8, 1
      %s119 = smul.u32 128, %s13
      %p120 = scmp.lt.s32.totalorder %s119, 511
      %s121 = scalar_select %p120, %s119, 511
      %s122 = smul.addr %s121, 8
      %s123 = scalar_lea.vmem %s0, %s122
      %p124 = pneg %p34
      %p125 = pneg %p31
      %p126 = pneg %p55
      %p127 = pneg %p52
      %p128 = pneg %p81
      %p129 = pneg %p78
      %s130 = smul.u32 128, %s13
      %p131 = scmp.lt.s32.totalorder %s130, 511
      %s132 = scalar_select %p131, %s130, 511
      %s133 = smul.addr %s132, 8
      %s134 = scalar_lea.vmem %s2, %s133
      %s135 = smul.u32 128, %s13
      %p136 = scmp.lt.s32.totalorder %s135, 511
      %s137 = scalar_select %p136, %s135, 511
      %s138 = smul.addr %s137, 8
      %s139 = scalar_lea.vmem %s0, %s138
      %s140 = smul.u32 128, %s13
      %s141 = smul.u32 128, %s13
      %p142 = scmp.lt.s32.totalorder %s141, 511
      %s143 = scalar_select %p142, %s141, 511
      %s144 = smul.addr %s143, 8
      %s145 = scalar_lea.vmem %s2, %s144
      %s146 = smul.u32 128, %s13
      %v147 = vld [vmem:[%s139] sm:$0xff]
      %v148 = vld [vmem:[%s139 + $0x8] sm:$0xff]
      %v149 = vld [vmem:[%s139 + $0x10] sm:$0xff]
      %v150 = vld [vmem:[%s139 + $0x18] sm:$0xff]
      %v151 = vld [vmem:[%s139 + $0x20] sm:$0xff]
      %v152 = vld [vmem:[%s139 + $0x28] sm:$0xff]
      %v153 = vld [vmem:[%s139 + $0x30] sm:$0xff]
      %v154 = vld [vmem:[%s139 + $0x38] sm:$0xff]
      %v155 = vld [vmem:[%s139 + $0x40] sm:$0xff]
      %v156 = vld [vmem:[%s139 + $0x48] sm:$0xff]
      %v157 = vld [vmem:[%s139 + $0x50] sm:$0xff]
      %v158 = vld [vmem:[%s139 + $0x58] sm:$0xff]
      %v159 = vld [vmem:[%s139 + $0x60] sm:$0xff]
      %v160 = vld [vmem:[%s139 + $0x68] sm:$0xff]
      %v161 = vld [vmem:[%s139 + $0x70] sm:$0xff]
      %v162 = vld [vmem:[%s139 + $0x78] sm:$0xff]
      %v163 = vld [vmem:[%s139 + $0x80] sm:$0xff]
      %v164 = vld [vmem:[%s139 + $0x88] sm:$0xff]
      %v165 = vld [vmem:[%s139 + $0x90] sm:$0xff]
      %v166 = vld [vmem:[%s139 + $0x98] sm:$0xff]
      %v167 = vld [vmem:[%s139 + $0xa0] sm:$0xff]
      %v168 = vld [vmem:[%s139 + $0xa8] sm:$0xff]
      %v169 = vld [vmem:[%s139 + $0xb0] sm:$0xff]
      %v170 = vld [vmem:[%s139 + $0xb8] sm:$0xff]
      %v171 = vld [vmem:[%s139 + $0xc0] sm:$0xff]
      %v172 = vld [vmem:[%s139 + $0xc8] sm:$0xff]
      %v173 = vld [vmem:[%s139 + $0xd0] sm:$0xff]
      %v174 = vld [vmem:[%s139 + $0xd8] sm:$0xff]
      %v175 = vld [vmem:[%s139 + $0xe0] sm:$0xff]
      %v176 = vld [vmem:[%s139 + $0xe8] sm:$0xff]
      %v177 = vld [vmem:[%s139 + $0xf0] sm:$0xff]
      %v178 = vld [vmem:[%s139 + $0xf8] sm:$0xff]
      %v179 = vld [vmem:[%s139 + $0x100] sm:$0xff]
      %v180 = vld [vmem:[%s139 + $0x108] sm:$0xff]
      %v181 = vld [vmem:[%s139 + $0x110] sm:$0xff]
      %v182 = vld [vmem:[%s139 + $0x118] sm:$0xff]
      %v183 = vld [vmem:[%s139 + $0x120] sm:$0xff]
      %v184 = vld [vmem:[%s139 + $0x128] sm:$0xff]
      %v185 = vld [vmem:[%s139 + $0x130] sm:$0xff]
      %v186 = vld [vmem:[%s139 + $0x138] sm:$0xff]
      %v187 = vld [vmem:[%s139 + $0x140] sm:$0xff]
      %v188 = vld [vmem:[%s139 + $0x148] sm:$0xff]
      %v189 = vld [vmem:[%s139 + $0x150] sm:$0xff]
      %v190 = vld [vmem:[%s139 + $0x158] sm:$0xff]
      %v191 = vld [vmem:[%s139 + $0x160] sm:$0xff]
      %v192 = vld [vmem:[%s139 + $0x168] sm:$0xff]
      %v193 = vld [vmem:[%s139 + $0x170] sm:$0xff]
      %v194 = vld [vmem:[%s139 + $0x178] sm:$0xff]
      %v195 = vld [vmem:[%s139 + $0x180] sm:$0xff]
      %v196 = vld [vmem:[%s139 + $0x188] sm:$0xff]
      %v197 = vld [vmem:[%s139 + $0x190] sm:$0xff]
      %v198 = vld [vmem:[%s139 + $0x198] sm:$0xff]
      %v199 = vld [vmem:[%s139 + $0x1a0] sm:$0xff]
      %v200 = vld [vmem:[%s139 + $0x1a8] sm:$0xff]
      %v201 = vld [vmem:[%s139 + $0x1b0] sm:$0xff]
      %v202 = vld [vmem:[%s139 + $0x1b8] sm:$0xff]
      %v203 = vld [vmem:[%s139 + $0x1c0] sm:$0xff]
      %v204 = vld [vmem:[%s139 + $0x1c8] sm:$0xff]
      %v205 = vld [vmem:[%s139 + $0x1d0] sm:$0xff]
      %v206 = vld [vmem:[%s139 + $0x1d8] sm:$0xff]
      %v207 = vld [vmem:[%s139 + $0x1e0] sm:$0xff]
      %v208 = vld [vmem:[%s139 + $0x1e8] sm:$0xff]
      %v209 = vld [vmem:[%s139 + $0x1f0] sm:$0xff]
      %v210 = vld [vmem:[%s139 + $0x1f8] sm:$0xff]
      %v211 = vld [vmem:[%s139 + $0x200] sm:$0xff]
      %v212 = vld [vmem:[%s139 + $0x208] sm:$0xff]
      %v213 = vld [vmem:[%s139 + $0x210] sm:$0xff]
      %v214 = vld [vmem:[%s139 + $0x218] sm:$0xff]
      %v215 = vld [vmem:[%s139 + $0x220] sm:$0xff]
      %v216 = vld [vmem:[%s139 + $0x228] sm:$0xff]
      %v217 = vld [vmem:[%s139 + $0x230] sm:$0xff]
      %v218 = vld [vmem:[%s139 + $0x238] sm:$0xff]
      %v219 = vld [vmem:[%s139 + $0x240] sm:$0xff]
      %v220 = vld [vmem:[%s139 + $0x248] sm:$0xff]
      %v221 = vld [vmem:[%s139 + $0x250] sm:$0xff]
      %v222 = vld [vmem:[%s139 + $0x258] sm:$0xff]
      %v223 = vld [vmem:[%s139 + $0x260] sm:$0xff]
      %v224 = vld [vmem:[%s139 + $0x268] sm:$0xff]
      %v225 = vld [vmem:[%s139 + $0x270] sm:$0xff]
      %v226 = vld [vmem:[%s139 + $0x278] sm:$0xff]
      %v227 = vld [vmem:[%s139 + $0x280] sm:$0xff]
      %v228 = vld [vmem:[%s139 + $0x288] sm:$0xff]
      %v229 = vld [vmem:[%s139 + $0x290] sm:$0xff]
      %v230 = vld [vmem:[%s139 + $0x298] sm:$0xff]
      %v231 = vld [vmem:[%s139 + $0x2a0] sm:$0xff]
      %v232 = vld [vmem:[%s139 + $0x2a8] sm:$0xff]
      %v233 = vld [vmem:[%s139 + $0x2b0] sm:$0xff]
      %v234 = vld [vmem:[%s139 + $0x2b8] sm:$0xff]
      %v235 = vld [vmem:[%s139 + $0x2c0] sm:$0xff]
      %v236 = vld [vmem:[%s139 + $0x2c8] sm:$0xff]
      %v237 = vld [vmem:[%s139 + $0x2d0] sm:$0xff]
      %v238 = vld [vmem:[%s139 + $0x2d8] sm:$0xff]
      %v239 = vld [vmem:[%s139 + $0x2e0] sm:$0xff]
      %v240 = vld [vmem:[%s139 + $0x2e8] sm:$0xff]
      %v241 = vld [vmem:[%s139 + $0x2f0] sm:$0xff]
      %v242 = vld [vmem:[%s139 + $0x2f8] sm:$0xff]
      %v243 = vld [vmem:[%s139 + $0x300] sm:$0xff]
      %v244 = vld [vmem:[%s139 + $0x308] sm:$0xff]
      %v245 = vld [vmem:[%s139 + $0x310] sm:$0xff]
      %v246 = vld [vmem:[%s139 + $0x318] sm:$0xff]
      %v247 = vld [vmem:[%s139 + $0x320] sm:$0xff]
      %v248 = vld [vmem:[%s139 + $0x328] sm:$0xff]
      %v249 = vld [vmem:[%s139 + $0x330] sm:$0xff]
      %v250 = vld [vmem:[%s139 + $0x338] sm:$0xff]
      %v251 = vld [vmem:[%s139 + $0x340] sm:$0xff]
      %v252 = vld [vmem:[%s139 + $0x348] sm:$0xff]
      %v253 = vld [vmem:[%s139 + $0x350] sm:$0xff]
      %v254 = vld [vmem:[%s139 + $0x358] sm:$0xff]
      %v255 = vld [vmem:[%s139 + $0x360] sm:$0xff]
      %v256 = vld [vmem:[%s139 + $0x368] sm:$0xff]
      %v257 = vld [vmem:[%s139 + $0x370] sm:$0xff]
      %v258 = vld [vmem:[%s139 + $0x378] sm:$0xff]
      %v259 = vld [vmem:[%s139 + $0x380] sm:$0xff]
      %v260 = vld [vmem:[%s139 + $0x388] sm:$0xff]
      %v261 = vld [vmem:[%s139 + $0x390] sm:$0xff]
      %v262 = vld [vmem:[%s139 + $0x398] sm:$0xff]
      %v263 = vld [vmem:[%s139 + $0x3a0] sm:$0xff]
      %v264 = vld [vmem:[%s139 + $0x3a8] sm:$0xff]
      %v265 = vld [vmem:[%s139 + $0x3b0] sm:$0xff]
      %v266 = vld [vmem:[%s139 + $0x3b8] sm:$0xff]
      %v267 = vld [vmem:[%s139 + $0x3c0] sm:$0xff]
      %v268 = vld [vmem:[%s139 + $0x3c8] sm:$0xff]
      %v269 = vld [vmem:[%s139 + $0x3d0] sm:$0xff]
      %v270 = vld [vmem:[%s139 + $0x3d8] sm:$0xff]
      %v271 = vld [vmem:[%s139 + $0x3e0] sm:$0xff]
      %v272 = vld [vmem:[%s139 + $0x3e8] sm:$0xff]
      %v273 = vld [vmem:[%s139 + $0x3f0] sm:$0xff]
      %v274 = vld [vmem:[%s139 + $0x3f8] sm:$0xff]
      %v275 = vlaneseq
      %v276 = vand.u32 %v275, 127
      %v277 = vadd.s32 %v276, 128
      %v278 = vadd.s32 %v276, 256
      %v279 = vadd.s32 %v276, 384
      %280 = vset.pattern.permute.xlu0 0
      %281 = vperm.xlu0 %280, %v147
      %v282 = vpop.permute.xlu0 %281
      %283 = vset.pattern.permute.xlu0 0
      %284 = vperm.xlu0 %283, %v148
      %v285 = vpop.permute.xlu0 %284
      %286 = vset.pattern.permute.xlu0 0
      %287 = vperm.xlu0 %286, %v149
      %v288 = vpop.permute.xlu0 %287
      %289 = vset.pattern.permute.xlu0 0
      %290 = vperm.xlu0 %289, %v150
      %v291 = vpop.permute.xlu0 %290
      %292 = vset.pattern.permute.xlu0 0
      %293 = vperm.xlu0 %292, %v151
      %v294 = vpop.permute.xlu0 %293
      %295 = vset.pattern.permute.xlu0 0
      %296 = vperm.xlu0 %295, %v152
      %v297 = vpop.permute.xlu0 %296
      %298 = vset.pattern.permute.xlu0 0
      %299 = vperm.xlu0 %298, %v153
      %v300 = vpop.permute.xlu0 %299
      %301 = vset.pattern.permute.xlu0 0
      %302 = vperm.xlu0 %301, %v154
      %v303 = vpop.permute.xlu0 %302
      %304 = vset.pattern.permute.xlu0 0
      %305 = vperm.xlu0 %304, %v155
      %v306 = vpop.permute.xlu0 %305
      %307 = vset.pattern.permute.xlu0 0
      %308 = vperm.xlu0 %307, %v156
      %v309 = vpop.permute.xlu0 %308
      %310 = vset.pattern.permute.xlu0 0
      %311 = vperm.xlu0 %310, %v157
      %v312 = vpop.permute.xlu0 %311
      %313 = vset.pattern.permute.xlu0 0
      %314 = vperm.xlu0 %313, %v158
      %v315 = vpop.permute.xlu0 %314
      %316 = vset.pattern.permute.xlu0 0
      %317 = vperm.xlu0 %316, %v159
      %v318 = vpop.permute.xlu0 %317
      %319 = vset.pattern.permute.xlu0 0
      %320 = vperm.xlu0 %319, %v160
      %v321 = vpop.permute.xlu0 %320
      %322 = vset.pattern.permute.xlu0 0
      %323 = vperm.xlu0 %322, %v161
      %v324 = vpop.permute.xlu0 %323
      %325 = vset.pattern.permute.xlu0 0
      %326 = vperm.xlu0 %325, %v162
      %v327 = vpop.permute.xlu0 %326
      %328 = vset.pattern.permute.xlu0 0
      %329 = vperm.xlu0 %328, %v163
      %v330 = vpop.permute.xlu0 %329
      %331 = vset.pattern.permute.xlu0 0
      %332 = vperm.xlu0 %331, %v164
      %v333 = vpop.permute.xlu0 %332
      %334 = vset.pattern.permute.xlu0 0
      %335 = vperm.xlu0 %334, %v165
      %v336 = vpop.permute.xlu0 %335
      %337 = vset.pattern.permute.xlu0 0
      %338 = vperm.xlu0 %337, %v166
      %v339 = vpop.permute.xlu0 %338
      %340 = vset.pattern.permute.xlu0 0
      %341 = vperm.xlu0 %340, %v167
      %v342 = vpop.permute.xlu0 %341
      %343 = vset.pattern.permute.xlu0 0
      %344 = vperm.xlu0 %343, %v168
      %v345 = vpop.permute.xlu0 %344
      %346 = vset.pattern.permute.xlu0 0
      %347 = vperm.xlu0 %346, %v169
      %v348 = vpop.permute.xlu0 %347
      %349 = vset.pattern.permute.xlu0 0
      %350 = vperm.xlu0 %349, %v170
      %v351 = vpop.permute.xlu0 %350
      %352 = vset.pattern.permute.xlu0 0
      %353 = vperm.xlu0 %352, %v171
      %v354 = vpop.permute.xlu0 %353
      %355 = vset.pattern.permute.xlu0 0
      %356 = vperm.xlu0 %355, %v172
      %v357 = vpop.permute.xlu0 %356
      %358 = vset.pattern.permute.xlu0 0
      %359 = vperm.xlu0 %358, %v173
      %v360 = vpop.permute.xlu0 %359
      %361 = vset.pattern.permute.xlu0 0
      %362 = vperm.xlu0 %361, %v174
      %v363 = vpop.permute.xlu0 %362
      %364 = vset.pattern.permute.xlu0 0
      %365 = vperm.xlu0 %364, %v175
      %v366 = vpop.permute.xlu0 %365
      %367 = vset.pattern.permute.xlu0 0
      %368 = vperm.xlu0 %367, %v176
      %v369 = vpop.permute.xlu0 %368
      %370 = vset.pattern.permute.xlu0 0
      %371 = vperm.xlu0 %370, %v177
      %v372 = vpop.permute.xlu0 %371
      %373 = vset.pattern.permute.xlu0 0
      %374 = vperm.xlu0 %373, %v178
      %v375 = vpop.permute.xlu0 %374
      %376 = vset.pattern.permute.xlu0 0
      %377 = vperm.xlu0 %376, %v179
      %v378 = vpop.permute.xlu0 %377
      %379 = vset.pattern.permute.xlu0 0
      %380 = vperm.xlu0 %379, %v180
      %v381 = vpop.permute.xlu0 %380
      %382 = vset.pattern.permute.xlu0 0
      %383 = vperm.xlu0 %382, %v181
      %v384 = vpop.permute.xlu0 %383
      %385 = vset.pattern.permute.xlu0 0
      %386 = vperm.xlu0 %385, %v182
      %v387 = vpop.permute.xlu0 %386
      %388 = vset.pattern.permute.xlu0 0
      %389 = vperm.xlu0 %388, %v183
      %v390 = vpop.permute.xlu0 %389
      %391 = vset.pattern.permute.xlu0 0
      %392 = vperm.xlu0 %391, %v184
      %v393 = vpop.permute.xlu0 %392
      %394 = vset.pattern.permute.xlu0 0
      %395 = vperm.xlu0 %394, %v185
      %v396 = vpop.permute.xlu0 %395
      %397 = vset.pattern.permute.xlu0 0
      %398 = vperm.xlu0 %397, %v186
      %v399 = vpop.permute.xlu0 %398
      %400 = vset.pattern.permute.xlu0 0
      %401 = vperm.xlu0 %400, %v187
      %v402 = vpop.permute.xlu0 %401
      %403 = vset.pattern.permute.xlu0 0
      %404 = vperm.xlu0 %403, %v188
      %v405 = vpop.permute.xlu0 %404
      %406 = vset.pattern.permute.xlu0 0
      %407 = vperm.xlu0 %406, %v189
      %v408 = vpop.permute.xlu0 %407
      %409 = vset.pattern.permute.xlu0 0
      %410 = vperm.xlu0 %409, %v190
      %v411 = vpop.permute.xlu0 %410
      %412 = vset.pattern.permute.xlu0 0
      %413 = vperm.xlu0 %412, %v191
      %v414 = vpop.permute.xlu0 %413
      %415 = vset.pattern.permute.xlu0 0
      %416 = vperm.xlu0 %415, %v192
      %v417 = vpop.permute.xlu0 %416
      %418 = vset.pattern.permute.xlu0 0
      %419 = vperm.xlu0 %418, %v193
      %v420 = vpop.permute.xlu0 %419
      %421 = vset.pattern.permute.xlu0 0
      %422 = vperm.xlu0 %421, %v194
      %v423 = vpop.permute.xlu0 %422
      %424 = vset.pattern.permute.xlu0 0
      %425 = vperm.xlu0 %424, %v195
      %v426 = vpop.permute.xlu0 %425
      %427 = vset.pattern.permute.xlu0 0
      %428 = vperm.xlu0 %427, %v196
      %v429 = vpop.permute.xlu0 %428
      %430 = vset.pattern.permute.xlu0 0
      %431 = vperm.xlu0 %430, %v197
      %v432 = vpop.permute.xlu0 %431
      %433 = vset.pattern.permute.xlu0 0
      %434 = vperm.xlu0 %433, %v198
      %v435 = vpop.permute.xlu0 %434
      %436 = vset.pattern.permute.xlu0 0
      %437 = vperm.xlu0 %436, %v199
      %v438 = vpop.permute.xlu0 %437
      %439 = vset.pattern.permute.xlu0 0
      %440 = vperm.xlu0 %439, %v200
      %v441 = vpop.permute.xlu0 %440
      %442 = vset.pattern.permute.xlu0 0
      %443 = vperm.xlu0 %442, %v201
      %v444 = vpop.permute.xlu0 %443
      %445 = vset.pattern.permute.xlu0 0
      %446 = vperm.xlu0 %445, %v202
      %v447 = vpop.permute.xlu0 %446
      %448 = vset.pattern.permute.xlu0 0
      %449 = vperm.xlu0 %448, %v203
      %v450 = vpop.permute.xlu0 %449
      %451 = vset.pattern.permute.xlu0 0
      %452 = vperm.xlu0 %451, %v204
      %v453 = vpop.permute.xlu0 %452
      %454 = vset.pattern.permute.xlu0 0
      %455 = vperm.xlu0 %454, %v205
      %v456 = vpop.permute.xlu0 %455
      %457 = vset.pattern.permute.xlu0 0
      %458 = vperm.xlu0 %457, %v206
      %v459 = vpop.permute.xlu0 %458
      %460 = vset.pattern.permute.xlu0 0
      %461 = vperm.xlu0 %460, %v207
      %v462 = vpop.permute.xlu0 %461
      %463 = vset.pattern.permute.xlu0 0
      %464 = vperm.xlu0 %463, %v208
      %v465 = vpop.permute.xlu0 %464
      %466 = vset.pattern.permute.xlu0 0
      %467 = vperm.xlu0 %466, %v209
      %v468 = vpop.permute.xlu0 %467
      %469 = vset.pattern.permute.xlu0 0
      %470 = vperm.xlu0 %469, %v210
      %v471 = vpop.permute.xlu0 %470
      %472 = vset.pattern.permute.xlu0 0
      %473 = vperm.xlu0 %472, %v211
      %v474 = vpop.permute.xlu0 %473
      %475 = vset.pattern.permute.xlu0 0
      %476 = vperm.xlu0 %475, %v212
      %v477 = vpop.permute.xlu0 %476
      %478 = vset.pattern.permute.xlu0 0
      %479 = vperm.xlu0 %478, %v213
      %v480 = vpop.permute.xlu0 %479
      %481 = vset.pattern.permute.xlu0 0
      %482 = vperm.xlu0 %481, %v214
      %v483 = vpop.permute.xlu0 %482
      %484 = vset.pattern.permute.xlu0 0
      %485 = vperm.xlu0 %484, %v215
      %v486 = vpop.permute.xlu0 %485
      %487 = vset.pattern.permute.xlu0 0
      %488 = vperm.xlu0 %487, %v216
      %v489 = vpop.permute.xlu0 %488
      %490 = vset.pattern.permute.xlu0 0
      %491 = vperm.xlu0 %490, %v217
      %v492 = vpop.permute.xlu0 %491
      %493 = vset.pattern.permute.xlu0 0
      %494 = vperm.xlu0 %493, %v218
      %v495 = vpop.permute.xlu0 %494
      %496 = vset.pattern.permute.xlu0 0
      %497 = vperm.xlu0 %496, %v219
      %v498 = vpop.permute.xlu0 %497
      %499 = vset.pattern.permute.xlu0 0
      %500 = vperm.xlu0 %499, %v220
      %v501 = vpop.permute.xlu0 %500
      %502 = vset.pattern.permute.xlu0 0
      %503 = vperm.xlu0 %502, %v221
      %v504 = vpop.permute.xlu0 %503
      %505 = vset.pattern.permute.xlu0 0
      %506 = vperm.xlu0 %505, %v222
      %v507 = vpop.permute.xlu0 %506
      %508 = vset.pattern.permute.xlu0 0
      %509 = vperm.xlu0 %508, %v223
      %v510 = vpop.permute.xlu0 %509
      %511 = vset.pattern.permute.xlu0 0
      %512 = vperm.xlu0 %511, %v224
      %v513 = vpop.permute.xlu0 %512
      %514 = vset.pattern.permute.xlu0 0
      %515 = vperm.xlu0 %514, %v225
      %v516 = vpop.permute.xlu0 %515
      %517 = vset.pattern.permute.xlu0 0
      %518 = vperm.xlu0 %517, %v226
      %v519 = vpop.permute.xlu0 %518
      %520 = vset.pattern.permute.xlu0 0
      %521 = vperm.xlu0 %520, %v227
      %v522 = vpop.permute.xlu0 %521
      %523 = vset.pattern.permute.xlu0 0
      %524 = vperm.xlu0 %523, %v228
      %v525 = vpop.permute.xlu0 %524
      %526 = vset.pattern.permute.xlu0 0
      %527 = vperm.xlu0 %526, %v229
      %v528 = vpop.permute.xlu0 %527
      %529 = vset.pattern.permute.xlu0 0
      %530 = vperm.xlu0 %529, %v230
      %v531 = vpop.permute.xlu0 %530
      %532 = vset.pattern.permute.xlu0 0
      %533 = vperm.xlu0 %532, %v231
      %v534 = vpop.permute.xlu0 %533
      %535 = vset.pattern.permute.xlu0 0
      %536 = vperm.xlu0 %535, %v232
      %v537 = vpop.permute.xlu0 %536
      %538 = vset.pattern.permute.xlu0 0
      %539 = vperm.xlu0 %538, %v233
      %v540 = vpop.permute.xlu0 %539
      %541 = vset.pattern.permute.xlu0 0
      %542 = vperm.xlu0 %541, %v234
      %v543 = vpop.permute.xlu0 %542
      %544 = vset.pattern.permute.xlu0 0
      %545 = vperm.xlu0 %544, %v235
      %v546 = vpop.permute.xlu0 %545
      %547 = vset.pattern.permute.xlu0 0
      %548 = vperm.xlu0 %547, %v236
      %v549 = vpop.permute.xlu0 %548
      %550 = vset.pattern.permute.xlu0 0
      %551 = vperm.xlu0 %550, %v237
      %v552 = vpop.permute.xlu0 %551
      %553 = vset.pattern.permute.xlu0 0
      %554 = vperm.xlu0 %553, %v238
      %v555 = vpop.permute.xlu0 %554
      %556 = vset.pattern.permute.xlu0 0
      %557 = vperm.xlu0 %556, %v239
      %v558 = vpop.permute.xlu0 %557
      %559 = vset.pattern.permute.xlu0 0
      %560 = vperm.xlu0 %559, %v240
      %v561 = vpop.permute.xlu0 %560
      %562 = vset.pattern.permute.xlu0 0
      %563 = vperm.xlu0 %562, %v241
      %v564 = vpop.permute.xlu0 %563
      %565 = vset.pattern.permute.xlu0 0
      %566 = vperm.xlu0 %565, %v242
      %v567 = vpop.permute.xlu0 %566
      %568 = vset.pattern.permute.xlu0 0
      %569 = vperm.xlu0 %568, %v243
      %v570 = vpop.permute.xlu0 %569
      %571 = vset.pattern.permute.xlu0 0
      %572 = vperm.xlu0 %571, %v244
      %v573 = vpop.permute.xlu0 %572
      %574 = vset.pattern.permute.xlu0 0
      %575 = vperm.xlu0 %574, %v245
      %v576 = vpop.permute.xlu0 %575
      %577 = vset.pattern.permute.xlu0 0
      %578 = vperm.xlu0 %577, %v246
      %v579 = vpop.permute.xlu0 %578
      %580 = vset.pattern.permute.xlu0 0
      %581 = vperm.xlu0 %580, %v247
      %v582 = vpop.permute.xlu0 %581
      %583 = vset.pattern.permute.xlu0 0
      %584 = vperm.xlu0 %583, %v248
      %v585 = vpop.permute.xlu0 %584
      %586 = vset.pattern.permute.xlu0 0
      %587 = vperm.xlu0 %586, %v249
      %v588 = vpop.permute.xlu0 %587
      %589 = vset.pattern.permute.xlu0 0
      %590 = vperm.xlu0 %589, %v250
      %v591 = vpop.permute.xlu0 %590
      %592 = vset.pattern.permute.xlu0 0
      %593 = vperm.xlu0 %592, %v251
      %v594 = vpop.permute.xlu0 %593
      %595 = vset.pattern.permute.xlu0 0
      %596 = vperm.xlu0 %595, %v252
      %v597 = vpop.permute.xlu0 %596
      %598 = vset.pattern.permute.xlu0 0
      %599 = vperm.xlu0 %598, %v253
      %v600 = vpop.permute.xlu0 %599
      %601 = vset.pattern.permute.xlu0 0
      %602 = vperm.xlu0 %601, %v254
      %v603 = vpop.permute.xlu0 %602
      %604 = vset.pattern.permute.xlu0 0
      %605 = vperm.xlu0 %604, %v255
      %v606 = vpop.permute.xlu0 %605
      %607 = vset.pattern.permute.xlu0 0
      %608 = vperm.xlu0 %607, %v256
      %v609 = vpop.permute.xlu0 %608
      %610 = vset.pattern.permute.xlu0 0
      %611 = vperm.xlu0 %610, %v257
      %v612 = vpop.permute.xlu0 %611
      %613 = vset.pattern.permute.xlu0 0
      %614 = vperm.xlu0 %613, %v258
      %v615 = vpop.permute.xlu0 %614
      %616 = vset.pattern.permute.xlu0 0
      %617 = vperm.xlu0 %616, %v259
      %v618 = vpop.permute.xlu0 %617
      %619 = vset.pattern.permute.xlu0 0
      %620 = vperm.xlu0 %619, %v260
      %v621 = vpop.permute.xlu0 %620
      %622 = vset.pattern.permute.xlu0 0
      %623 = vperm.xlu0 %622, %v261
      %v624 = vpop.permute.xlu0 %623
      %625 = vset.pattern.permute.xlu0 0
      %626 = vperm.xlu0 %625, %v262
      %v627 = vpop.permute.xlu0 %626
      %628 = vset.pattern.permute.xlu0 0
      %629 = vperm.xlu0 %628, %v263
      %v630 = vpop.permute.xlu0 %629
      %631 = vset.pattern.permute.xlu0 0
      %632 = vperm.xlu0 %631, %v264
      %v633 = vpop.permute.xlu0 %632
      %634 = vset.pattern.permute.xlu0 0
      %635 = vperm.xlu0 %634, %v265
      %v636 = vpop.permute.xlu0 %635
      %637 = vset.pattern.permute.xlu0 0
      %638 = vperm.xlu0 %637, %v266
      %v639 = vpop.permute.xlu0 %638
      %640 = vset.pattern.permute.xlu0 0
      %641 = vperm.xlu0 %640, %v267
      %v642 = vpop.permute.xlu0 %641
      %643 = vset.pattern.permute.xlu0 0
      %644 = vperm.xlu0 %643, %v268
      %v645 = vpop.permute.xlu0 %644
      %646 = vset.pattern.permute.xlu0 0
      %647 = vperm.xlu0 %646, %v269
      %v648 = vpop.permute.xlu0 %647
      %649 = vset.pattern.permute.xlu0 0
      %650 = vperm.xlu0 %649, %v270
      %v651 = vpop.permute.xlu0 %650
      %652 = vset.pattern.permute.xlu0 0
      %653 = vperm.xlu0 %652, %v271
      %v654 = vpop.permute.xlu0 %653
      %655 = vset.pattern.permute.xlu0 0
      %656 = vperm.xlu0 %655, %v272
      %v657 = vpop.permute.xlu0 %656
      %658 = vset.pattern.permute.xlu0 0
      %659 = vperm.xlu0 %658, %v273
      %v660 = vpop.permute.xlu0 %659
      %661 = vset.pattern.permute.xlu0 0
      %662 = vperm.xlu0 %661, %v274
      %v663 = vpop.permute.xlu0 %662
      %vm664 = vcmp.eq.s32.totalorder %v282, %v276
      %vm665 = vcmp.eq.s32.totalorder %v282, %v277
      %vm666 = vcmp.eq.s32.totalorder %v282, %v278
      %vm667 = vcmp.eq.s32.totalorder %v282, %v279
      %vm668 = vcmp.eq.s32.totalorder %v285, %v276
      %vm669 = vcmp.eq.s32.totalorder %v285, %v277
      %vm670 = vcmp.eq.s32.totalorder %v285, %v278
      %vm671 = vcmp.eq.s32.totalorder %v285, %v279
      %vm672 = vcmp.eq.s32.totalorder %v288, %v276
      %vm673 = vcmp.eq.s32.totalorder %v288, %v277
      %vm674 = vcmp.eq.s32.totalorder %v288, %v278
      %vm675 = vcmp.eq.s32.totalorder %v288, %v279
      %vm676 = vcmp.eq.s32.totalorder %v291, %v276
      %vm677 = vcmp.eq.s32.totalorder %v291, %v277
      %vm678 = vcmp.eq.s32.totalorder %v291, %v278
      %vm679 = vcmp.eq.s32.totalorder %v291, %v279
      %vm680 = vcmp.eq.s32.totalorder %v294, %v276
      %vm681 = vcmp.eq.s32.totalorder %v294, %v277
      %vm682 = vcmp.eq.s32.totalorder %v294, %v278
      %vm683 = vcmp.eq.s32.totalorder %v294, %v279
      %vm684 = vcmp.eq.s32.totalorder %v297, %v276
      %vm685 = vcmp.eq.s32.totalorder %v297, %v277
      %vm686 = vcmp.eq.s32.totalorder %v297, %v278
      %vm687 = vcmp.eq.s32.totalorder %v297, %v279
      %vm688 = vcmp.eq.s32.totalorder %v300, %v276
      %vm689 = vcmp.eq.s32.totalorder %v300, %v277
      %vm690 = vcmp.eq.s32.totalorder %v300, %v278
      %vm691 = vcmp.eq.s32.totalorder %v300, %v279
      %vm692 = vcmp.eq.s32.totalorder %v303, %v276
      %vm693 = vcmp.eq.s32.totalorder %v303, %v277
      %vm694 = vcmp.eq.s32.totalorder %v303, %v278
      %vm695 = vcmp.eq.s32.totalorder %v303, %v279
      %vm696 = vcmp.eq.s32.totalorder %v306, %v276
      %vm697 = vcmp.eq.s32.totalorder %v306, %v277
      %vm698 = vcmp.eq.s32.totalorder %v306, %v278
      %vm699 = vcmp.eq.s32.totalorder %v306, %v279
      %vm700 = vcmp.eq.s32.totalorder %v309, %v276
      %vm701 = vcmp.eq.s32.totalorder %v309, %v277
      %vm702 = vcmp.eq.s32.totalorder %v309, %v278
      %vm703 = vcmp.eq.s32.totalorder %v309, %v279
      %vm704 = vcmp.eq.s32.totalorder %v312, %v276
      %vm705 = vcmp.eq.s32.totalorder %v312, %v277
      %vm706 = vcmp.eq.s32.totalorder %v312, %v278
      %vm707 = vcmp.eq.s32.totalorder %v312, %v279
      %vm708 = vcmp.eq.s32.totalorder %v315, %v276
      %vm709 = vcmp.eq.s32.totalorder %v315, %v277
      %vm710 = vcmp.eq.s32.totalorder %v315, %v278
      %vm711 = vcmp.eq.s32.totalorder %v315, %v279
      %vm712 = vcmp.eq.s32.totalorder %v318, %v276
      %vm713 = vcmp.eq.s32.totalorder %v318, %v277
      %vm714 = vcmp.eq.s32.totalorder %v318, %v278
      %vm715 = vcmp.eq.s32.totalorder %v318, %v279
      %vm716 = vcmp.eq.s32.totalorder %v321, %v276
      %vm717 = vcmp.eq.s32.totalorder %v321, %v277
      %vm718 = vcmp.eq.s32.totalorder %v321, %v278
      %vm719 = vcmp.eq.s32.totalorder %v321, %v279
      %vm720 = vcmp.eq.s32.totalorder %v324, %v276
      %vm721 = vcmp.eq.s32.totalorder %v324, %v277
      %vm722 = vcmp.eq.s32.totalorder %v324, %v278
      %vm723 = vcmp.eq.s32.totalorder %v324, %v279
      %vm724 = vcmp.eq.s32.totalorder %v327, %v276
      %vm725 = vcmp.eq.s32.totalorder %v327, %v277
      %vm726 = vcmp.eq.s32.totalorder %v327, %v278
      %vm727 = vcmp.eq.s32.totalorder %v327, %v279
      %vm728 = vcmp.eq.s32.totalorder %v330, %v276
      %vm729 = vcmp.eq.s32.totalorder %v330, %v277
      %vm730 = vcmp.eq.s32.totalorder %v330, %v278
      %vm731 = vcmp.eq.s32.totalorder %v330, %v279
      %vm732 = vcmp.eq.s32.totalorder %v333, %v276
      %vm733 = vcmp.eq.s32.totalorder %v333, %v277
      %vm734 = vcmp.eq.s32.totalorder %v333, %v278
      %vm735 = vcmp.eq.s32.totalorder %v333, %v279
      %vm736 = vcmp.eq.s32.totalorder %v336, %v276
      %vm737 = vcmp.eq.s32.totalorder %v336, %v277
      %vm738 = vcmp.eq.s32.totalorder %v336, %v278
      %vm739 = vcmp.eq.s32.totalorder %v336, %v279
      %vm740 = vcmp.eq.s32.totalorder %v339, %v276
      %vm741 = vcmp.eq.s32.totalorder %v339, %v277
      %vm742 = vcmp.eq.s32.totalorder %v339, %v278
      %vm743 = vcmp.eq.s32.totalorder %v339, %v279
      %vm744 = vcmp.eq.s32.totalorder %v342, %v276
      %vm745 = vcmp.eq.s32.totalorder %v342, %v277
      %vm746 = vcmp.eq.s32.totalorder %v342, %v278
      %vm747 = vcmp.eq.s32.totalorder %v342, %v279
      %vm748 = vcmp.eq.s32.totalorder %v345, %v276
      %vm749 = vcmp.eq.s32.totalorder %v345, %v277
      %vm750 = vcmp.eq.s32.totalorder %v345, %v278
      %vm751 = vcmp.eq.s32.totalorder %v345, %v279
      %vm752 = vcmp.eq.s32.totalorder %v348, %v276
      %vm753 = vcmp.eq.s32.totalorder %v348, %v277
      %vm754 = vcmp.eq.s32.totalorder %v348, %v278
      %vm755 = vcmp.eq.s32.totalorder %v348, %v279
      %vm756 = vcmp.eq.s32.totalorder %v351, %v276
      %vm757 = vcmp.eq.s32.totalorder %v351, %v277
      %vm758 = vcmp.eq.s32.totalorder %v351, %v278
      %vm759 = vcmp.eq.s32.totalorder %v351, %v279
      %vm760 = vcmp.eq.s32.totalorder %v354, %v276
      %vm761 = vcmp.eq.s32.totalorder %v354, %v277
      %vm762 = vcmp.eq.s32.totalorder %v354, %v278
      %vm763 = vcmp.eq.s32.totalorder %v354, %v279
      %vm764 = vcmp.eq.s32.totalorder %v357, %v276
      %vm765 = vcmp.eq.s32.totalorder %v357, %v277
      %vm766 = vcmp.eq.s32.totalorder %v357, %v278
      %vm767 = vcmp.eq.s32.totalorder %v357, %v279
      %vm768 = vcmp.eq.s32.totalorder %v360, %v276
      %vm769 = vcmp.eq.s32.totalorder %v360, %v277
      %vm770 = vcmp.eq.s32.totalorder %v360, %v278
      %vm771 = vcmp.eq.s32.totalorder %v360, %v279
      %vm772 = vcmp.eq.s32.totalorder %v363, %v276
      %vm773 = vcmp.eq.s32.totalorder %v363, %v277
      %vm774 = vcmp.eq.s32.totalorder %v363, %v278
      %vm775 = vcmp.eq.s32.totalorder %v363, %v279
      %vm776 = vcmp.eq.s32.totalorder %v366, %v276
      %vm777 = vcmp.eq.s32.totalorder %v366, %v277
      %vm778 = vcmp.eq.s32.totalorder %v366, %v278
      %vm779 = vcmp.eq.s32.totalorder %v366, %v279
      %vm780 = vcmp.eq.s32.totalorder %v369, %v276
      %vm781 = vcmp.eq.s32.totalorder %v369, %v277
      %vm782 = vcmp.eq.s32.totalorder %v369, %v278
      %vm783 = vcmp.eq.s32.totalorder %v369, %v279
      %vm784 = vcmp.eq.s32.totalorder %v372, %v276
      %vm785 = vcmp.eq.s32.totalorder %v372, %v277
      %vm786 = vcmp.eq.s32.totalorder %v372, %v278
      %vm787 = vcmp.eq.s32.totalorder %v372, %v279
      %vm788 = vcmp.eq.s32.totalorder %v375, %v276
      %vm789 = vcmp.eq.s32.totalorder %v375, %v277
      %vm790 = vcmp.eq.s32.totalorder %v375, %v278
      %vm791 = vcmp.eq.s32.totalorder %v375, %v279
      %vm792 = vcmp.eq.s32.totalorder %v378, %v276
      %vm793 = vcmp.eq.s32.totalorder %v378, %v277
      %vm794 = vcmp.eq.s32.totalorder %v378, %v278
      %vm795 = vcmp.eq.s32.totalorder %v378, %v279
      %vm796 = vcmp.eq.s32.totalorder %v381, %v276
      %vm797 = vcmp.eq.s32.totalorder %v381, %v277
      %vm798 = vcmp.eq.s32.totalorder %v381, %v278
      %vm799 = vcmp.eq.s32.totalorder %v381, %v279
      %vm800 = vcmp.eq.s32.totalorder %v384, %v276
      %vm801 = vcmp.eq.s32.totalorder %v384, %v277
      %vm802 = vcmp.eq.s32.totalorder %v384, %v278
      %vm803 = vcmp.eq.s32.totalorder %v384, %v279
      %vm804 = vcmp.eq.s32.totalorder %v387, %v276
      %vm805 = vcmp.eq.s32.totalorder %v387, %v277
      %vm806 = vcmp.eq.s32.totalorder %v387, %v278
      %vm807 = vcmp.eq.s32.totalorder %v387, %v279
      %vm808 = vcmp.eq.s32.totalorder %v390, %v276
      %vm809 = vcmp.eq.s32.totalorder %v390, %v277
      %vm810 = vcmp.eq.s32.totalorder %v390, %v278
      %vm811 = vcmp.eq.s32.totalorder %v390, %v279
      %vm812 = vcmp.eq.s32.totalorder %v393, %v276
      %vm813 = vcmp.eq.s32.totalorder %v393, %v277
      %vm814 = vcmp.eq.s32.totalorder %v393, %v278
      %vm815 = vcmp.eq.s32.totalorder %v393, %v279
      %vm816 = vcmp.eq.s32.totalorder %v396, %v276
      %vm817 = vcmp.eq.s32.totalorder %v396, %v277
      %vm818 = vcmp.eq.s32.totalorder %v396, %v278
      %vm819 = vcmp.eq.s32.totalorder %v396, %v279
      %vm820 = vcmp.eq.s32.totalorder %v399, %v276
      %vm821 = vcmp.eq.s32.totalorder %v399, %v277
      %vm822 = vcmp.eq.s32.totalorder %v399, %v278
      %vm823 = vcmp.eq.s32.totalorder %v399, %v279
      %vm824 = vcmp.eq.s32.totalorder %v402, %v276
      %vm825 = vcmp.eq.s32.totalorder %v402, %v277
      %vm826 = vcmp.eq.s32.totalorder %v402, %v278
      %vm827 = vcmp.eq.s32.totalorder %v402, %v279
      %vm828 = vcmp.eq.s32.totalorder %v405, %v276
      %vm829 = vcmp.eq.s32.totalorder %v405, %v277
      %vm830 = vcmp.eq.s32.totalorder %v405, %v278
      %vm831 = vcmp.eq.s32.totalorder %v405, %v279
      %vm832 = vcmp.eq.s32.totalorder %v408, %v276
      %vm833 = vcmp.eq.s32.totalorder %v408, %v277
      %vm834 = vcmp.eq.s32.totalorder %v408, %v278
      %vm835 = vcmp.eq.s32.totalorder %v408, %v279
      %vm836 = vcmp.eq.s32.totalorder %v411, %v276
      %vm837 = vcmp.eq.s32.totalorder %v411, %v277
      %vm838 = vcmp.eq.s32.totalorder %v411, %v278
      %vm839 = vcmp.eq.s32.totalorder %v411, %v279
      %vm840 = vcmp.eq.s32.totalorder %v414, %v276
      %vm841 = vcmp.eq.s32.totalorder %v414, %v277
      %vm842 = vcmp.eq.s32.totalorder %v414, %v278
      %vm843 = vcmp.eq.s32.totalorder %v414, %v279
      %vm844 = vcmp.eq.s32.totalorder %v417, %v276
      %vm845 = vcmp.eq.s32.totalorder %v417, %v277
      %vm846 = vcmp.eq.s32.totalorder %v417, %v278
      %vm847 = vcmp.eq.s32.totalorder %v417, %v279
      %vm848 = vcmp.eq.s32.totalorder %v420, %v276
      %vm849 = vcmp.eq.s32.totalorder %v420, %v277
      %vm850 = vcmp.eq.s32.totalorder %v420, %v278
      %vm851 = vcmp.eq.s32.totalorder %v420, %v279
      %vm852 = vcmp.eq.s32.totalorder %v423, %v276
      %vm853 = vcmp.eq.s32.totalorder %v423, %v277
      %vm854 = vcmp.eq.s32.totalorder %v423, %v278
      %vm855 = vcmp.eq.s32.totalorder %v423, %v279
      %vm856 = vcmp.eq.s32.totalorder %v426, %v276
      %vm857 = vcmp.eq.s32.totalorder %v426, %v277
      %vm858 = vcmp.eq.s32.totalorder %v426, %v278
      %vm859 = vcmp.eq.s32.totalorder %v426, %v279
      %vm860 = vcmp.eq.s32.totalorder %v429, %v276
      %vm861 = vcmp.eq.s32.totalorder %v429, %v277
      %vm862 = vcmp.eq.s32.totalorder %v429, %v278
      %vm863 = vcmp.eq.s32.totalorder %v429, %v279
      %vm864 = vcmp.eq.s32.totalorder %v432, %v276
      %vm865 = vcmp.eq.s32.totalorder %v432, %v277
      %vm866 = vcmp.eq.s32.totalorder %v432, %v278
      %vm867 = vcmp.eq.s32.totalorder %v432, %v279
      %vm868 = vcmp.eq.s32.totalorder %v435, %v276
      %vm869 = vcmp.eq.s32.totalorder %v435, %v277
      %vm870 = vcmp.eq.s32.totalorder %v435, %v278
      %vm871 = vcmp.eq.s32.totalorder %v435, %v279
      %vm872 = vcmp.eq.s32.totalorder %v438, %v276
      %vm873 = vcmp.eq.s32.totalorder %v438, %v277
      %vm874 = vcmp.eq.s32.totalorder %v438, %v278
      %vm875 = vcmp.eq.s32.totalorder %v438, %v279
      %vm876 = vcmp.eq.s32.totalorder %v441, %v276
      %vm877 = vcmp.eq.s32.totalorder %v441, %v277
      %vm878 = vcmp.eq.s32.totalorder %v441, %v278
      %vm879 = vcmp.eq.s32.totalorder %v441, %v279
      %vm880 = vcmp.eq.s32.totalorder %v444, %v276
      %vm881 = vcmp.eq.s32.totalorder %v444, %v277
      %vm882 = vcmp.eq.s32.totalorder %v444, %v278
      %vm883 = vcmp.eq.s32.totalorder %v444, %v279
      %vm884 = vcmp.eq.s32.totalorder %v447, %v276
      %vm885 = vcmp.eq.s32.totalorder %v447, %v277
      %vm886 = vcmp.eq.s32.totalorder %v447, %v278
      %vm887 = vcmp.eq.s32.totalorder %v447, %v279
      %vm888 = vcmp.eq.s32.totalorder %v450, %v276
      %vm889 = vcmp.eq.s32.totalorder %v450, %v277
      %vm890 = vcmp.eq.s32.totalorder %v450, %v278
      %vm891 = vcmp.eq.s32.totalorder %v450, %v279
      %vm892 = vcmp.eq.s32.totalorder %v453, %v276
      %vm893 = vcmp.eq.s32.totalorder %v453, %v277
      %vm894 = vcmp.eq.s32.totalorder %v453, %v278
      %vm895 = vcmp.eq.s32.totalorder %v453, %v279
      %vm896 = vcmp.eq.s32.totalorder %v456, %v276
      %vm897 = vcmp.eq.s32.totalorder %v456, %v277
      %vm898 = vcmp.eq.s32.totalorder %v456, %v278
      %vm899 = vcmp.eq.s32.totalorder %v456, %v279
      %vm900 = vcmp.eq.s32.totalorder %v459, %v276
      %vm901 = vcmp.eq.s32.totalorder %v459, %v277
      %vm902 = vcmp.eq.s32.totalorder %v459, %v278
      %vm903 = vcmp.eq.s32.totalorder %v459, %v279
      %vm904 = vcmp.eq.s32.totalorder %v462, %v276
      %vm905 = vcmp.eq.s32.totalorder %v462, %v277
      %vm906 = vcmp.eq.s32.totalorder %v462, %v278
      %vm907 = vcmp.eq.s32.totalorder %v462, %v279
      %vm908 = vcmp.eq.s32.totalorder %v465, %v276
      %vm909 = vcmp.eq.s32.totalorder %v465, %v277
      %vm910 = vcmp.eq.s32.totalorder %v465, %v278
      %vm911 = vcmp.eq.s32.totalorder %v465, %v279
      %vm912 = vcmp.eq.s32.totalorder %v468, %v276
      %vm913 = vcmp.eq.s32.totalorder %v468, %v277
      %vm914 = vcmp.eq.s32.totalorder %v468, %v278
      %vm915 = vcmp.eq.s32.totalorder %v468, %v279
      %vm916 = vcmp.eq.s32.totalorder %v471, %v276
      %vm917 = vcmp.eq.s32.totalorder %v471, %v277
      %vm918 = vcmp.eq.s32.totalorder %v471, %v278
      %vm919 = vcmp.eq.s32.totalorder %v471, %v279
      %vm920 = vcmp.eq.s32.totalorder %v474, %v276
      %vm921 = vcmp.eq.s32.totalorder %v474, %v277
      %vm922 = vcmp.eq.s32.totalorder %v474, %v278
      %vm923 = vcmp.eq.s32.totalorder %v474, %v279
      %vm924 = vcmp.eq.s32.totalorder %v477, %v276
      %vm925 = vcmp.eq.s32.totalorder %v477, %v277
      %vm926 = vcmp.eq.s32.totalorder %v477, %v278
      %vm927 = vcmp.eq.s32.totalorder %v477, %v279
      %vm928 = vcmp.eq.s32.totalorder %v480, %v276
      %vm929 = vcmp.eq.s32.totalorder %v480, %v277
      %vm930 = vcmp.eq.s32.totalorder %v480, %v278
      %vm931 = vcmp.eq.s32.totalorder %v480, %v279
      %vm932 = vcmp.eq.s32.totalorder %v483, %v276
      %vm933 = vcmp.eq.s32.totalorder %v483, %v277
      %vm934 = vcmp.eq.s32.totalorder %v483, %v278
      %vm935 = vcmp.eq.s32.totalorder %v483, %v279
      %vm936 = vcmp.eq.s32.totalorder %v486, %v276
      %vm937 = vcmp.eq.s32.totalorder %v486, %v277
      %vm938 = vcmp.eq.s32.totalorder %v486, %v278
      %vm939 = vcmp.eq.s32.totalorder %v486, %v279
      %vm940 = vcmp.eq.s32.totalorder %v489, %v276
      %vm941 = vcmp.eq.s32.totalorder %v489, %v277
      %vm942 = vcmp.eq.s32.totalorder %v489, %v278
      %vm943 = vcmp.eq.s32.totalorder %v489, %v279
      %vm944 = vcmp.eq.s32.totalorder %v492, %v276
      %vm945 = vcmp.eq.s32.totalorder %v492, %v277
      %vm946 = vcmp.eq.s32.totalorder %v492, %v278
      %vm947 = vcmp.eq.s32.totalorder %v492, %v279
      %vm948 = vcmp.eq.s32.totalorder %v495, %v276
      %vm949 = vcmp.eq.s32.totalorder %v495, %v277
      %vm950 = vcmp.eq.s32.totalorder %v495, %v278
      %vm951 = vcmp.eq.s32.totalorder %v495, %v279
      %vm952 = vcmp.eq.s32.totalorder %v498, %v276
      %vm953 = vcmp.eq.s32.totalorder %v498, %v277
      %vm954 = vcmp.eq.s32.totalorder %v498, %v278
      %vm955 = vcmp.eq.s32.totalorder %v498, %v279
      %vm956 = vcmp.eq.s32.totalorder %v501, %v276
      %vm957 = vcmp.eq.s32.totalorder %v501, %v277
      %vm958 = vcmp.eq.s32.totalorder %v501, %v278
      %vm959 = vcmp.eq.s32.totalorder %v501, %v279
      %vm960 = vcmp.eq.s32.totalorder %v504, %v276
      %vm961 = vcmp.eq.s32.totalorder %v504, %v277
      %vm962 = vcmp.eq.s32.totalorder %v504, %v278
      %vm963 = vcmp.eq.s32.totalorder %v504, %v279
      %vm964 = vcmp.eq.s32.totalorder %v507, %v276
      %vm965 = vcmp.eq.s32.totalorder %v507, %v277
      %vm966 = vcmp.eq.s32.totalorder %v507, %v278
      %vm967 = vcmp.eq.s32.totalorder %v507, %v279
      %vm968 = vcmp.eq.s32.totalorder %v510, %v276
      %vm969 = vcmp.eq.s32.totalorder %v510, %v277
      %vm970 = vcmp.eq.s32.totalorder %v510, %v278
      %vm971 = vcmp.eq.s32.totalorder %v510, %v279
      %vm972 = vcmp.eq.s32.totalorder %v513, %v276
      %vm973 = vcmp.eq.s32.totalorder %v513, %v277
      %vm974 = vcmp.eq.s32.totalorder %v513, %v278
      %vm975 = vcmp.eq.s32.totalorder %v513, %v279
      %vm976 = vcmp.eq.s32.totalorder %v516, %v276
      %vm977 = vcmp.eq.s32.totalorder %v516, %v277
      %vm978 = vcmp.eq.s32.totalorder %v516, %v278
      %vm979 = vcmp.eq.s32.totalorder %v516, %v279
      %vm980 = vcmp.eq.s32.totalorder %v519, %v276
      %vm981 = vcmp.eq.s32.totalorder %v519, %v277
      %vm982 = vcmp.eq.s32.totalorder %v519, %v278
      %vm983 = vcmp.eq.s32.totalorder %v519, %v279
      %vm984 = vcmp.eq.s32.totalorder %v522, %v276
      %vm985 = vcmp.eq.s32.totalorder %v522, %v277
      %vm986 = vcmp.eq.s32.totalorder %v522, %v278
      %vm987 = vcmp.eq.s32.totalorder %v522, %v279
      %vm988 = vcmp.eq.s32.totalorder %v525, %v276
      %vm989 = vcmp.eq.s32.totalorder %v525, %v277
      %vm990 = vcmp.eq.s32.totalorder %v525, %v278
      %vm991 = vcmp.eq.s32.totalorder %v525, %v279
      %vm992 = vcmp.eq.s32.totalorder %v528, %v276
      %vm993 = vcmp.eq.s32.totalorder %v528, %v277
      %vm994 = vcmp.eq.s32.totalorder %v528, %v278
      %vm995 = vcmp.eq.s32.totalorder %v528, %v279
      %vm996 = vcmp.eq.s32.totalorder %v531, %v276
      %vm997 = vcmp.eq.s32.totalorder %v531, %v277
      %vm998 = vcmp.eq.s32.totalorder %v531, %v278
      %vm999 = vcmp.eq.s32.totalorder %v531, %v279
      %vm1000 = vcmp.eq.s32.totalorder %v534, %v276
      %vm1001 = vcmp.eq.s32.totalorder %v534, %v277
      %vm1002 = vcmp.eq.s32.totalorder %v534, %v278
      %vm1003 = vcmp.eq.s32.totalorder %v534, %v279
      %vm1004 = vcmp.eq.s32.totalorder %v537, %v276
      %vm1005 = vcmp.eq.s32.totalorder %v537, %v277
      %vm1006 = vcmp.eq.s32.totalorder %v537, %v278
      %vm1007 = vcmp.eq.s32.totalorder %v537, %v279
      %vm1008 = vcmp.eq.s32.totalorder %v540, %v276
      %vm1009 = vcmp.eq.s32.totalorder %v540, %v277
      %vm1010 = vcmp.eq.s32.totalorder %v540, %v278
      %vm1011 = vcmp.eq.s32.totalorder %v540, %v279
      %vm1012 = vcmp.eq.s32.totalorder %v543, %v276
      %vm1013 = vcmp.eq.s32.totalorder %v543, %v277
      %vm1014 = vcmp.eq.s32.totalorder %v543, %v278
      %vm1015 = vcmp.eq.s32.totalorder %v543, %v279
      %vm1016 = vcmp.eq.s32.totalorder %v546, %v276
      %vm1017 = vcmp.eq.s32.totalorder %v546, %v277
      %vm1018 = vcmp.eq.s32.totalorder %v546, %v278
      %vm1019 = vcmp.eq.s32.totalorder %v546, %v279
      %vm1020 = vcmp.eq.s32.totalorder %v549, %v276
      %vm1021 = vcmp.eq.s32.totalorder %v549, %v277
      %vm1022 = vcmp.eq.s32.totalorder %v549, %v278
      %vm1023 = vcmp.eq.s32.totalorder %v549, %v279
      %vm1024 = vcmp.eq.s32.totalorder %v552, %v276
      %vm1025 = vcmp.eq.s32.totalorder %v552, %v277
      %vm1026 = vcmp.eq.s32.totalorder %v552, %v278
      %vm1027 = vcmp.eq.s32.totalorder %v552, %v279
      %vm1028 = vcmp.eq.s32.totalorder %v555, %v276
      %vm1029 = vcmp.eq.s32.totalorder %v555, %v277
      %vm1030 = vcmp.eq.s32.totalorder %v555, %v278
      %vm1031 = vcmp.eq.s32.totalorder %v555, %v279
      %vm1032 = vcmp.eq.s32.totalorder %v558, %v276
      %vm1033 = vcmp.eq.s32.totalorder %v558, %v277
      %vm1034 = vcmp.eq.s32.totalorder %v558, %v278
      %vm1035 = vcmp.eq.s32.totalorder %v558, %v279
      %vm1036 = vcmp.eq.s32.totalorder %v561, %v276
      %vm1037 = vcmp.eq.s32.totalorder %v561, %v277
      %vm1038 = vcmp.eq.s32.totalorder %v561, %v278
      %vm1039 = vcmp.eq.s32.totalorder %v561, %v279
      %vm1040 = vcmp.eq.s32.totalorder %v564, %v276
      %vm1041 = vcmp.eq.s32.totalorder %v564, %v277
      %vm1042 = vcmp.eq.s32.totalorder %v564, %v278
      %vm1043 = vcmp.eq.s32.totalorder %v564, %v279
      %vm1044 = vcmp.eq.s32.totalorder %v567, %v276
      %vm1045 = vcmp.eq.s32.totalorder %v567, %v277
      %vm1046 = vcmp.eq.s32.totalorder %v567, %v278
      %vm1047 = vcmp.eq.s32.totalorder %v567, %v279
      %vm1048 = vcmp.eq.s32.totalorder %v570, %v276
      %vm1049 = vcmp.eq.s32.totalorder %v570, %v277
      %vm1050 = vcmp.eq.s32.totalorder %v570, %v278
      %vm1051 = vcmp.eq.s32.totalorder %v570, %v279
      %vm1052 = vcmp.eq.s32.totalorder %v573, %v276
      %vm1053 = vcmp.eq.s32.totalorder %v573, %v277
      %vm1054 = vcmp.eq.s32.totalorder %v573, %v278
      %vm1055 = vcmp.eq.s32.totalorder %v573, %v279
      %vm1056 = vcmp.eq.s32.totalorder %v576, %v276
      %vm1057 = vcmp.eq.s32.totalorder %v576, %v277
      %vm1058 = vcmp.eq.s32.totalorder %v576, %v278
      %vm1059 = vcmp.eq.s32.totalorder %v576, %v279
      %vm1060 = vcmp.eq.s32.totalorder %v579, %v276
      %vm1061 = vcmp.eq.s32.totalorder %v579, %v277
      %vm1062 = vcmp.eq.s32.totalorder %v579, %v278
      %vm1063 = vcmp.eq.s32.totalorder %v579, %v279
      %vm1064 = vcmp.eq.s32.totalorder %v582, %v276
      %vm1065 = vcmp.eq.s32.totalorder %v582, %v277
      %vm1066 = vcmp.eq.s32.totalorder %v582, %v278
      %vm1067 = vcmp.eq.s32.totalorder %v582, %v279
      %vm1068 = vcmp.eq.s32.totalorder %v585, %v276
      %vm1069 = vcmp.eq.s32.totalorder %v585, %v277
      %vm1070 = vcmp.eq.s32.totalorder %v585, %v278
      %vm1071 = vcmp.eq.s32.totalorder %v585, %v279
      %vm1072 = vcmp.eq.s32.totalorder %v588, %v276
      %vm1073 = vcmp.eq.s32.totalorder %v588, %v277
      %vm1074 = vcmp.eq.s32.totalorder %v588, %v278
      %vm1075 = vcmp.eq.s32.totalorder %v588, %v279
      %vm1076 = vcmp.eq.s32.totalorder %v591, %v276
      %vm1077 = vcmp.eq.s32.totalorder %v591, %v277
      %vm1078 = vcmp.eq.s32.totalorder %v591, %v278
      %vm1079 = vcmp.eq.s32.totalorder %v591, %v279
      %vm1080 = vcmp.eq.s32.totalorder %v594, %v276
      %vm1081 = vcmp.eq.s32.totalorder %v594, %v277
      %vm1082 = vcmp.eq.s32.totalorder %v594, %v278
      %vm1083 = vcmp.eq.s32.totalorder %v594, %v279
      %vm1084 = vcmp.eq.s32.totalorder %v597, %v276
      %vm1085 = vcmp.eq.s32.totalorder %v597, %v277
      %vm1086 = vcmp.eq.s32.totalorder %v597, %v278
      %vm1087 = vcmp.eq.s32.totalorder %v597, %v279
      %vm1088 = vcmp.eq.s32.totalorder %v600, %v276
      %vm1089 = vcmp.eq.s32.totalorder %v600, %v277
      %vm1090 = vcmp.eq.s32.totalorder %v600, %v278
      %vm1091 = vcmp.eq.s32.totalorder %v600, %v279
      %vm1092 = vcmp.eq.s32.totalorder %v603, %v276
      %vm1093 = vcmp.eq.s32.totalorder %v603, %v277
      %vm1094 = vcmp.eq.s32.totalorder %v603, %v278
      %vm1095 = vcmp.eq.s32.totalorder %v603, %v279
      %vm1096 = vcmp.eq.s32.totalorder %v606, %v276
      %vm1097 = vcmp.eq.s32.totalorder %v606, %v277
      %vm1098 = vcmp.eq.s32.totalorder %v606, %v278
      %vm1099 = vcmp.eq.s32.totalorder %v606, %v279
      %vm1100 = vcmp.eq.s32.totalorder %v609, %v276
      %vm1101 = vcmp.eq.s32.totalorder %v609, %v277
      %vm1102 = vcmp.eq.s32.totalorder %v609, %v278
      %vm1103 = vcmp.eq.s32.totalorder %v609, %v279
      %vm1104 = vcmp.eq.s32.totalorder %v612, %v276
      %vm1105 = vcmp.eq.s32.totalorder %v612, %v277
      %vm1106 = vcmp.eq.s32.totalorder %v612, %v278
      %vm1107 = vcmp.eq.s32.totalorder %v612, %v279
      %vm1108 = vcmp.eq.s32.totalorder %v615, %v276
      %vm1109 = vcmp.eq.s32.totalorder %v615, %v277
      %vm1110 = vcmp.eq.s32.totalorder %v615, %v278
      %vm1111 = vcmp.eq.s32.totalorder %v615, %v279
      %vm1112 = vcmp.eq.s32.totalorder %v618, %v276
      %vm1113 = vcmp.eq.s32.totalorder %v618, %v277
      %vm1114 = vcmp.eq.s32.totalorder %v618, %v278
      %vm1115 = vcmp.eq.s32.totalorder %v618, %v279
      %vm1116 = vcmp.eq.s32.totalorder %v621, %v276
      %vm1117 = vcmp.eq.s32.totalorder %v621, %v277
      %vm1118 = vcmp.eq.s32.totalorder %v621, %v278
      %vm1119 = vcmp.eq.s32.totalorder %v621, %v279
      %vm1120 = vcmp.eq.s32.totalorder %v624, %v276
      %vm1121 = vcmp.eq.s32.totalorder %v624, %v277
      %vm1122 = vcmp.eq.s32.totalorder %v624, %v278
      %vm1123 = vcmp.eq.s32.totalorder %v624, %v279
      %vm1124 = vcmp.eq.s32.totalorder %v627, %v276
      %vm1125 = vcmp.eq.s32.totalorder %v627, %v277
      %vm1126 = vcmp.eq.s32.totalorder %v627, %v278
      %vm1127 = vcmp.eq.s32.totalorder %v627, %v279
      %vm1128 = vcmp.eq.s32.totalorder %v630, %v276
      %vm1129 = vcmp.eq.s32.totalorder %v630, %v277
      %vm1130 = vcmp.eq.s32.totalorder %v630, %v278
      %vm1131 = vcmp.eq.s32.totalorder %v630, %v279
      %vm1132 = vcmp.eq.s32.totalorder %v633, %v276
      %vm1133 = vcmp.eq.s32.totalorder %v633, %v277
      %vm1134 = vcmp.eq.s32.totalorder %v633, %v278
      %vm1135 = vcmp.eq.s32.totalorder %v633, %v279
      %vm1136 = vcmp.eq.s32.totalorder %v636, %v276
      %vm1137 = vcmp.eq.s32.totalorder %v636, %v277
      %vm1138 = vcmp.eq.s32.totalorder %v636, %v278
      %vm1139 = vcmp.eq.s32.totalorder %v636, %v279
      %vm1140 = vcmp.eq.s32.totalorder %v639, %v276
      %vm1141 = vcmp.eq.s32.totalorder %v639, %v277
      %vm1142 = vcmp.eq.s32.totalorder %v639, %v278
      %vm1143 = vcmp.eq.s32.totalorder %v639, %v279
      %vm1144 = vcmp.eq.s32.totalorder %v642, %v276
      %vm1145 = vcmp.eq.s32.totalorder %v642, %v277
      %vm1146 = vcmp.eq.s32.totalorder %v642, %v278
      %vm1147 = vcmp.eq.s32.totalorder %v642, %v279
      %vm1148 = vcmp.eq.s32.totalorder %v645, %v276
      %vm1149 = vcmp.eq.s32.totalorder %v645, %v277
      %vm1150 = vcmp.eq.s32.totalorder %v645, %v278
      %vm1151 = vcmp.eq.s32.totalorder %v645, %v279
      %vm1152 = vcmp.eq.s32.totalorder %v648, %v276
      %vm1153 = vcmp.eq.s32.totalorder %v648, %v277
      %vm1154 = vcmp.eq.s32.totalorder %v648, %v278
      %vm1155 = vcmp.eq.s32.totalorder %v648, %v279
      %vm1156 = vcmp.eq.s32.totalorder %v651, %v276
      %vm1157 = vcmp.eq.s32.totalorder %v651, %v277
      %vm1158 = vcmp.eq.s32.totalorder %v651, %v278
      %vm1159 = vcmp.eq.s32.totalorder %v651, %v279
      %vm1160 = vcmp.eq.s32.totalorder %v654, %v276
      %vm1161 = vcmp.eq.s32.totalorder %v654, %v277
      %vm1162 = vcmp.eq.s32.totalorder %v654, %v278
      %vm1163 = vcmp.eq.s32.totalorder %v654, %v279
      %vm1164 = vcmp.eq.s32.totalorder %v657, %v276
      %vm1165 = vcmp.eq.s32.totalorder %v657, %v277
      %vm1166 = vcmp.eq.s32.totalorder %v657, %v278
      %vm1167 = vcmp.eq.s32.totalorder %v657, %v279
      %vm1168 = vcmp.eq.s32.totalorder %v660, %v276
      %vm1169 = vcmp.eq.s32.totalorder %v660, %v277
      %vm1170 = vcmp.eq.s32.totalorder %v660, %v278
      %vm1171 = vcmp.eq.s32.totalorder %v660, %v279
      %vm1172 = vcmp.eq.s32.totalorder %v663, %v276
      %vm1173 = vcmp.eq.s32.totalorder %v663, %v277
      %vm1174 = vcmp.eq.s32.totalorder %v663, %v278
      %vm1175 = vcmp.eq.s32.totalorder %v663, %v279
      %v1176 = vsel %vm664, 1, 0
      %v1177 = vsel %vm665, 1, 0
      %v1178 = vsel %vm666, 1, 0
      %v1179 = vsel %vm667, 1, 0
      %v1180 = vsel %vm668, 1, 0
      %v1181 = vsel %vm669, 1, 0
      %v1182 = vsel %vm670, 1, 0
      %v1183 = vsel %vm671, 1, 0
      %v1184 = vsel %vm672, 1, 0
      %v1185 = vsel %vm673, 1, 0
      %v1186 = vsel %vm674, 1, 0
      %v1187 = vsel %vm675, 1, 0
      %v1188 = vsel %vm676, 1, 0
      %v1189 = vsel %vm677, 1, 0
      %v1190 = vsel %vm678, 1, 0
      %v1191 = vsel %vm679, 1, 0
      %v1192 = vsel %vm680, 1, 0
      %v1193 = vsel %vm681, 1, 0
      %v1194 = vsel %vm682, 1, 0
      %v1195 = vsel %vm683, 1, 0
      %v1196 = vsel %vm684, 1, 0
      %v1197 = vsel %vm685, 1, 0
      %v1198 = vsel %vm686, 1, 0
      %v1199 = vsel %vm687, 1, 0
      %v1200 = vsel %vm688, 1, 0
      %v1201 = vsel %vm689, 1, 0
      %v1202 = vsel %vm690, 1, 0
      %v1203 = vsel %vm691, 1, 0
      %v1204 = vsel %vm692, 1, 0
      %v1205 = vsel %vm693, 1, 0
      %v1206 = vsel %vm694, 1, 0
      %v1207 = vsel %vm695, 1, 0
      %v1208 = vsel %vm696, 1, 0
      %v1209 = vsel %vm697, 1, 0
      %v1210 = vsel %vm698, 1, 0
      %v1211 = vsel %vm699, 1, 0
      %v1212 = vsel %vm700, 1, 0
      %v1213 = vsel %vm701, 1, 0
      %v1214 = vsel %vm702, 1, 0
      %v1215 = vsel %vm703, 1, 0
      %v1216 = vsel %vm704, 1, 0
      %v1217 = vsel %vm705, 1, 0
      %v1218 = vsel %vm706, 1, 0
      %v1219 = vsel %vm707, 1, 0
      %v1220 = vsel %vm708, 1, 0
      %v1221 = vsel %vm709, 1, 0
      %v1222 = vsel %vm710, 1, 0
      %v1223 = vsel %vm711, 1, 0
      %v1224 = vsel %vm712, 1, 0
      %v1225 = vsel %vm713, 1, 0
      %v1226 = vsel %vm714, 1, 0
      %v1227 = vsel %vm715, 1, 0
      %v1228 = vsel %vm716, 1, 0
      %v1229 = vsel %vm717, 1, 0
      %v1230 = vsel %vm718, 1, 0
      %v1231 = vsel %vm719, 1, 0
      %v1232 = vsel %vm720, 1, 0
      %v1233 = vsel %vm721, 1, 0
      %v1234 = vsel %vm722, 1, 0
      %v1235 = vsel %vm723, 1, 0
      %v1236 = vsel %vm724, 1, 0
      %v1237 = vsel %vm725, 1, 0
      %v1238 = vsel %vm726, 1, 0
      %v1239 = vsel %vm727, 1, 0
      %v1240 = vsel %vm728, 1, 0
      %v1241 = vsel %vm729, 1, 0
      %v1242 = vsel %vm730, 1, 0
      %v1243 = vsel %vm731, 1, 0
      %v1244 = vsel %vm732, 1, 0
      %v1245 = vsel %vm733, 1, 0
      %v1246 = vsel %vm734, 1, 0
      %v1247 = vsel %vm735, 1, 0
      %v1248 = vsel %vm736, 1, 0
      %v1249 = vsel %vm737, 1, 0
      %v1250 = vsel %vm738, 1, 0
      %v1251 = vsel %vm739, 1, 0
      %v1252 = vsel %vm740, 1, 0
      %v1253 = vsel %vm741, 1, 0
      %v1254 = vsel %vm742, 1, 0
      %v1255 = vsel %vm743, 1, 0
      %v1256 = vsel %vm744, 1, 0
      %v1257 = vsel %vm745, 1, 0
      %v1258 = vsel %vm746, 1, 0
      %v1259 = vsel %vm747, 1, 0
      %v1260 = vsel %vm748, 1, 0
      %v1261 = vsel %vm749, 1, 0
      %v1262 = vsel %vm750, 1, 0
      %v1263 = vsel %vm751, 1, 0
      %v1264 = vsel %vm752, 1, 0
      %v1265 = vsel %vm753, 1, 0
      %v1266 = vsel %vm754, 1, 0
      %v1267 = vsel %vm755, 1, 0
      %v1268 = vsel %vm756, 1, 0
      %v1269 = vsel %vm757, 1, 0
      %v1270 = vsel %vm758, 1, 0
      %v1271 = vsel %vm759, 1, 0
      %v1272 = vsel %vm760, 1, 0
      %v1273 = vsel %vm761, 1, 0
      %v1274 = vsel %vm762, 1, 0
      %v1275 = vsel %vm763, 1, 0
      %v1276 = vsel %vm764, 1, 0
      %v1277 = vsel %vm765, 1, 0
      %v1278 = vsel %vm766, 1, 0
      %v1279 = vsel %vm767, 1, 0
      %v1280 = vsel %vm768, 1, 0
      %v1281 = vsel %vm769, 1, 0
      %v1282 = vsel %vm770, 1, 0
      %v1283 = vsel %vm771, 1, 0
      %v1284 = vsel %vm772, 1, 0
      %v1285 = vsel %vm773, 1, 0
      %v1286 = vsel %vm774, 1, 0
      %v1287 = vsel %vm775, 1, 0
      %v1288 = vsel %vm776, 1, 0
      %v1289 = vsel %vm777, 1, 0
      %v1290 = vsel %vm778, 1, 0
      %v1291 = vsel %vm779, 1, 0
      %v1292 = vsel %vm780, 1, 0
      %v1293 = vsel %vm781, 1, 0
      %v1294 = vsel %vm782, 1, 0
      %v1295 = vsel %vm783, 1, 0
      %v1296 = vsel %vm784, 1, 0
      %v1297 = vsel %vm785, 1, 0
      %v1298 = vsel %vm786, 1, 0
      %v1299 = vsel %vm787, 1, 0
      %v1300 = vsel %vm788, 1, 0
      %v1301 = vsel %vm789, 1, 0
      %v1302 = vsel %vm790, 1, 0
      %v1303 = vsel %vm791, 1, 0
      %v1304 = vsel %vm792, 1, 0
      %v1305 = vsel %vm793, 1, 0
      %v1306 = vsel %vm794, 1, 0
      %v1307 = vsel %vm795, 1, 0
      %v1308 = vsel %vm796, 1, 0
      %v1309 = vsel %vm797, 1, 0
      %v1310 = vsel %vm798, 1, 0
      %v1311 = vsel %vm799, 1, 0
      %v1312 = vsel %vm800, 1, 0
      %v1313 = vsel %vm801, 1, 0
      %v1314 = vsel %vm802, 1, 0
      %v1315 = vsel %vm803, 1, 0
      %v1316 = vsel %vm804, 1, 0
      %v1317 = vsel %vm805, 1, 0
      %v1318 = vsel %vm806, 1, 0
      %v1319 = vsel %vm807, 1, 0
      %v1320 = vsel %vm808, 1, 0
      %v1321 = vsel %vm809, 1, 0
      %v1322 = vsel %vm810, 1, 0
      %v1323 = vsel %vm811, 1, 0
      %v1324 = vsel %vm812, 1, 0
      %v1325 = vsel %vm813, 1, 0
      %v1326 = vsel %vm814, 1, 0
      %v1327 = vsel %vm815, 1, 0
      %v1328 = vsel %vm816, 1, 0
      %v1329 = vsel %vm817, 1, 0
      %v1330 = vsel %vm818, 1, 0
      %v1331 = vsel %vm819, 1, 0
      %v1332 = vsel %vm820, 1, 0
      %v1333 = vsel %vm821, 1, 0
      %v1334 = vsel %vm822, 1, 0
      %v1335 = vsel %vm823, 1, 0
      %v1336 = vsel %vm824, 1, 0
      %v1337 = vsel %vm825, 1, 0
      %v1338 = vsel %vm826, 1, 0
      %v1339 = vsel %vm827, 1, 0
      %v1340 = vsel %vm828, 1, 0
      %v1341 = vsel %vm829, 1, 0
      %v1342 = vsel %vm830, 1, 0
      %v1343 = vsel %vm831, 1, 0
      %v1344 = vsel %vm832, 1, 0
      %v1345 = vsel %vm833, 1, 0
      %v1346 = vsel %vm834, 1, 0
      %v1347 = vsel %vm835, 1, 0
      %v1348 = vsel %vm836, 1, 0
      %v1349 = vsel %vm837, 1, 0
      %v1350 = vsel %vm838, 1, 0
      %v1351 = vsel %vm839, 1, 0
      %v1352 = vsel %vm840, 1, 0
      %v1353 = vsel %vm841, 1, 0
      %v1354 = vsel %vm842, 1, 0
      %v1355 = vsel %vm843, 1, 0
      %v1356 = vsel %vm844, 1, 0
      %v1357 = vsel %vm845, 1, 0
      %v1358 = vsel %vm846, 1, 0
      %v1359 = vsel %vm847, 1, 0
      %v1360 = vsel %vm848, 1, 0
      %v1361 = vsel %vm849, 1, 0
      %v1362 = vsel %vm850, 1, 0
      %v1363 = vsel %vm851, 1, 0
      %v1364 = vsel %vm852, 1, 0
      %v1365 = vsel %vm853, 1, 0
      %v1366 = vsel %vm854, 1, 0
      %v1367 = vsel %vm855, 1, 0
      %v1368 = vsel %vm856, 1, 0
      %v1369 = vsel %vm857, 1, 0
      %v1370 = vsel %vm858, 1, 0
      %v1371 = vsel %vm859, 1, 0
      %v1372 = vsel %vm860, 1, 0
      %v1373 = vsel %vm861, 1, 0
      %v1374 = vsel %vm862, 1, 0
      %v1375 = vsel %vm863, 1, 0
      %v1376 = vsel %vm864, 1, 0
      %v1377 = vsel %vm865, 1, 0
      %v1378 = vsel %vm866, 1, 0
      %v1379 = vsel %vm867, 1, 0
      %v1380 = vsel %vm868, 1, 0
      %v1381 = vsel %vm869, 1, 0
      %v1382 = vsel %vm870, 1, 0
      %v1383 = vsel %vm871, 1, 0
      %v1384 = vsel %vm872, 1, 0
      %v1385 = vsel %vm873, 1, 0
      %v1386 = vsel %vm874, 1, 0
      %v1387 = vsel %vm875, 1, 0
      %v1388 = vsel %vm876, 1, 0
      %v1389 = vsel %vm877, 1, 0
      %v1390 = vsel %vm878, 1, 0
      %v1391 = vsel %vm879, 1, 0
      %v1392 = vsel %vm880, 1, 0
      %v1393 = vsel %vm881, 1, 0
      %v1394 = vsel %vm882, 1, 0
      %v1395 = vsel %vm883, 1, 0
      %v1396 = vsel %vm884, 1, 0
      %v1397 = vsel %vm885, 1, 0
      %v1398 = vsel %vm886, 1, 0
      %v1399 = vsel %vm887, 1, 0
      %v1400 = vsel %vm888, 1, 0
      %v1401 = vsel %vm889, 1, 0
      %v1402 = vsel %vm890, 1, 0
      %v1403 = vsel %vm891, 1, 0
      %v1404 = vsel %vm892, 1, 0
      %v1405 = vsel %vm893, 1, 0
      %v1406 = vsel %vm894, 1, 0
      %v1407 = vsel %vm895, 1, 0
      %v1408 = vsel %vm896, 1, 0
      %v1409 = vsel %vm897, 1, 0
      %v1410 = vsel %vm898, 1, 0
      %v1411 = vsel %vm899, 1, 0
      %v1412 = vsel %vm900, 1, 0
      %v1413 = vsel %vm901, 1, 0
      %v1414 = vsel %vm902, 1, 0
      %v1415 = vsel %vm903, 1, 0
      %v1416 = vsel %vm904, 1, 0
      %v1417 = vsel %vm905, 1, 0
      %v1418 = vsel %vm906, 1, 0
      %v1419 = vsel %vm907, 1, 0
      %v1420 = vsel %vm908, 1, 0
      %v1421 = vsel %vm909, 1, 0
      %v1422 = vsel %vm910, 1, 0
      %v1423 = vsel %vm911, 1, 0
      %v1424 = vsel %vm912, 1, 0
      %v1425 = vsel %vm913, 1, 0
      %v1426 = vsel %vm914, 1, 0
      %v1427 = vsel %vm915, 1, 0
      %v1428 = vsel %vm916, 1, 0
      %v1429 = vsel %vm917, 1, 0
      %v1430 = vsel %vm918, 1, 0
      %v1431 = vsel %vm919, 1, 0
      %v1432 = vsel %vm920, 1, 0
      %v1433 = vsel %vm921, 1, 0
      %v1434 = vsel %vm922, 1, 0
      %v1435 = vsel %vm923, 1, 0
      %v1436 = vsel %vm924, 1, 0
      %v1437 = vsel %vm925, 1, 0
      %v1438 = vsel %vm926, 1, 0
      %v1439 = vsel %vm927, 1, 0
      %v1440 = vsel %vm928, 1, 0
      %v1441 = vsel %vm929, 1, 0
      %v1442 = vsel %vm930, 1, 0
      %v1443 = vsel %vm931, 1, 0
      %v1444 = vsel %vm932, 1, 0
      %v1445 = vsel %vm933, 1, 0
      %v1446 = vsel %vm934, 1, 0
      %v1447 = vsel %vm935, 1, 0
      %v1448 = vsel %vm936, 1, 0
      %v1449 = vsel %vm937, 1, 0
      %v1450 = vsel %vm938, 1, 0
      %v1451 = vsel %vm939, 1, 0
      %v1452 = vsel %vm940, 1, 0
      %v1453 = vsel %vm941, 1, 0
      %v1454 = vsel %vm942, 1, 0
      %v1455 = vsel %vm943, 1, 0
      %v1456 = vsel %vm944, 1, 0
      %v1457 = vsel %vm945, 1, 0
      %v1458 = vsel %vm946, 1, 0
      %v1459 = vsel %vm947, 1, 0
      %v1460 = vsel %vm948, 1, 0
      %v1461 = vsel %vm949, 1, 0
      %v1462 = vsel %vm950, 1, 0
      %v1463 = vsel %vm951, 1, 0
      %v1464 = vsel %vm952, 1, 0
      %v1465 = vsel %vm953, 1, 0
      %v1466 = vsel %vm954, 1, 0
      %v1467 = vsel %vm955, 1, 0
      %v1468 = vsel %vm956, 1, 0
      %v1469 = vsel %vm957, 1, 0
      %v1470 = vsel %vm958, 1, 0
      %v1471 = vsel %vm959, 1, 0
      %v1472 = vsel %vm960, 1, 0
      %v1473 = vsel %vm961, 1, 0
      %v1474 = vsel %vm962, 1, 0
      %v1475 = vsel %vm963, 1, 0
      %v1476 = vsel %vm964, 1, 0
      %v1477 = vsel %vm965, 1, 0
      %v1478 = vsel %vm966, 1, 0
      %v1479 = vsel %vm967, 1, 0
      %v1480 = vsel %vm968, 1, 0
      %v1481 = vsel %vm969, 1, 0
      %v1482 = vsel %vm970, 1, 0
      %v1483 = vsel %vm971, 1, 0
      %v1484 = vsel %vm972, 1, 0
      %v1485 = vsel %vm973, 1, 0
      %v1486 = vsel %vm974, 1, 0
      %v1487 = vsel %vm975, 1, 0
      %v1488 = vsel %vm976, 1, 0
      %v1489 = vsel %vm977, 1, 0
      %v1490 = vsel %vm978, 1, 0
      %v1491 = vsel %vm979, 1, 0
      %v1492 = vsel %vm980, 1, 0
      %v1493 = vsel %vm981, 1, 0
      %v1494 = vsel %vm982, 1, 0
      %v1495 = vsel %vm983, 1, 0
      %v1496 = vsel %vm984, 1, 0
      %v1497 = vsel %vm985, 1, 0
      %v1498 = vsel %vm986, 1, 0
      %v1499 = vsel %vm987, 1, 0
      %v1500 = vsel %vm988, 1, 0
      %v1501 = vsel %vm989, 1, 0
      %v1502 = vsel %vm990, 1, 0
      %v1503 = vsel %vm991, 1, 0
      %v1504 = vsel %vm992, 1, 0
      %v1505 = vsel %vm993, 1, 0
      %v1506 = vsel %vm994, 1, 0
      %v1507 = vsel %vm995, 1, 0
      %v1508 = vsel %vm996, 1, 0
      %v1509 = vsel %vm997, 1, 0
      %v1510 = vsel %vm998, 1, 0
      %v1511 = vsel %vm999, 1, 0
      %v1512 = vsel %vm1000, 1, 0
      %v1513 = vsel %vm1001, 1, 0
      %v1514 = vsel %vm1002, 1, 0
      %v1515 = vsel %vm1003, 1, 0
      %v1516 = vsel %vm1004, 1, 0
      %v1517 = vsel %vm1005, 1, 0
      %v1518 = vsel %vm1006, 1, 0
      %v1519 = vsel %vm1007, 1, 0
      %v1520 = vsel %vm1008, 1, 0
      %v1521 = vsel %vm1009, 1, 0
      %v1522 = vsel %vm1010, 1, 0
      %v1523 = vsel %vm1011, 1, 0
      %v1524 = vsel %vm1012, 1, 0
      %v1525 = vsel %vm1013, 1, 0
      %v1526 = vsel %vm1014, 1, 0
      %v1527 = vsel %vm1015, 1, 0
      %v1528 = vsel %vm1016, 1, 0
      %v1529 = vsel %vm1017, 1, 0
      %v1530 = vsel %vm1018, 1, 0
      %v1531 = vsel %vm1019, 1, 0
      %v1532 = vsel %vm1020, 1, 0
      %v1533 = vsel %vm1021, 1, 0
      %v1534 = vsel %vm1022, 1, 0
      %v1535 = vsel %vm1023, 1, 0
      %v1536 = vsel %vm1024, 1, 0
      %v1537 = vsel %vm1025, 1, 0
      %v1538 = vsel %vm1026, 1, 0
      %v1539 = vsel %vm1027, 1, 0
      %v1540 = vsel %vm1028, 1, 0
      %v1541 = vsel %vm1029, 1, 0
      %v1542 = vsel %vm1030, 1, 0
      %v1543 = vsel %vm1031, 1, 0
      %v1544 = vsel %vm1032, 1, 0
      %v1545 = vsel %vm1033, 1, 0
      %v1546 = vsel %vm1034, 1, 0
      %v1547 = vsel %vm1035, 1, 0
      %v1548 = vsel %vm1036, 1, 0
      %v1549 = vsel %vm1037, 1, 0
      %v1550 = vsel %vm1038, 1, 0
      %v1551 = vsel %vm1039, 1, 0
      %v1552 = vsel %vm1040, 1, 0
      %v1553 = vsel %vm1041, 1, 0
      %v1554 = vsel %vm1042, 1, 0
      %v1555 = vsel %vm1043, 1, 0
      %v1556 = vsel %vm1044, 1, 0
      %v1557 = vsel %vm1045, 1, 0
      %v1558 = vsel %vm1046, 1, 0
      %v1559 = vsel %vm1047, 1, 0
      %v1560 = vsel %vm1048, 1, 0
      %v1561 = vsel %vm1049, 1, 0
      %v1562 = vsel %vm1050, 1, 0
      %v1563 = vsel %vm1051, 1, 0
      %v1564 = vsel %vm1052, 1, 0
      %v1565 = vsel %vm1053, 1, 0
      %v1566 = vsel %vm1054, 1, 0
      %v1567 = vsel %vm1055, 1, 0
      %v1568 = vsel %vm1056, 1, 0
      %v1569 = vsel %vm1057, 1, 0
      %v1570 = vsel %vm1058, 1, 0
      %v1571 = vsel %vm1059, 1, 0
      %v1572 = vsel %vm1060, 1, 0
      %v1573 = vsel %vm1061, 1, 0
      %v1574 = vsel %vm1062, 1, 0
      %v1575 = vsel %vm1063, 1, 0
      %v1576 = vsel %vm1064, 1, 0
      %v1577 = vsel %vm1065, 1, 0
      %v1578 = vsel %vm1066, 1, 0
      %v1579 = vsel %vm1067, 1, 0
      %v1580 = vsel %vm1068, 1, 0
      %v1581 = vsel %vm1069, 1, 0
      %v1582 = vsel %vm1070, 1, 0
      %v1583 = vsel %vm1071, 1, 0
      %v1584 = vsel %vm1072, 1, 0
      %v1585 = vsel %vm1073, 1, 0
      %v1586 = vsel %vm1074, 1, 0
      %v1587 = vsel %vm1075, 1, 0
      %v1588 = vsel %vm1076, 1, 0
      %v1589 = vsel %vm1077, 1, 0
      %v1590 = vsel %vm1078, 1, 0
      %v1591 = vsel %vm1079, 1, 0
      %v1592 = vsel %vm1080, 1, 0
      %v1593 = vsel %vm1081, 1, 0
      %v1594 = vsel %vm1082, 1, 0
      %v1595 = vsel %vm1083, 1, 0
      %v1596 = vsel %vm1084, 1, 0
      %v1597 = vsel %vm1085, 1, 0
      %v1598 = vsel %vm1086, 1, 0
      %v1599 = vsel %vm1087, 1, 0
      %v1600 = vsel %vm1088, 1, 0
      %v1601 = vsel %vm1089, 1, 0
      %v1602 = vsel %vm1090, 1, 0
      %v1603 = vsel %vm1091, 1, 0
      %v1604 = vsel %vm1092, 1, 0
      %v1605 = vsel %vm1093, 1, 0
      %v1606 = vsel %vm1094, 1, 0
      %v1607 = vsel %vm1095, 1, 0
      %v1608 = vsel %vm1096, 1, 0
      %v1609 = vsel %vm1097, 1, 0
      %v1610 = vsel %vm1098, 1, 0
      %v1611 = vsel %vm1099, 1, 0
      %v1612 = vsel %vm1100, 1, 0
      %v1613 = vsel %vm1101, 1, 0
      %v1614 = vsel %vm1102, 1, 0
      %v1615 = vsel %vm1103, 1, 0
      %v1616 = vsel %vm1104, 1, 0
      %v1617 = vsel %vm1105, 1, 0
      %v1618 = vsel %vm1106, 1, 0
      %v1619 = vsel %vm1107, 1, 0
      %v1620 = vsel %vm1108, 1, 0
      %v1621 = vsel %vm1109, 1, 0
      %v1622 = vsel %vm1110, 1, 0
      %v1623 = vsel %vm1111, 1, 0
      %v1624 = vsel %vm1112, 1, 0
      %v1625 = vsel %vm1113, 1, 0
      %v1626 = vsel %vm1114, 1, 0
      %v1627 = vsel %vm1115, 1, 0
      %v1628 = vsel %vm1116, 1, 0
      %v1629 = vsel %vm1117, 1, 0
      %v1630 = vsel %vm1118, 1, 0
      %v1631 = vsel %vm1119, 1, 0
      %v1632 = vsel %vm1120, 1, 0
      %v1633 = vsel %vm1121, 1, 0
      %v1634 = vsel %vm1122, 1, 0
      %v1635 = vsel %vm1123, 1, 0
      %v1636 = vsel %vm1124, 1, 0
      %v1637 = vsel %vm1125, 1, 0
      %v1638 = vsel %vm1126, 1, 0
      %v1639 = vsel %vm1127, 1, 0
      %v1640 = vsel %vm1128, 1, 0
      %v1641 = vsel %vm1129, 1, 0
      %v1642 = vsel %vm1130, 1, 0
      %v1643 = vsel %vm1131, 1, 0
      %v1644 = vsel %vm1132, 1, 0
      %v1645 = vsel %vm1133, 1, 0
      %v1646 = vsel %vm1134, 1, 0
      %v1647 = vsel %vm1135, 1, 0
      %v1648 = vsel %vm1136, 1, 0
      %v1649 = vsel %vm1137, 1, 0
      %v1650 = vsel %vm1138, 1, 0
      %v1651 = vsel %vm1139, 1, 0
      %v1652 = vsel %vm1140, 1, 0
      %v1653 = vsel %vm1141, 1, 0
      %v1654 = vsel %vm1142, 1, 0
      %v1655 = vsel %vm1143, 1, 0
      %v1656 = vsel %vm1144, 1, 0
      %v1657 = vsel %vm1145, 1, 0
      %v1658 = vsel %vm1146, 1, 0
      %v1659 = vsel %vm1147, 1, 0
      %v1660 = vsel %vm1148, 1, 0
      %v1661 = vsel %vm1149, 1, 0
      %v1662 = vsel %vm1150, 1, 0
      %v1663 = vsel %vm1151, 1, 0
      %v1664 = vsel %vm1152, 1, 0
      %v1665 = vsel %vm1153, 1, 0
      %v1666 = vsel %vm1154, 1, 0
      %v1667 = vsel %vm1155, 1, 0
      %v1668 = vsel %vm1156, 1, 0
      %v1669 = vsel %vm1157, 1, 0
      %v1670 = vsel %vm1158, 1, 0
      %v1671 = vsel %vm1159, 1, 0
      %v1672 = vsel %vm1160, 1, 0
      %v1673 = vsel %vm1161, 1, 0
      %v1674 = vsel %vm1162, 1, 0
      %v1675 = vsel %vm1163, 1, 0
      %v1676 = vsel %vm1164, 1, 0
      %v1677 = vsel %vm1165, 1, 0
      %v1678 = vsel %vm1166, 1, 0
      %v1679 = vsel %vm1167, 1, 0
      %v1680 = vsel %vm1168, 1, 0
      %v1681 = vsel %vm1169, 1, 0
      %v1682 = vsel %vm1170, 1, 0
      %v1683 = vsel %vm1171, 1, 0
      %v1684 = vsel %vm1172, 1, 0
      %v1685 = vsel %vm1173, 1, 0
      %v1686 = vsel %vm1174, 1, 0
      %v1687 = vsel %vm1175, 1, 0
      %v1688 = vcvt.s32.f32 %v1176
      %v1689 = vcvt.s32.f32 %v1177
      %v1690 = vcvt.s32.f32 %v1178
      %v1691 = vcvt.s32.f32 %v1179
      %v1692 = vcvt.s32.f32 %v1180
      %v1693 = vcvt.s32.f32 %v1181
      %v1694 = vcvt.s32.f32 %v1182
      %v1695 = vcvt.s32.f32 %v1183
      %v1696 = vcvt.s32.f32 %v1184
      %v1697 = vcvt.s32.f32 %v1185
      %v1698 = vcvt.s32.f32 %v1186
      %v1699 = vcvt.s32.f32 %v1187
      %v1700 = vcvt.s32.f32 %v1188
      %v1701 = vcvt.s32.f32 %v1189
      %v1702 = vcvt.s32.f32 %v1190
      %v1703 = vcvt.s32.f32 %v1191
      %v1704 = vcvt.s32.f32 %v1192
      %v1705 = vcvt.s32.f32 %v1193
      %v1706 = vcvt.s32.f32 %v1194
      %v1707 = vcvt.s32.f32 %v1195
      %v1708 = vcvt.s32.f32 %v1196
      %v1709 = vcvt.s32.f32 %v1197
      %v1710 = vcvt.s32.f32 %v1198
      %v1711 = vcvt.s32.f32 %v1199
      %v1712 = vcvt.s32.f32 %v1200
      %v1713 = vcvt.s32.f32 %v1201
      %v1714 = vcvt.s32.f32 %v1202
      %v1715 = vcvt.s32.f32 %v1203
      %v1716 = vcvt.s32.f32 %v1204
      %v1717 = vcvt.s32.f32 %v1205
      %v1718 = vcvt.s32.f32 %v1206
      %v1719 = vcvt.s32.f32 %v1207
      %v1720 = vcvt.s32.f32 %v1208
      %v1721 = vcvt.s32.f32 %v1209
      %v1722 = vcvt.s32.f32 %v1210
      %v1723 = vcvt.s32.f32 %v1211
      %v1724 = vcvt.s32.f32 %v1212
      %v1725 = vcvt.s32.f32 %v1213
      %v1726 = vcvt.s32.f32 %v1214
      %v1727 = vcvt.s32.f32 %v1215
      %v1728 = vcvt.s32.f32 %v1216
      %v1729 = vcvt.s32.f32 %v1217
      %v1730 = vcvt.s32.f32 %v1218
      %v1731 = vcvt.s32.f32 %v1219
      %v1732 = vcvt.s32.f32 %v1220
      %v1733 = vcvt.s32.f32 %v1221
      %v1734 = vcvt.s32.f32 %v1222
      %v1735 = vcvt.s32.f32 %v1223
      %v1736 = vcvt.s32.f32 %v1224
      %v1737 = vcvt.s32.f32 %v1225
      %v1738 = vcvt.s32.f32 %v1226
      %v1739 = vcvt.s32.f32 %v1227
      %v1740 = vcvt.s32.f32 %v1228
      %v1741 = vcvt.s32.f32 %v1229
      %v1742 = vcvt.s32.f32 %v1230
      %v1743 = vcvt.s32.f32 %v1231
      %v1744 = vcvt.s32.f32 %v1232
      %v1745 = vcvt.s32.f32 %v1233
      %v1746 = vcvt.s32.f32 %v1234
      %v1747 = vcvt.s32.f32 %v1235
      %v1748 = vcvt.s32.f32 %v1236
      %v1749 = vcvt.s32.f32 %v1237
      %v1750 = vcvt.s32.f32 %v1238
      %v1751 = vcvt.s32.f32 %v1239
      %v1752 = vcvt.s32.f32 %v1240
      %v1753 = vcvt.s32.f32 %v1241
      %v1754 = vcvt.s32.f32 %v1242
      %v1755 = vcvt.s32.f32 %v1243
      %v1756 = vcvt.s32.f32 %v1244
      %v1757 = vcvt.s32.f32 %v1245
      %v1758 = vcvt.s32.f32 %v1246
      %v1759 = vcvt.s32.f32 %v1247
      %v1760 = vcvt.s32.f32 %v1248
      %v1761 = vcvt.s32.f32 %v1249
      %v1762 = vcvt.s32.f32 %v1250
      %v1763 = vcvt.s32.f32 %v1251
      %v1764 = vcvt.s32.f32 %v1252
      %v1765 = vcvt.s32.f32 %v1253
      %v1766 = vcvt.s32.f32 %v1254
      %v1767 = vcvt.s32.f32 %v1255
      %v1768 = vcvt.s32.f32 %v1256
      %v1769 = vcvt.s32.f32 %v1257
      %v1770 = vcvt.s32.f32 %v1258
      %v1771 = vcvt.s32.f32 %v1259
      %v1772 = vcvt.s32.f32 %v1260
      %v1773 = vcvt.s32.f32 %v1261
      %v1774 = vcvt.s32.f32 %v1262
      %v1775 = vcvt.s32.f32 %v1263
      %v1776 = vcvt.s32.f32 %v1264
      %v1777 = vcvt.s32.f32 %v1265
      %v1778 = vcvt.s32.f32 %v1266
      %v1779 = vcvt.s32.f32 %v1267
      %v1780 = vcvt.s32.f32 %v1268
      %v1781 = vcvt.s32.f32 %v1269
      %v1782 = vcvt.s32.f32 %v1270
      %v1783 = vcvt.s32.f32 %v1271
      %v1784 = vcvt.s32.f32 %v1272
      %v1785 = vcvt.s32.f32 %v1273
      %v1786 = vcvt.s32.f32 %v1274
      %v1787 = vcvt.s32.f32 %v1275
      %v1788 = vcvt.s32.f32 %v1276
      %v1789 = vcvt.s32.f32 %v1277
      %v1790 = vcvt.s32.f32 %v1278
      %v1791 = vcvt.s32.f32 %v1279
      %v1792 = vcvt.s32.f32 %v1280
      %v1793 = vcvt.s32.f32 %v1281
      %v1794 = vcvt.s32.f32 %v1282
      %v1795 = vcvt.s32.f32 %v1283
      %v1796 = vcvt.s32.f32 %v1284
      %v1797 = vcvt.s32.f32 %v1285
      %v1798 = vcvt.s32.f32 %v1286
      %v1799 = vcvt.s32.f32 %v1287
      %v1800 = vcvt.s32.f32 %v1288
      %v1801 = vcvt.s32.f32 %v1289
      %v1802 = vcvt.s32.f32 %v1290
      %v1803 = vcvt.s32.f32 %v1291
      %v1804 = vcvt.s32.f32 %v1292
      %v1805 = vcvt.s32.f32 %v1293
      %v1806 = vcvt.s32.f32 %v1294
      %v1807 = vcvt.s32.f32 %v1295
      %v1808 = vcvt.s32.f32 %v1296
      %v1809 = vcvt.s32.f32 %v1297
      %v1810 = vcvt.s32.f32 %v1298
      %v1811 = vcvt.s32.f32 %v1299
      %v1812 = vcvt.s32.f32 %v1300
      %v1813 = vcvt.s32.f32 %v1301
      %v1814 = vcvt.s32.f32 %v1302
      %v1815 = vcvt.s32.f32 %v1303
      %v1816 = vcvt.s32.f32 %v1304
      %v1817 = vcvt.s32.f32 %v1305
      %v1818 = vcvt.s32.f32 %v1306
      %v1819 = vcvt.s32.f32 %v1307
      %v1820 = vcvt.s32.f32 %v1308
      %v1821 = vcvt.s32.f32 %v1309
      %v1822 = vcvt.s32.f32 %v1310
      %v1823 = vcvt.s32.f32 %v1311
      %v1824 = vcvt.s32.f32 %v1312
      %v1825 = vcvt.s32.f32 %v1313
      %v1826 = vcvt.s32.f32 %v1314
      %v1827 = vcvt.s32.f32 %v1315
      %v1828 = vcvt.s32.f32 %v1316
      %v1829 = vcvt.s32.f32 %v1317
      %v1830 = vcvt.s32.f32 %v1318
      %v1831 = vcvt.s32.f32 %v1319
      %v1832 = vcvt.s32.f32 %v1320
      %v1833 = vcvt.s32.f32 %v1321
      %v1834 = vcvt.s32.f32 %v1322
      %v1835 = vcvt.s32.f32 %v1323
      %v1836 = vcvt.s32.f32 %v1324
      %v1837 = vcvt.s32.f32 %v1325
      %v1838 = vcvt.s32.f32 %v1326
      %v1839 = vcvt.s32.f32 %v1327
      %v1840 = vcvt.s32.f32 %v1328
      %v1841 = vcvt.s32.f32 %v1329
      %v1842 = vcvt.s32.f32 %v1330
      %v1843 = vcvt.s32.f32 %v1331
      %v1844 = vcvt.s32.f32 %v1332
      %v1845 = vcvt.s32.f32 %v1333
      %v1846 = vcvt.s32.f32 %v1334
      %v1847 = vcvt.s32.f32 %v1335
      %v1848 = vcvt.s32.f32 %v1336
      %v1849 = vcvt.s32.f32 %v1337
      %v1850 = vcvt.s32.f32 %v1338
      %v1851 = vcvt.s32.f32 %v1339
      %v1852 = vcvt.s32.f32 %v1340
      %v1853 = vcvt.s32.f32 %v1341
      %v1854 = vcvt.s32.f32 %v1342
      %v1855 = vcvt.s32.f32 %v1343
      %v1856 = vcvt.s32.f32 %v1344
      %v1857 = vcvt.s32.f32 %v1345
      %v1858 = vcvt.s32.f32 %v1346
      %v1859 = vcvt.s32.f32 %v1347
      %v1860 = vcvt.s32.f32 %v1348
      %v1861 = vcvt.s32.f32 %v1349
      %v1862 = vcvt.s32.f32 %v1350
      %v1863 = vcvt.s32.f32 %v1351
      %v1864 = vcvt.s32.f32 %v1352
      %v1865 = vcvt.s32.f32 %v1353
      %v1866 = vcvt.s32.f32 %v1354
      %v1867 = vcvt.s32.f32 %v1355
      %v1868 = vcvt.s32.f32 %v1356
      %v1869 = vcvt.s32.f32 %v1357
      %v1870 = vcvt.s32.f32 %v1358
      %v1871 = vcvt.s32.f32 %v1359
      %v1872 = vcvt.s32.f32 %v1360
      %v1873 = vcvt.s32.f32 %v1361
      %v1874 = vcvt.s32.f32 %v1362
      %v1875 = vcvt.s32.f32 %v1363
      %v1876 = vcvt.s32.f32 %v1364
      %v1877 = vcvt.s32.f32 %v1365
      %v1878 = vcvt.s32.f32 %v1366
      %v1879 = vcvt.s32.f32 %v1367
      %v1880 = vcvt.s32.f32 %v1368
      %v1881 = vcvt.s32.f32 %v1369
      %v1882 = vcvt.s32.f32 %v1370
      %v1883 = vcvt.s32.f32 %v1371
      %v1884 = vcvt.s32.f32 %v1372
      %v1885 = vcvt.s32.f32 %v1373
      %v1886 = vcvt.s32.f32 %v1374
      %v1887 = vcvt.s32.f32 %v1375
      %v1888 = vcvt.s32.f32 %v1376
      %v1889 = vcvt.s32.f32 %v1377
      %v1890 = vcvt.s32.f32 %v1378
      %v1891 = vcvt.s32.f32 %v1379
      %v1892 = vcvt.s32.f32 %v1380
      %v1893 = vcvt.s32.f32 %v1381
      %v1894 = vcvt.s32.f32 %v1382
      %v1895 = vcvt.s32.f32 %v1383
      %v1896 = vcvt.s32.f32 %v1384
      %v1897 = vcvt.s32.f32 %v1385
      %v1898 = vcvt.s32.f32 %v1386
      %v1899 = vcvt.s32.f32 %v1387
      %v1900 = vcvt.s32.f32 %v1388
      %v1901 = vcvt.s32.f32 %v1389
      %v1902 = vcvt.s32.f32 %v1390
      %v1903 = vcvt.s32.f32 %v1391
      %v1904 = vcvt.s32.f32 %v1392
      %v1905 = vcvt.s32.f32 %v1393
      %v1906 = vcvt.s32.f32 %v1394
      %v1907 = vcvt.s32.f32 %v1395
      %v1908 = vcvt.s32.f32 %v1396
      %v1909 = vcvt.s32.f32 %v1397
      %v1910 = vcvt.s32.f32 %v1398
      %v1911 = vcvt.s32.f32 %v1399
      %v1912 = vcvt.s32.f32 %v1400
      %v1913 = vcvt.s32.f32 %v1401
      %v1914 = vcvt.s32.f32 %v1402
      %v1915 = vcvt.s32.f32 %v1403
      %v1916 = vcvt.s32.f32 %v1404
      %v1917 = vcvt.s32.f32 %v1405
      %v1918 = vcvt.s32.f32 %v1406
      %v1919 = vcvt.s32.f32 %v1407
      %v1920 = vcvt.s32.f32 %v1408
      %v1921 = vcvt.s32.f32 %v1409
      %v1922 = vcvt.s32.f32 %v1410
      %v1923 = vcvt.s32.f32 %v1411
      %v1924 = vcvt.s32.f32 %v1412
      %v1925 = vcvt.s32.f32 %v1413
      %v1926 = vcvt.s32.f32 %v1414
      %v1927 = vcvt.s32.f32 %v1415
      %v1928 = vcvt.s32.f32 %v1416
      %v1929 = vcvt.s32.f32 %v1417
      %v1930 = vcvt.s32.f32 %v1418
      %v1931 = vcvt.s32.f32 %v1419
      %v1932 = vcvt.s32.f32 %v1420
      %v1933 = vcvt.s32.f32 %v1421
      %v1934 = vcvt.s32.f32 %v1422
      %v1935 = vcvt.s32.f32 %v1423
      %v1936 = vcvt.s32.f32 %v1424
      %v1937 = vcvt.s32.f32 %v1425
      %v1938 = vcvt.s32.f32 %v1426
      %v1939 = vcvt.s32.f32 %v1427
      %v1940 = vcvt.s32.f32 %v1428
      %v1941 = vcvt.s32.f32 %v1429
      %v1942 = vcvt.s32.f32 %v1430
      %v1943 = vcvt.s32.f32 %v1431
      %v1944 = vcvt.s32.f32 %v1432
      %v1945 = vcvt.s32.f32 %v1433
      %v1946 = vcvt.s32.f32 %v1434
      %v1947 = vcvt.s32.f32 %v1435
      %v1948 = vcvt.s32.f32 %v1436
      %v1949 = vcvt.s32.f32 %v1437
      %v1950 = vcvt.s32.f32 %v1438
      %v1951 = vcvt.s32.f32 %v1439
      %v1952 = vcvt.s32.f32 %v1440
      %v1953 = vcvt.s32.f32 %v1441
      %v1954 = vcvt.s32.f32 %v1442
      %v1955 = vcvt.s32.f32 %v1443
      %v1956 = vcvt.s32.f32 %v1444
      %v1957 = vcvt.s32.f32 %v1445
      %v1958 = vcvt.s32.f32 %v1446
      %v1959 = vcvt.s32.f32 %v1447
      %v1960 = vcvt.s32.f32 %v1448
      %v1961 = vcvt.s32.f32 %v1449
      %v1962 = vcvt.s32.f32 %v1450
      %v1963 = vcvt.s32.f32 %v1451
      %v1964 = vcvt.s32.f32 %v1452
      %v1965 = vcvt.s32.f32 %v1453
      %v1966 = vcvt.s32.f32 %v1454
      %v1967 = vcvt.s32.f32 %v1455
      %v1968 = vcvt.s32.f32 %v1456
      %v1969 = vcvt.s32.f32 %v1457
      %v1970 = vcvt.s32.f32 %v1458
      %v1971 = vcvt.s32.f32 %v1459
      %v1972 = vcvt.s32.f32 %v1460
      %v1973 = vcvt.s32.f32 %v1461
      %v1974 = vcvt.s32.f32 %v1462
      %v1975 = vcvt.s32.f32 %v1463
      %v1976 = vcvt.s32.f32 %v1464
      %v1977 = vcvt.s32.f32 %v1465
      %v1978 = vcvt.s32.f32 %v1466
      %v1979 = vcvt.s32.f32 %v1467
      %v1980 = vcvt.s32.f32 %v1468
      %v1981 = vcvt.s32.f32 %v1469
      %v1982 = vcvt.s32.f32 %v1470
      %v1983 = vcvt.s32.f32 %v1471
      %v1984 = vcvt.s32.f32 %v1472
      %v1985 = vcvt.s32.f32 %v1473
      %v1986 = vcvt.s32.f32 %v1474
      %v1987 = vcvt.s32.f32 %v1475
      %v1988 = vcvt.s32.f32 %v1476
      %v1989 = vcvt.s32.f32 %v1477
      %v1990 = vcvt.s32.f32 %v1478
      %v1991 = vcvt.s32.f32 %v1479
      %v1992 = vcvt.s32.f32 %v1480
      %v1993 = vcvt.s32.f32 %v1481
      %v1994 = vcvt.s32.f32 %v1482
      %v1995 = vcvt.s32.f32 %v1483
      %v1996 = vcvt.s32.f32 %v1484
      %v1997 = vcvt.s32.f32 %v1485
      %v1998 = vcvt.s32.f32 %v1486
      %v1999 = vcvt.s32.f32 %v1487
      %v2000 = vcvt.s32.f32 %v1488
      %v2001 = vcvt.s32.f32 %v1489
      %v2002 = vcvt.s32.f32 %v1490
      %v2003 = vcvt.s32.f32 %v1491
      %v2004 = vcvt.s32.f32 %v1492
      %v2005 = vcvt.s32.f32 %v1493
      %v2006 = vcvt.s32.f32 %v1494
      %v2007 = vcvt.s32.f32 %v1495
      %v2008 = vcvt.s32.f32 %v1496
      %v2009 = vcvt.s32.f32 %v1497
      %v2010 = vcvt.s32.f32 %v1498
      %v2011 = vcvt.s32.f32 %v1499
      %v2012 = vcvt.s32.f32 %v1500
      %v2013 = vcvt.s32.f32 %v1501
      %v2014 = vcvt.s32.f32 %v1502
      %v2015 = vcvt.s32.f32 %v1503
      %v2016 = vcvt.s32.f32 %v1504
      %v2017 = vcvt.s32.f32 %v1505
      %v2018 = vcvt.s32.f32 %v1506
      %v2019 = vcvt.s32.f32 %v1507
      %v2020 = vcvt.s32.f32 %v1508
      %v2021 = vcvt.s32.f32 %v1509
      %v2022 = vcvt.s32.f32 %v1510
      %v2023 = vcvt.s32.f32 %v1511
      %v2024 = vcvt.s32.f32 %v1512
      %v2025 = vcvt.s32.f32 %v1513
      %v2026 = vcvt.s32.f32 %v1514
      %v2027 = vcvt.s32.f32 %v1515
      %v2028 = vcvt.s32.f32 %v1516
      %v2029 = vcvt.s32.f32 %v1517
      %v2030 = vcvt.s32.f32 %v1518
      %v2031 = vcvt.s32.f32 %v1519
      %v2032 = vcvt.s32.f32 %v1520
      %v2033 = vcvt.s32.f32 %v1521
      %v2034 = vcvt.s32.f32 %v1522
      %v2035 = vcvt.s32.f32 %v1523
      %v2036 = vcvt.s32.f32 %v1524
      %v2037 = vcvt.s32.f32 %v1525
      %v2038 = vcvt.s32.f32 %v1526
      %v2039 = vcvt.s32.f32 %v1527
      %v2040 = vcvt.s32.f32 %v1528
      %v2041 = vcvt.s32.f32 %v1529
      %v2042 = vcvt.s32.f32 %v1530
      %v2043 = vcvt.s32.f32 %v1531
      %v2044 = vcvt.s32.f32 %v1532
      %v2045 = vcvt.s32.f32 %v1533
      %v2046 = vcvt.s32.f32 %v1534
      %v2047 = vcvt.s32.f32 %v1535
      %v2048 = vcvt.s32.f32 %v1536
      %v2049 = vcvt.s32.f32 %v1537
      %v2050 = vcvt.s32.f32 %v1538
      %v2051 = vcvt.s32.f32 %v1539
      %v2052 = vcvt.s32.f32 %v1540
      %v2053 = vcvt.s32.f32 %v1541
      %v2054 = vcvt.s32.f32 %v1542
      %v2055 = vcvt.s32.f32 %v1543
      %v2056 = vcvt.s32.f32 %v1544
      %v2057 = vcvt.s32.f32 %v1545
      %v2058 = vcvt.s32.f32 %v1546
      %v2059 = vcvt.s32.f32 %v1547
      %v2060 = vcvt.s32.f32 %v1548
      %v2061 = vcvt.s32.f32 %v1549
      %v2062 = vcvt.s32.f32 %v1550
      %v2063 = vcvt.s32.f32 %v1551
      %v2064 = vcvt.s32.f32 %v1552
      %v2065 = vcvt.s32.f32 %v1553
      %v2066 = vcvt.s32.f32 %v1554
      %v2067 = vcvt.s32.f32 %v1555
      %v2068 = vcvt.s32.f32 %v1556
      %v2069 = vcvt.s32.f32 %v1557
      %v2070 = vcvt.s32.f32 %v1558
      %v2071 = vcvt.s32.f32 %v1559
      %v2072 = vcvt.s32.f32 %v1560
      %v2073 = vcvt.s32.f32 %v1561
      %v2074 = vcvt.s32.f32 %v1562
      %v2075 = vcvt.s32.f32 %v1563
      %v2076 = vcvt.s32.f32 %v1564
      %v2077 = vcvt.s32.f32 %v1565
      %v2078 = vcvt.s32.f32 %v1566
      %v2079 = vcvt.s32.f32 %v1567
      %v2080 = vcvt.s32.f32 %v1568
      %v2081 = vcvt.s32.f32 %v1569
      %v2082 = vcvt.s32.f32 %v1570
      %v2083 = vcvt.s32.f32 %v1571
      %v2084 = vcvt.s32.f32 %v1572
      %v2085 = vcvt.s32.f32 %v1573
      %v2086 = vcvt.s32.f32 %v1574
      %v2087 = vcvt.s32.f32 %v1575
      %v2088 = vcvt.s32.f32 %v1576
      %v2089 = vcvt.s32.f32 %v1577
      %v2090 = vcvt.s32.f32 %v1578
      %v2091 = vcvt.s32.f32 %v1579
      %v2092 = vcvt.s32.f32 %v1580
      %v2093 = vcvt.s32.f32 %v1581
      %v2094 = vcvt.s32.f32 %v1582
      %v2095 = vcvt.s32.f32 %v1583
      %v2096 = vcvt.s32.f32 %v1584
      %v2097 = vcvt.s32.f32 %v1585
      %v2098 = vcvt.s32.f32 %v1586
      %v2099 = vcvt.s32.f32 %v1587
      %v2100 = vcvt.s32.f32 %v1588
      %v2101 = vcvt.s32.f32 %v1589
      %v2102 = vcvt.s32.f32 %v1590
      %v2103 = vcvt.s32.f32 %v1591
      %v2104 = vcvt.s32.f32 %v1592
      %v2105 = vcvt.s32.f32 %v1593
      %v2106 = vcvt.s32.f32 %v1594
      %v2107 = vcvt.s32.f32 %v1595
      %v2108 = vcvt.s32.f32 %v1596
      %v2109 = vcvt.s32.f32 %v1597
      %v2110 = vcvt.s32.f32 %v1598
      %v2111 = vcvt.s32.f32 %v1599
      %v2112 = vcvt.s32.f32 %v1600
      %v2113 = vcvt.s32.f32 %v1601
      %v2114 = vcvt.s32.f32 %v1602
      %v2115 = vcvt.s32.f32 %v1603
      %v2116 = vcvt.s32.f32 %v1604
      %v2117 = vcvt.s32.f32 %v1605
      %v2118 = vcvt.s32.f32 %v1606
      %v2119 = vcvt.s32.f32 %v1607
      %v2120 = vcvt.s32.f32 %v1608
      %v2121 = vcvt.s32.f32 %v1609
      %v2122 = vcvt.s32.f32 %v1610
      %v2123 = vcvt.s32.f32 %v1611
      %v2124 = vcvt.s32.f32 %v1612
      %v2125 = vcvt.s32.f32 %v1613
      %v2126 = vcvt.s32.f32 %v1614
      %v2127 = vcvt.s32.f32 %v1615
      %v2128 = vcvt.s32.f32 %v1616
      %v2129 = vcvt.s32.f32 %v1617
      %v2130 = vcvt.s32.f32 %v1618
      %v2131 = vcvt.s32.f32 %v1619
      %v2132 = vcvt.s32.f32 %v1620
      %v2133 = vcvt.s32.f32 %v1621
      %v2134 = vcvt.s32.f32 %v1622
      %v2135 = vcvt.s32.f32 %v1623
      %v2136 = vcvt.s32.f32 %v1624
      %v2137 = vcvt.s32.f32 %v1625
      %v2138 = vcvt.s32.f32 %v1626
      %v2139 = vcvt.s32.f32 %v1627
      %v2140 = vcvt.s32.f32 %v1628
      %v2141 = vcvt.s32.f32 %v1629
      %v2142 = vcvt.s32.f32 %v1630
      %v2143 = vcvt.s32.f32 %v1631
      %v2144 = vcvt.s32.f32 %v1632
      %v2145 = vcvt.s32.f32 %v1633
      %v2146 = vcvt.s32.f32 %v1634
      %v2147 = vcvt.s32.f32 %v1635
      %v2148 = vcvt.s32.f32 %v1636
      %v2149 = vcvt.s32.f32 %v1637
      %v2150 = vcvt.s32.f32 %v1638
      %v2151 = vcvt.s32.f32 %v1639
      %v2152 = vcvt.s32.f32 %v1640
      %v2153 = vcvt.s32.f32 %v1641
      %v2154 = vcvt.s32.f32 %v1642
      %v2155 = vcvt.s32.f32 %v1643
      %v2156 = vcvt.s32.f32 %v1644
      %v2157 = vcvt.s32.f32 %v1645
      %v2158 = vcvt.s32.f32 %v1646
      %v2159 = vcvt.s32.f32 %v1647
      %v2160 = vcvt.s32.f32 %v1648
      %v2161 = vcvt.s32.f32 %v1649
      %v2162 = vcvt.s32.f32 %v1650
      %v2163 = vcvt.s32.f32 %v1651
      %v2164 = vcvt.s32.f32 %v1652
      %v2165 = vcvt.s32.f32 %v1653
      %v2166 = vcvt.s32.f32 %v1654
      %v2167 = vcvt.s32.f32 %v1655
      %v2168 = vcvt.s32.f32 %v1656
      %v2169 = vcvt.s32.f32 %v1657
      %v2170 = vcvt.s32.f32 %v1658
      %v2171 = vcvt.s32.f32 %v1659
      %v2172 = vcvt.s32.f32 %v1660
      %v2173 = vcvt.s32.f32 %v1661
      %v2174 = vcvt.s32.f32 %v1662
      %v2175 = vcvt.s32.f32 %v1663
      %v2176 = vcvt.s32.f32 %v1664
      %v2177 = vcvt.s32.f32 %v1665
      %v2178 = vcvt.s32.f32 %v1666
      %v2179 = vcvt.s32.f32 %v1667
      %v2180 = vcvt.s32.f32 %v1668
      %v2181 = vcvt.s32.f32 %v1669
      %v2182 = vcvt.s32.f32 %v1670
      %v2183 = vcvt.s32.f32 %v1671
      %v2184 = vcvt.s32.f32 %v1672
      %v2185 = vcvt.s32.f32 %v1673
      %v2186 = vcvt.s32.f32 %v1674
      %v2187 = vcvt.s32.f32 %v1675
      %v2188 = vcvt.s32.f32 %v1676
      %v2189 = vcvt.s32.f32 %v1677
      %v2190 = vcvt.s32.f32 %v1678
      %v2191 = vcvt.s32.f32 %v1679
      %v2192 = vcvt.s32.f32 %v1680
      %v2193 = vcvt.s32.f32 %v1681
      %v2194 = vcvt.s32.f32 %v1682
      %v2195 = vcvt.s32.f32 %v1683
      %v2196 = vcvt.s32.f32 %v1684
      %v2197 = vcvt.s32.f32 %v1685
      %v2198 = vcvt.s32.f32 %v1686
      %v2199 = vcvt.s32.f32 %v1687
      %v2200 = vld [vmem:[%s1] sm:$0xff]
      %v2201 = vld [vmem:[%s1 + $0x8] sm:$0xff]
      %v2202 = vld [vmem:[%s1 + $0x10] sm:$0xff]
      %v2203 = vld [vmem:[%s1 + $0x18] sm:$0xff]
      %v2204 = vld [vmem:[%s1 + $0x20] sm:$0xff]
      %v2205 = vld [vmem:[%s1 + $0x28] sm:$0xff]
      %v2206 = vld [vmem:[%s1 + $0x30] sm:$0xff]
      %v2207 = vld [vmem:[%s1 + $0x38] sm:$0xff]
      %v2208 = vld [vmem:[%s1 + $0x40] sm:$0xff]
      %v2209 = vld [vmem:[%s1 + $0x48] sm:$0xff]
      %v2210 = vld [vmem:[%s1 + $0x50] sm:$0xff]
      %v2211 = vld [vmem:[%s1 + $0x58] sm:$0xff]
      %v2212 = vld [vmem:[%s1 + $0x60] sm:$0xff]
      %v2213 = vld [vmem:[%s1 + $0x68] sm:$0xff]
      %v2214 = vld [vmem:[%s1 + $0x70] sm:$0xff]
      %v2215 = vld [vmem:[%s1 + $0x78] sm:$0xff]
      %v2216 = vld [vmem:[%s1 + $0x80] sm:$0xff]
      %v2217 = vld [vmem:[%s1 + $0x88] sm:$0xff]
      %v2218 = vld [vmem:[%s1 + $0x90] sm:$0xff]
      %v2219 = vld [vmem:[%s1 + $0x98] sm:$0xff]
      %v2220 = vld [vmem:[%s1 + $0xa0] sm:$0xff]
      %v2221 = vld [vmem:[%s1 + $0xa8] sm:$0xff]
      %v2222 = vld [vmem:[%s1 + $0xb0] sm:$0xff]
      %v2223 = vld [vmem:[%s1 + $0xb8] sm:$0xff]
      %v2224 = vld [vmem:[%s1 + $0xc0] sm:$0xff]
      %v2225 = vld [vmem:[%s1 + $0xc8] sm:$0xff]
      %v2226 = vld [vmem:[%s1 + $0xd0] sm:$0xff]
      %v2227 = vld [vmem:[%s1 + $0xd8] sm:$0xff]
      %v2228 = vld [vmem:[%s1 + $0xe0] sm:$0xff]
      %v2229 = vld [vmem:[%s1 + $0xe8] sm:$0xff]
      %v2230 = vld [vmem:[%s1 + $0xf0] sm:$0xff]
      %v2231 = vld [vmem:[%s1 + $0xf8] sm:$0xff]
      %v2232 = vld [vmem:[%s1 + $0x100] sm:$0xff]
      %v2233 = vld [vmem:[%s1 + $0x108] sm:$0xff]
      %v2234 = vld [vmem:[%s1 + $0x110] sm:$0xff]
      %v2235 = vld [vmem:[%s1 + $0x118] sm:$0xff]
      %v2236 = vld [vmem:[%s1 + $0x120] sm:$0xff]
      %v2237 = vld [vmem:[%s1 + $0x128] sm:$0xff]
      %v2238 = vld [vmem:[%s1 + $0x130] sm:$0xff]
      %v2239 = vld [vmem:[%s1 + $0x138] sm:$0xff]
      %v2240 = vld [vmem:[%s1 + $0x140] sm:$0xff]
      %v2241 = vld [vmem:[%s1 + $0x148] sm:$0xff]
      %v2242 = vld [vmem:[%s1 + $0x150] sm:$0xff]
      %v2243 = vld [vmem:[%s1 + $0x158] sm:$0xff]
      %v2244 = vld [vmem:[%s1 + $0x160] sm:$0xff]
      %v2245 = vld [vmem:[%s1 + $0x168] sm:$0xff]
      %v2246 = vld [vmem:[%s1 + $0x170] sm:$0xff]
      %v2247 = vld [vmem:[%s1 + $0x178] sm:$0xff]
      %v2248 = vld [vmem:[%s1 + $0x180] sm:$0xff]
      %v2249 = vld [vmem:[%s1 + $0x188] sm:$0xff]
      %v2250 = vld [vmem:[%s1 + $0x190] sm:$0xff]
      %v2251 = vld [vmem:[%s1 + $0x198] sm:$0xff]
      %v2252 = vld [vmem:[%s1 + $0x1a0] sm:$0xff]
      %v2253 = vld [vmem:[%s1 + $0x1a8] sm:$0xff]
      %v2254 = vld [vmem:[%s1 + $0x1b0] sm:$0xff]
      %v2255 = vld [vmem:[%s1 + $0x1b8] sm:$0xff]
      %v2256 = vld [vmem:[%s1 + $0x1c0] sm:$0xff]
      %v2257 = vld [vmem:[%s1 + $0x1c8] sm:$0xff]
      %v2258 = vld [vmem:[%s1 + $0x1d0] sm:$0xff]
      %v2259 = vld [vmem:[%s1 + $0x1d8] sm:$0xff]
      %v2260 = vld [vmem:[%s1 + $0x1e0] sm:$0xff]
      %v2261 = vld [vmem:[%s1 + $0x1e8] sm:$0xff]
      %v2262 = vld [vmem:[%s1 + $0x1f0] sm:$0xff]
      %v2263 = vld [vmem:[%s1 + $0x1f8] sm:$0xff]
      %2264 = vmatpush.msra.mxu0 %v2215
      %2265 = vmatpush.msra.mxu0 %v2214
      %2266 = vmatpush.msra.mxu0 %v2213
      %2267 = vmatpush.msra.mxu0 %v2212
      %2268 = vmatpush.msra.mxu0 %v2211
      %2269 = vmatpush.msra.mxu0 %v2210
      %2270 = vmatpush.msra.mxu0 %v2209
      %2271 = vmatpush.msra.mxu0 %v2208
      %2272 = vmatpush.msra.mxu0 %v2207
      %2273 = vmatpush.msra.mxu0 %v2206
      %2274 = vmatpush.msra.mxu0 %v2205
      %2275 = vmatpush.msra.mxu0 %v2204
      %2276 = vmatpush.msra.mxu0 %v2203
      %2277 = vmatpush.msra.mxu0 %v2202
      %2278 = vmatpush.msra.mxu0 %v2201
      %2279 = vmatpush.msra.mxu0 %v2200
      %2280 = vmatmul.f32.gmra.mxu0 %v1688
      %v2281 = vpop.f32.mrf.mxu0
      %v2282 = vadd.f32 0.0, %v2281
      %2283 = vmatmul.f32.gmra.mxu0 %v1692
      %v2284 = vpop.f32.mrf.mxu0
      %v2285 = vadd.f32 0.0, %v2284
      %2286 = vmatmul.f32.gmra.mxu0 %v1696
      %v2287 = vpop.f32.mrf.mxu0
      %v2288 = vadd.f32 0.0, %v2287
      %2289 = vmatmul.f32.gmra.mxu0 %v1700
      %v2290 = vpop.f32.mrf.mxu0
      %v2291 = vadd.f32 0.0, %v2290
      %2292 = vmatmul.f32.gmra.mxu0 %v1704
      %v2293 = vpop.f32.mrf.mxu0
      %v2294 = vadd.f32 0.0, %v2293
      %2295 = vmatmul.f32.gmra.mxu0 %v1708
      %v2296 = vpop.f32.mrf.mxu0
      %v2297 = vadd.f32 0.0, %v2296
      %2298 = vmatmul.f32.gmra.mxu0 %v1712
      %v2299 = vpop.f32.mrf.mxu0
      %v2300 = vadd.f32 0.0, %v2299
      %2301 = vmatmul.f32.gmra.mxu0 %v1716
      %v2302 = vpop.f32.mrf.mxu0
      %v2303 = vadd.f32 0.0, %v2302
      %2304 = vmatmul.f32.gmra.mxu0 %v1720
      %v2305 = vpop.f32.mrf.mxu0
      %v2306 = vadd.f32 0.0, %v2305
      %2307 = vmatmul.f32.gmra.mxu0 %v1724
      %v2308 = vpop.f32.mrf.mxu0
      %v2309 = vadd.f32 0.0, %v2308
      %2310 = vmatmul.f32.gmra.mxu0 %v1728
      %v2311 = vpop.f32.mrf.mxu0
      %v2312 = vadd.f32 0.0, %v2311
      %2313 = vmatmul.f32.gmra.mxu0 %v1732
      %v2314 = vpop.f32.mrf.mxu0
      %v2315 = vadd.f32 0.0, %v2314
      %2316 = vmatmul.f32.gmra.mxu0 %v1736
      %v2317 = vpop.f32.mrf.mxu0
      %v2318 = vadd.f32 0.0, %v2317
      %2319 = vmatmul.f32.gmra.mxu0 %v1740
      %v2320 = vpop.f32.mrf.mxu0
      %v2321 = vadd.f32 0.0, %v2320
      %2322 = vmatmul.f32.gmra.mxu0 %v1744
      %v2323 = vpop.f32.mrf.mxu0
      %v2324 = vadd.f32 0.0, %v2323
      %2325 = vmatmul.f32.gmra.mxu0 %v1748
      %v2326 = vpop.f32.mrf.mxu0
      %v2327 = vadd.f32 0.0, %v2326
      %2328 = vmatmul.f32.gmra.mxu0 %v1752
      %v2329 = vpop.f32.mrf.mxu0
      %v2330 = vadd.f32 0.0, %v2329
      %2331 = vmatmul.f32.gmra.mxu0 %v1756
      %v2332 = vpop.f32.mrf.mxu0
      %v2333 = vadd.f32 0.0, %v2332
      %2334 = vmatmul.f32.gmra.mxu0 %v1760
      %v2335 = vpop.f32.mrf.mxu0
      %v2336 = vadd.f32 0.0, %v2335
      %2337 = vmatmul.f32.gmra.mxu0 %v1764
      %v2338 = vpop.f32.mrf.mxu0
      %v2339 = vadd.f32 0.0, %v2338
      %2340 = vmatmul.f32.gmra.mxu0 %v1768
      %v2341 = vpop.f32.mrf.mxu0
      %v2342 = vadd.f32 0.0, %v2341
      %2343 = vmatmul.f32.gmra.mxu0 %v1772
      %v2344 = vpop.f32.mrf.mxu0
      %v2345 = vadd.f32 0.0, %v2344
      %2346 = vmatmul.f32.gmra.mxu0 %v1776
      %v2347 = vpop.f32.mrf.mxu0
      %v2348 = vadd.f32 0.0, %v2347
      %2349 = vmatmul.f32.gmra.mxu0 %v1780
      %v2350 = vpop.f32.mrf.mxu0
      %v2351 = vadd.f32 0.0, %v2350
      %2352 = vmatmul.f32.gmra.mxu0 %v1784
      %v2353 = vpop.f32.mrf.mxu0
      %v2354 = vadd.f32 0.0, %v2353
      %2355 = vmatmul.f32.gmra.mxu0 %v1788
      %v2356 = vpop.f32.mrf.mxu0
      %v2357 = vadd.f32 0.0, %v2356
      %2358 = vmatmul.f32.gmra.mxu0 %v1792
      %v2359 = vpop.f32.mrf.mxu0
      %v2360 = vadd.f32 0.0, %v2359
      %2361 = vmatmul.f32.gmra.mxu0 %v1796
      %v2362 = vpop.f32.mrf.mxu0
      %v2363 = vadd.f32 0.0, %v2362
      %2364 = vmatmul.f32.gmra.mxu0 %v1800
      %v2365 = vpop.f32.mrf.mxu0
      %v2366 = vadd.f32 0.0, %v2365
      %2367 = vmatmul.f32.gmra.mxu0 %v1804
      %v2368 = vpop.f32.mrf.mxu0
      %v2369 = vadd.f32 0.0, %v2368
      %2370 = vmatmul.f32.gmra.mxu0 %v1808
      %v2371 = vpop.f32.mrf.mxu0
      %v2372 = vadd.f32 0.0, %v2371
      %2373 = vmatmul.f32.gmra.mxu0 %v1812
      %v2374 = vpop.f32.mrf.mxu0
      %v2375 = vadd.f32 0.0, %v2374
      %2376 = vmatmul.f32.gmra.mxu0 %v1816
      %v2377 = vpop.f32.mrf.mxu0
      %v2378 = vadd.f32 0.0, %v2377
      %2379 = vmatmul.f32.gmra.mxu0 %v1820
      %v2380 = vpop.f32.mrf.mxu0
      %v2381 = vadd.f32 0.0, %v2380
      %2382 = vmatmul.f32.gmra.mxu0 %v1824
      %v2383 = vpop.f32.mrf.mxu0
      %v2384 = vadd.f32 0.0, %v2383
      %2385 = vmatmul.f32.gmra.mxu0 %v1828
      %v2386 = vpop.f32.mrf.mxu0
      %v2387 = vadd.f32 0.0, %v2386
      %2388 = vmatmul.f32.gmra.mxu0 %v1832
      %v2389 = vpop.f32.mrf.mxu0
      %v2390 = vadd.f32 0.0, %v2389
      %2391 = vmatmul.f32.gmra.mxu0 %v1836
      %v2392 = vpop.f32.mrf.mxu0
      %v2393 = vadd.f32 0.0, %v2392
      %2394 = vmatmul.f32.gmra.mxu0 %v1840
      %v2395 = vpop.f32.mrf.mxu0
      %v2396 = vadd.f32 0.0, %v2395
      %2397 = vmatmul.f32.gmra.mxu0 %v1844
      %v2398 = vpop.f32.mrf.mxu0
      %v2399 = vadd.f32 0.0, %v2398
      %2400 = vmatmul.f32.gmra.mxu0 %v1848
      %v2401 = vpop.f32.mrf.mxu0
      %v2402 = vadd.f32 0.0, %v2401
      %2403 = vmatmul.f32.gmra.mxu0 %v1852
      %v2404 = vpop.f32.mrf.mxu0
      %v2405 = vadd.f32 0.0, %v2404
      %2406 = vmatmul.f32.gmra.mxu0 %v1856
      %v2407 = vpop.f32.mrf.mxu0
      %v2408 = vadd.f32 0.0, %v2407
      %2409 = vmatmul.f32.gmra.mxu0 %v1860
      %v2410 = vpop.f32.mrf.mxu0
      %v2411 = vadd.f32 0.0, %v2410
      %2412 = vmatmul.f32.gmra.mxu0 %v1864
      %v2413 = vpop.f32.mrf.mxu0
      %v2414 = vadd.f32 0.0, %v2413
      %2415 = vmatmul.f32.gmra.mxu0 %v1868
      %v2416 = vpop.f32.mrf.mxu0
      %v2417 = vadd.f32 0.0, %v2416
      %2418 = vmatmul.f32.gmra.mxu0 %v1872
      %v2419 = vpop.f32.mrf.mxu0
      %v2420 = vadd.f32 0.0, %v2419
      %2421 = vmatmul.f32.gmra.mxu0 %v1876
      %v2422 = vpop.f32.mrf.mxu0
      %v2423 = vadd.f32 0.0, %v2422
      %2424 = vmatmul.f32.gmra.mxu0 %v1880
      %v2425 = vpop.f32.mrf.mxu0
      %v2426 = vadd.f32 0.0, %v2425
      %2427 = vmatmul.f32.gmra.mxu0 %v1884
      %v2428 = vpop.f32.mrf.mxu0
      %v2429 = vadd.f32 0.0, %v2428
      %2430 = vmatmul.f32.gmra.mxu0 %v1888
      %v2431 = vpop.f32.mrf.mxu0
      %v2432 = vadd.f32 0.0, %v2431
      %2433 = vmatmul.f32.gmra.mxu0 %v1892
      %v2434 = vpop.f32.mrf.mxu0
      %v2435 = vadd.f32 0.0, %v2434
      %2436 = vmatmul.f32.gmra.mxu0 %v1896
      %v2437 = vpop.f32.mrf.mxu0
      %v2438 = vadd.f32 0.0, %v2437
      %2439 = vmatmul.f32.gmra.mxu0 %v1900
      %v2440 = vpop.f32.mrf.mxu0
      %v2441 = vadd.f32 0.0, %v2440
      %2442 = vmatmul.f32.gmra.mxu0 %v1904
      %v2443 = vpop.f32.mrf.mxu0
      %v2444 = vadd.f32 0.0, %v2443
      %2445 = vmatmul.f32.gmra.mxu0 %v1908
      %v2446 = vpop.f32.mrf.mxu0
      %v2447 = vadd.f32 0.0, %v2446
      %2448 = vmatmul.f32.gmra.mxu0 %v1912
      %v2449 = vpop.f32.mrf.mxu0
      %v2450 = vadd.f32 0.0, %v2449
      %2451 = vmatmul.f32.gmra.mxu0 %v1916
      %v2452 = vpop.f32.mrf.mxu0
      %v2453 = vadd.f32 0.0, %v2452
      %2454 = vmatmul.f32.gmra.mxu0 %v1920
      %v2455 = vpop.f32.mrf.mxu0
      %v2456 = vadd.f32 0.0, %v2455
      %2457 = vmatmul.f32.gmra.mxu0 %v1924
      %v2458 = vpop.f32.mrf.mxu0
      %v2459 = vadd.f32 0.0, %v2458
      %2460 = vmatmul.f32.gmra.mxu0 %v1928
      %v2461 = vpop.f32.mrf.mxu0
      %v2462 = vadd.f32 0.0, %v2461
      %2463 = vmatmul.f32.gmra.mxu0 %v1932
      %v2464 = vpop.f32.mrf.mxu0
      %v2465 = vadd.f32 0.0, %v2464
      %2466 = vmatmul.f32.gmra.mxu0 %v1936
      %v2467 = vpop.f32.mrf.mxu0
      %v2468 = vadd.f32 0.0, %v2467
      %2469 = vmatmul.f32.gmra.mxu0 %v1940
      %v2470 = vpop.f32.mrf.mxu0
      %v2471 = vadd.f32 0.0, %v2470
      %2472 = vmatmul.f32.gmra.mxu0 %v1944
      %v2473 = vpop.f32.mrf.mxu0
      %v2474 = vadd.f32 0.0, %v2473
      %2475 = vmatmul.f32.gmra.mxu0 %v1948
      %v2476 = vpop.f32.mrf.mxu0
      %v2477 = vadd.f32 0.0, %v2476
      %2478 = vmatmul.f32.gmra.mxu0 %v1952
      %v2479 = vpop.f32.mrf.mxu0
      %v2480 = vadd.f32 0.0, %v2479
      %2481 = vmatmul.f32.gmra.mxu0 %v1956
      %v2482 = vpop.f32.mrf.mxu0
      %v2483 = vadd.f32 0.0, %v2482
      %2484 = vmatmul.f32.gmra.mxu0 %v1960
      %v2485 = vpop.f32.mrf.mxu0
      %v2486 = vadd.f32 0.0, %v2485
      %2487 = vmatmul.f32.gmra.mxu0 %v1964
      %v2488 = vpop.f32.mrf.mxu0
      %v2489 = vadd.f32 0.0, %v2488
      %2490 = vmatmul.f32.gmra.mxu0 %v1968
      %v2491 = vpop.f32.mrf.mxu0
      %v2492 = vadd.f32 0.0, %v2491
      %2493 = vmatmul.f32.gmra.mxu0 %v1972
      %v2494 = vpop.f32.mrf.mxu0
      %v2495 = vadd.f32 0.0, %v2494
      %2496 = vmatmul.f32.gmra.mxu0 %v1976
      %v2497 = vpop.f32.mrf.mxu0
      %v2498 = vadd.f32 0.0, %v2497
      %2499 = vmatmul.f32.gmra.mxu0 %v1980
      %v2500 = vpop.f32.mrf.mxu0
      %v2501 = vadd.f32 0.0, %v2500
      %2502 = vmatmul.f32.gmra.mxu0 %v1984
      %v2503 = vpop.f32.mrf.mxu0
      %v2504 = vadd.f32 0.0, %v2503
      %2505 = vmatmul.f32.gmra.mxu0 %v1988
      %v2506 = vpop.f32.mrf.mxu0
      %v2507 = vadd.f32 0.0, %v2506
      %2508 = vmatmul.f32.gmra.mxu0 %v1992
      %v2509 = vpop.f32.mrf.mxu0
      %v2510 = vadd.f32 0.0, %v2509
      %2511 = vmatmul.f32.gmra.mxu0 %v1996
      %v2512 = vpop.f32.mrf.mxu0
      %v2513 = vadd.f32 0.0, %v2512
      %2514 = vmatmul.f32.gmra.mxu0 %v2000
      %v2515 = vpop.f32.mrf.mxu0
      %v2516 = vadd.f32 0.0, %v2515
      %2517 = vmatmul.f32.gmra.mxu0 %v2004
      %v2518 = vpop.f32.mrf.mxu0
      %v2519 = vadd.f32 0.0, %v2518
      %2520 = vmatmul.f32.gmra.mxu0 %v2008
      %v2521 = vpop.f32.mrf.mxu0
      %v2522 = vadd.f32 0.0, %v2521
      %2523 = vmatmul.f32.gmra.mxu0 %v2012
      %v2524 = vpop.f32.mrf.mxu0
      %v2525 = vadd.f32 0.0, %v2524
      %2526 = vmatmul.f32.gmra.mxu0 %v2016
      %v2527 = vpop.f32.mrf.mxu0
      %v2528 = vadd.f32 0.0, %v2527
      %2529 = vmatmul.f32.gmra.mxu0 %v2020
      %v2530 = vpop.f32.mrf.mxu0
      %v2531 = vadd.f32 0.0, %v2530
      %2532 = vmatmul.f32.gmra.mxu0 %v2024
      %v2533 = vpop.f32.mrf.mxu0
      %v2534 = vadd.f32 0.0, %v2533
      %2535 = vmatmul.f32.gmra.mxu0 %v2028
      %v2536 = vpop.f32.mrf.mxu0
      %v2537 = vadd.f32 0.0, %v2536
      %2538 = vmatmul.f32.gmra.mxu0 %v2032
      %v2539 = vpop.f32.mrf.mxu0
      %v2540 = vadd.f32 0.0, %v2539
      %2541 = vmatmul.f32.gmra.mxu0 %v2036
      %v2542 = vpop.f32.mrf.mxu0
      %v2543 = vadd.f32 0.0, %v2542
      %2544 = vmatmul.f32.gmra.mxu0 %v2040
      %v2545 = vpop.f32.mrf.mxu0
      %v2546 = vadd.f32 0.0, %v2545
      %2547 = vmatmul.f32.gmra.mxu0 %v2044
      %v2548 = vpop.f32.mrf.mxu0
      %v2549 = vadd.f32 0.0, %v2548
      %2550 = vmatmul.f32.gmra.mxu0 %v2048
      %v2551 = vpop.f32.mrf.mxu0
      %v2552 = vadd.f32 0.0, %v2551
      %2553 = vmatmul.f32.gmra.mxu0 %v2052
      %v2554 = vpop.f32.mrf.mxu0
      %v2555 = vadd.f32 0.0, %v2554
      %2556 = vmatmul.f32.gmra.mxu0 %v2056
      %v2557 = vpop.f32.mrf.mxu0
      %v2558 = vadd.f32 0.0, %v2557
      %2559 = vmatmul.f32.gmra.mxu0 %v2060
      %v2560 = vpop.f32.mrf.mxu0
      %v2561 = vadd.f32 0.0, %v2560
      %2562 = vmatmul.f32.gmra.mxu0 %v2064
      %v2563 = vpop.f32.mrf.mxu0
      %v2564 = vadd.f32 0.0, %v2563
      %2565 = vmatmul.f32.gmra.mxu0 %v2068
      %v2566 = vpop.f32.mrf.mxu0
      %v2567 = vadd.f32 0.0, %v2566
      %2568 = vmatmul.f32.gmra.mxu0 %v2072
      %v2569 = vpop.f32.mrf.mxu0
      %v2570 = vadd.f32 0.0, %v2569
      %2571 = vmatmul.f32.gmra.mxu0 %v2076
      %v2572 = vpop.f32.mrf.mxu0
      %v2573 = vadd.f32 0.0, %v2572
      %2574 = vmatmul.f32.gmra.mxu0 %v2080
      %v2575 = vpop.f32.mrf.mxu0
      %v2576 = vadd.f32 0.0, %v2575
      %2577 = vmatmul.f32.gmra.mxu0 %v2084
      %v2578 = vpop.f32.mrf.mxu0
      %v2579 = vadd.f32 0.0, %v2578
      %2580 = vmatmul.f32.gmra.mxu0 %v2088
      %v2581 = vpop.f32.mrf.mxu0
      %v2582 = vadd.f32 0.0, %v2581
      %2583 = vmatmul.f32.gmra.mxu0 %v2092
      %v2584 = vpop.f32.mrf.mxu0
      %v2585 = vadd.f32 0.0, %v2584
      %2586 = vmatmul.f32.gmra.mxu0 %v2096
      %v2587 = vpop.f32.mrf.mxu0
      %v2588 = vadd.f32 0.0, %v2587
      %2589 = vmatmul.f32.gmra.mxu0 %v2100
      %v2590 = vpop.f32.mrf.mxu0
      %v2591 = vadd.f32 0.0, %v2590
      %2592 = vmatmul.f32.gmra.mxu0 %v2104
      %v2593 = vpop.f32.mrf.mxu0
      %v2594 = vadd.f32 0.0, %v2593
      %2595 = vmatmul.f32.gmra.mxu0 %v2108
      %v2596 = vpop.f32.mrf.mxu0
      %v2597 = vadd.f32 0.0, %v2596
      %2598 = vmatmul.f32.gmra.mxu0 %v2112
      %v2599 = vpop.f32.mrf.mxu0
      %v2600 = vadd.f32 0.0, %v2599
      %2601 = vmatmul.f32.gmra.mxu0 %v2116
      %v2602 = vpop.f32.mrf.mxu0
      %v2603 = vadd.f32 0.0, %v2602
      %2604 = vmatmul.f32.gmra.mxu0 %v2120
      %v2605 = vpop.f32.mrf.mxu0
      %v2606 = vadd.f32 0.0, %v2605
      %2607 = vmatmul.f32.gmra.mxu0 %v2124
      %v2608 = vpop.f32.mrf.mxu0
      %v2609 = vadd.f32 0.0, %v2608
      %2610 = vmatmul.f32.gmra.mxu0 %v2128
      %v2611 = vpop.f32.mrf.mxu0
      %v2612 = vadd.f32 0.0, %v2611
      %2613 = vmatmul.f32.gmra.mxu0 %v2132
      %v2614 = vpop.f32.mrf.mxu0
      %v2615 = vadd.f32 0.0, %v2614
      %2616 = vmatmul.f32.gmra.mxu0 %v2136
      %v2617 = vpop.f32.mrf.mxu0
      %v2618 = vadd.f32 0.0, %v2617
      %2619 = vmatmul.f32.gmra.mxu0 %v2140
      %v2620 = vpop.f32.mrf.mxu0
      %v2621 = vadd.f32 0.0, %v2620
      %2622 = vmatmul.f32.gmra.mxu0 %v2144
      %v2623 = vpop.f32.mrf.mxu0
      %v2624 = vadd.f32 0.0, %v2623
      %2625 = vmatmul.f32.gmra.mxu0 %v2148
      %v2626 = vpop.f32.mrf.mxu0
      %v2627 = vadd.f32 0.0, %v2626
      %2628 = vmatmul.f32.gmra.mxu0 %v2152
      %v2629 = vpop.f32.mrf.mxu0
      %v2630 = vadd.f32 0.0, %v2629
      %2631 = vmatmul.f32.gmra.mxu0 %v2156
      %v2632 = vpop.f32.mrf.mxu0
      %v2633 = vadd.f32 0.0, %v2632
      %2634 = vmatmul.f32.gmra.mxu0 %v2160
      %v2635 = vpop.f32.mrf.mxu0
      %v2636 = vadd.f32 0.0, %v2635
      %2637 = vmatmul.f32.gmra.mxu0 %v2164
      %v2638 = vpop.f32.mrf.mxu0
      %v2639 = vadd.f32 0.0, %v2638
      %2640 = vmatmul.f32.gmra.mxu0 %v2168
      %v2641 = vpop.f32.mrf.mxu0
      %v2642 = vadd.f32 0.0, %v2641
      %2643 = vmatmul.f32.gmra.mxu0 %v2172
      %v2644 = vpop.f32.mrf.mxu0
      %v2645 = vadd.f32 0.0, %v2644
      %2646 = vmatmul.f32.gmra.mxu0 %v2176
      %v2647 = vpop.f32.mrf.mxu0
      %v2648 = vadd.f32 0.0, %v2647
      %2649 = vmatmul.f32.gmra.mxu0 %v2180
      %v2650 = vpop.f32.mrf.mxu0
      %v2651 = vadd.f32 0.0, %v2650
      %2652 = vmatmul.f32.gmra.mxu0 %v2184
      %v2653 = vpop.f32.mrf.mxu0
      %v2654 = vadd.f32 0.0, %v2653
      %2655 = vmatmul.f32.gmra.mxu0 %v2188
      %v2656 = vpop.f32.mrf.mxu0
      %v2657 = vadd.f32 0.0, %v2656
      %2658 = vmatmul.f32.gmra.mxu0 %v2192
      %v2659 = vpop.f32.mrf.mxu0
      %v2660 = vadd.f32 0.0, %v2659
      %2661 = vmatmul.f32.gmra.mxu0 %v2196
      %v2662 = vpop.f32.mrf.mxu0
      %v2663 = vadd.f32 0.0, %v2662
      %2664 = vdwg.mxu0
      %2665 = vmatpush.msra.mxu0 %v2231
      %2666 = vmatpush.msra.mxu0 %v2230
      %2667 = vmatpush.msra.mxu0 %v2229
      %2668 = vmatpush.msra.mxu0 %v2228
      %2669 = vmatpush.msra.mxu0 %v2227
      %2670 = vmatpush.msra.mxu0 %v2226
      %2671 = vmatpush.msra.mxu0 %v2225
      %2672 = vmatpush.msra.mxu0 %v2224
      %2673 = vmatpush.msra.mxu0 %v2223
      %2674 = vmatpush.msra.mxu0 %v2222
      %2675 = vmatpush.msra.mxu0 %v2221
      %2676 = vmatpush.msra.mxu0 %v2220
      %2677 = vmatpush.msra.mxu0 %v2219
      %2678 = vmatpush.msra.mxu0 %v2218
      %2679 = vmatpush.msra.mxu0 %v2217
      %2680 = vmatpush.msra.mxu0 %v2216
      %2681 = vmatmul.f32.gmra.mxu0 %v1689
      %v2682 = vpop.f32.mrf.mxu0
      %v2683 = vadd.f32 %v2282, %v2682
      %2684 = vmatmul.f32.gmra.mxu0 %v1693
      %v2685 = vpop.f32.mrf.mxu0
      %v2686 = vadd.f32 %v2285, %v2685
      %2687 = vmatmul.f32.gmra.mxu0 %v1697
      %v2688 = vpop.f32.mrf.mxu0
      %v2689 = vadd.f32 %v2288, %v2688
      %2690 = vmatmul.f32.gmra.mxu0 %v1701
      %v2691 = vpop.f32.mrf.mxu0
      %v2692 = vadd.f32 %v2291, %v2691
      %2693 = vmatmul.f32.gmra.mxu0 %v1705
      %v2694 = vpop.f32.mrf.mxu0
      %v2695 = vadd.f32 %v2294, %v2694
      %2696 = vmatmul.f32.gmra.mxu0 %v1709
      %v2697 = vpop.f32.mrf.mxu0
      %v2698 = vadd.f32 %v2297, %v2697
      %2699 = vmatmul.f32.gmra.mxu0 %v1713
      %v2700 = vpop.f32.mrf.mxu0
      %v2701 = vadd.f32 %v2300, %v2700
      %2702 = vmatmul.f32.gmra.mxu0 %v1717
      %v2703 = vpop.f32.mrf.mxu0
      %v2704 = vadd.f32 %v2303, %v2703
      %2705 = vmatmul.f32.gmra.mxu0 %v1721
      %v2706 = vpop.f32.mrf.mxu0
      %v2707 = vadd.f32 %v2306, %v2706
      %2708 = vmatmul.f32.gmra.mxu0 %v1725
      %v2709 = vpop.f32.mrf.mxu0
      %v2710 = vadd.f32 %v2309, %v2709
      %2711 = vmatmul.f32.gmra.mxu0 %v1729
      %v2712 = vpop.f32.mrf.mxu0
      %v2713 = vadd.f32 %v2312, %v2712
      %2714 = vmatmul.f32.gmra.mxu0 %v1733
      %v2715 = vpop.f32.mrf.mxu0
      %v2716 = vadd.f32 %v2315, %v2715
      %2717 = vmatmul.f32.gmra.mxu0 %v1737
      %v2718 = vpop.f32.mrf.mxu0
      %v2719 = vadd.f32 %v2318, %v2718
      %2720 = vmatmul.f32.gmra.mxu0 %v1741
      %v2721 = vpop.f32.mrf.mxu0
      %v2722 = vadd.f32 %v2321, %v2721
      %2723 = vmatmul.f32.gmra.mxu0 %v1745
      %v2724 = vpop.f32.mrf.mxu0
      %v2725 = vadd.f32 %v2324, %v2724
      %2726 = vmatmul.f32.gmra.mxu0 %v1749
      %v2727 = vpop.f32.mrf.mxu0
      %v2728 = vadd.f32 %v2327, %v2727
      %2729 = vmatmul.f32.gmra.mxu0 %v1753
      %v2730 = vpop.f32.mrf.mxu0
      %v2731 = vadd.f32 %v2330, %v2730
      %2732 = vmatmul.f32.gmra.mxu0 %v1757
      %v2733 = vpop.f32.mrf.mxu0
      %v2734 = vadd.f32 %v2333, %v2733
      %2735 = vmatmul.f32.gmra.mxu0 %v1761
      %v2736 = vpop.f32.mrf.mxu0
      %v2737 = vadd.f32 %v2336, %v2736
      %2738 = vmatmul.f32.gmra.mxu0 %v1765
      %v2739 = vpop.f32.mrf.mxu0
      %v2740 = vadd.f32 %v2339, %v2739
      %2741 = vmatmul.f32.gmra.mxu0 %v1769
      %v2742 = vpop.f32.mrf.mxu0
      %v2743 = vadd.f32 %v2342, %v2742
      %2744 = vmatmul.f32.gmra.mxu0 %v1773
      %v2745 = vpop.f32.mrf.mxu0
      %v2746 = vadd.f32 %v2345, %v2745
      %2747 = vmatmul.f32.gmra.mxu0 %v1777
      %v2748 = vpop.f32.mrf.mxu0
      %v2749 = vadd.f32 %v2348, %v2748
      %2750 = vmatmul.f32.gmra.mxu0 %v1781
      %v2751 = vpop.f32.mrf.mxu0
      %v2752 = vadd.f32 %v2351, %v2751
      %2753 = vmatmul.f32.gmra.mxu0 %v1785
      %v2754 = vpop.f32.mrf.mxu0
      %v2755 = vadd.f32 %v2354, %v2754
      %2756 = vmatmul.f32.gmra.mxu0 %v1789
      %v2757 = vpop.f32.mrf.mxu0
      %v2758 = vadd.f32 %v2357, %v2757
      %2759 = vmatmul.f32.gmra.mxu0 %v1793
      %v2760 = vpop.f32.mrf.mxu0
      %v2761 = vadd.f32 %v2360, %v2760
      %2762 = vmatmul.f32.gmra.mxu0 %v1797
      %v2763 = vpop.f32.mrf.mxu0
      %v2764 = vadd.f32 %v2363, %v2763
      %2765 = vmatmul.f32.gmra.mxu0 %v1801
      %v2766 = vpop.f32.mrf.mxu0
      %v2767 = vadd.f32 %v2366, %v2766
      %2768 = vmatmul.f32.gmra.mxu0 %v1805
      %v2769 = vpop.f32.mrf.mxu0
      %v2770 = vadd.f32 %v2369, %v2769
      %2771 = vmatmul.f32.gmra.mxu0 %v1809
      %v2772 = vpop.f32.mrf.mxu0
      %v2773 = vadd.f32 %v2372, %v2772
      %2774 = vmatmul.f32.gmra.mxu0 %v1813
      %v2775 = vpop.f32.mrf.mxu0
      %v2776 = vadd.f32 %v2375, %v2775
      %2777 = vmatmul.f32.gmra.mxu0 %v1817
      %v2778 = vpop.f32.mrf.mxu0
      %v2779 = vadd.f32 %v2378, %v2778
      %2780 = vmatmul.f32.gmra.mxu0 %v1821
      %v2781 = vpop.f32.mrf.mxu0
      %v2782 = vadd.f32 %v2381, %v2781
      %2783 = vmatmul.f32.gmra.mxu0 %v1825
      %v2784 = vpop.f32.mrf.mxu0
      %v2785 = vadd.f32 %v2384, %v2784
      %2786 = vmatmul.f32.gmra.mxu0 %v1829
      %v2787 = vpop.f32.mrf.mxu0
      %v2788 = vadd.f32 %v2387, %v2787
      %2789 = vmatmul.f32.gmra.mxu0 %v1833
      %v2790 = vpop.f32.mrf.mxu0
      %v2791 = vadd.f32 %v2390, %v2790
      %2792 = vmatmul.f32.gmra.mxu0 %v1837
      %v2793 = vpop.f32.mrf.mxu0
      %v2794 = vadd.f32 %v2393, %v2793
      %2795 = vmatmul.f32.gmra.mxu0 %v1841
      %v2796 = vpop.f32.mrf.mxu0
      %v2797 = vadd.f32 %v2396, %v2796
      %2798 = vmatmul.f32.gmra.mxu0 %v1845
      %v2799 = vpop.f32.mrf.mxu0
      %v2800 = vadd.f32 %v2399, %v2799
      %2801 = vmatmul.f32.gmra.mxu0 %v1849
      %v2802 = vpop.f32.mrf.mxu0
      %v2803 = vadd.f32 %v2402, %v2802
      %2804 = vmatmul.f32.gmra.mxu0 %v1853
      %v2805 = vpop.f32.mrf.mxu0
      %v2806 = vadd.f32 %v2405, %v2805
      %2807 = vmatmul.f32.gmra.mxu0 %v1857
      %v2808 = vpop.f32.mrf.mxu0
      %v2809 = vadd.f32 %v2408, %v2808
      %2810 = vmatmul.f32.gmra.mxu0 %v1861
      %v2811 = vpop.f32.mrf.mxu0
      %v2812 = vadd.f32 %v2411, %v2811
      %2813 = vmatmul.f32.gmra.mxu0 %v1865
      %v2814 = vpop.f32.mrf.mxu0
      %v2815 = vadd.f32 %v2414, %v2814
      %2816 = vmatmul.f32.gmra.mxu0 %v1869
      %v2817 = vpop.f32.mrf.mxu0
      %v2818 = vadd.f32 %v2417, %v2817
      %2819 = vmatmul.f32.gmra.mxu0 %v1873
      %v2820 = vpop.f32.mrf.mxu0
      %v2821 = vadd.f32 %v2420, %v2820
      %2822 = vmatmul.f32.gmra.mxu0 %v1877
      %v2823 = vpop.f32.mrf.mxu0
      %v2824 = vadd.f32 %v2423, %v2823
      %2825 = vmatmul.f32.gmra.mxu0 %v1881
      %v2826 = vpop.f32.mrf.mxu0
      %v2827 = vadd.f32 %v2426, %v2826
      %2828 = vmatmul.f32.gmra.mxu0 %v1885
      %v2829 = vpop.f32.mrf.mxu0
      %v2830 = vadd.f32 %v2429, %v2829
      %2831 = vmatmul.f32.gmra.mxu0 %v1889
      %v2832 = vpop.f32.mrf.mxu0
      %v2833 = vadd.f32 %v2432, %v2832
      %2834 = vmatmul.f32.gmra.mxu0 %v1893
      %v2835 = vpop.f32.mrf.mxu0
      %v2836 = vadd.f32 %v2435, %v2835
      %2837 = vmatmul.f32.gmra.mxu0 %v1897
      %v2838 = vpop.f32.mrf.mxu0
      %v2839 = vadd.f32 %v2438, %v2838
      %2840 = vmatmul.f32.gmra.mxu0 %v1901
      %v2841 = vpop.f32.mrf.mxu0
      %v2842 = vadd.f32 %v2441, %v2841
      %2843 = vmatmul.f32.gmra.mxu0 %v1905
      %v2844 = vpop.f32.mrf.mxu0
      %v2845 = vadd.f32 %v2444, %v2844
      %2846 = vmatmul.f32.gmra.mxu0 %v1909
      %v2847 = vpop.f32.mrf.mxu0
      %v2848 = vadd.f32 %v2447, %v2847
      %2849 = vmatmul.f32.gmra.mxu0 %v1913
      %v2850 = vpop.f32.mrf.mxu0
      %v2851 = vadd.f32 %v2450, %v2850
      %2852 = vmatmul.f32.gmra.mxu0 %v1917
      %v2853 = vpop.f32.mrf.mxu0
      %v2854 = vadd.f32 %v2453, %v2853
      %2855 = vmatmul.f32.gmra.mxu0 %v1921
      %v2856 = vpop.f32.mrf.mxu0
      %v2857 = vadd.f32 %v2456, %v2856
      %2858 = vmatmul.f32.gmra.mxu0 %v1925
      %v2859 = vpop.f32.mrf.mxu0
      %v2860 = vadd.f32 %v2459, %v2859
      %2861 = vmatmul.f32.gmra.mxu0 %v1929
      %v2862 = vpop.f32.mrf.mxu0
      %v2863 = vadd.f32 %v2462, %v2862
      %2864 = vmatmul.f32.gmra.mxu0 %v1933
      %v2865 = vpop.f32.mrf.mxu0
      %v2866 = vadd.f32 %v2465, %v2865
      %2867 = vmatmul.f32.gmra.mxu0 %v1937
      %v2868 = vpop.f32.mrf.mxu0
      %v2869 = vadd.f32 %v2468, %v2868
      %2870 = vmatmul.f32.gmra.mxu0 %v1941
      %v2871 = vpop.f32.mrf.mxu0
      %v2872 = vadd.f32 %v2471, %v2871
      %2873 = vmatmul.f32.gmra.mxu0 %v1945
      %v2874 = vpop.f32.mrf.mxu0
      %v2875 = vadd.f32 %v2474, %v2874
      %2876 = vmatmul.f32.gmra.mxu0 %v1949
      %v2877 = vpop.f32.mrf.mxu0
      %v2878 = vadd.f32 %v2477, %v2877
      %2879 = vmatmul.f32.gmra.mxu0 %v1953
      %v2880 = vpop.f32.mrf.mxu0
      %v2881 = vadd.f32 %v2480, %v2880
      %2882 = vmatmul.f32.gmra.mxu0 %v1957
      %v2883 = vpop.f32.mrf.mxu0
      %v2884 = vadd.f32 %v2483, %v2883
      %2885 = vmatmul.f32.gmra.mxu0 %v1961
      %v2886 = vpop.f32.mrf.mxu0
      %v2887 = vadd.f32 %v2486, %v2886
      %2888 = vmatmul.f32.gmra.mxu0 %v1965
      %v2889 = vpop.f32.mrf.mxu0
      %v2890 = vadd.f32 %v2489, %v2889
      %2891 = vmatmul.f32.gmra.mxu0 %v1969
      %v2892 = vpop.f32.mrf.mxu0
      %v2893 = vadd.f32 %v2492, %v2892
      %2894 = vmatmul.f32.gmra.mxu0 %v1973
      %v2895 = vpop.f32.mrf.mxu0
      %v2896 = vadd.f32 %v2495, %v2895
      %2897 = vmatmul.f32.gmra.mxu0 %v1977
      %v2898 = vpop.f32.mrf.mxu0
      %v2899 = vadd.f32 %v2498, %v2898
      %2900 = vmatmul.f32.gmra.mxu0 %v1981
      %v2901 = vpop.f32.mrf.mxu0
      %v2902 = vadd.f32 %v2501, %v2901
      %2903 = vmatmul.f32.gmra.mxu0 %v1985
      %v2904 = vpop.f32.mrf.mxu0
      %v2905 = vadd.f32 %v2504, %v2904
      %2906 = vmatmul.f32.gmra.mxu0 %v1989
      %v2907 = vpop.f32.mrf.mxu0
      %v2908 = vadd.f32 %v2507, %v2907
      %2909 = vmatmul.f32.gmra.mxu0 %v1993
      %v2910 = vpop.f32.mrf.mxu0
      %v2911 = vadd.f32 %v2510, %v2910
      %2912 = vmatmul.f32.gmra.mxu0 %v1997
      %v2913 = vpop.f32.mrf.mxu0
      %v2914 = vadd.f32 %v2513, %v2913
      %2915 = vmatmul.f32.gmra.mxu0 %v2001
      %v2916 = vpop.f32.mrf.mxu0
      %v2917 = vadd.f32 %v2516, %v2916
      %2918 = vmatmul.f32.gmra.mxu0 %v2005
      %v2919 = vpop.f32.mrf.mxu0
      %v2920 = vadd.f32 %v2519, %v2919
      %2921 = vmatmul.f32.gmra.mxu0 %v2009
      %v2922 = vpop.f32.mrf.mxu0
      %v2923 = vadd.f32 %v2522, %v2922
      %2924 = vmatmul.f32.gmra.mxu0 %v2013
      %v2925 = vpop.f32.mrf.mxu0
      %v2926 = vadd.f32 %v2525, %v2925
      %2927 = vmatmul.f32.gmra.mxu0 %v2017
      %v2928 = vpop.f32.mrf.mxu0
      %v2929 = vadd.f32 %v2528, %v2928
      %2930 = vmatmul.f32.gmra.mxu0 %v2021
      %v2931 = vpop.f32.mrf.mxu0
      %v2932 = vadd.f32 %v2531, %v2931
      %2933 = vmatmul.f32.gmra.mxu0 %v2025
      %v2934 = vpop.f32.mrf.mxu0
      %v2935 = vadd.f32 %v2534, %v2934
      %2936 = vmatmul.f32.gmra.mxu0 %v2029
      %v2937 = vpop.f32.mrf.mxu0
      %v2938 = vadd.f32 %v2537, %v2937
      %2939 = vmatmul.f32.gmra.mxu0 %v2033
      %v2940 = vpop.f32.mrf.mxu0
      %v2941 = vadd.f32 %v2540, %v2940
      %2942 = vmatmul.f32.gmra.mxu0 %v2037
      %v2943 = vpop.f32.mrf.mxu0
      %v2944 = vadd.f32 %v2543, %v2943
      %2945 = vmatmul.f32.gmra.mxu0 %v2041
      %v2946 = vpop.f32.mrf.mxu0
      %v2947 = vadd.f32 %v2546, %v2946
      %2948 = vmatmul.f32.gmra.mxu0 %v2045
      %v2949 = vpop.f32.mrf.mxu0
      %v2950 = vadd.f32 %v2549, %v2949
      %2951 = vmatmul.f32.gmra.mxu0 %v2049
      %v2952 = vpop.f32.mrf.mxu0
      %v2953 = vadd.f32 %v2552, %v2952
      %2954 = vmatmul.f32.gmra.mxu0 %v2053
      %v2955 = vpop.f32.mrf.mxu0
      %v2956 = vadd.f32 %v2555, %v2955
      %2957 = vmatmul.f32.gmra.mxu0 %v2057
      %v2958 = vpop.f32.mrf.mxu0
      %v2959 = vadd.f32 %v2558, %v2958
      %2960 = vmatmul.f32.gmra.mxu0 %v2061
      %v2961 = vpop.f32.mrf.mxu0
      %v2962 = vadd.f32 %v2561, %v2961
      %2963 = vmatmul.f32.gmra.mxu0 %v2065
      %v2964 = vpop.f32.mrf.mxu0
      %v2965 = vadd.f32 %v2564, %v2964
      %2966 = vmatmul.f32.gmra.mxu0 %v2069
      %v2967 = vpop.f32.mrf.mxu0
      %v2968 = vadd.f32 %v2567, %v2967
      %2969 = vmatmul.f32.gmra.mxu0 %v2073
      %v2970 = vpop.f32.mrf.mxu0
      %v2971 = vadd.f32 %v2570, %v2970
      %2972 = vmatmul.f32.gmra.mxu0 %v2077
      %v2973 = vpop.f32.mrf.mxu0
      %v2974 = vadd.f32 %v2573, %v2973
      %2975 = vmatmul.f32.gmra.mxu0 %v2081
      %v2976 = vpop.f32.mrf.mxu0
      %v2977 = vadd.f32 %v2576, %v2976
      %2978 = vmatmul.f32.gmra.mxu0 %v2085
      %v2979 = vpop.f32.mrf.mxu0
      %v2980 = vadd.f32 %v2579, %v2979
      %2981 = vmatmul.f32.gmra.mxu0 %v2089
      %v2982 = vpop.f32.mrf.mxu0
      %v2983 = vadd.f32 %v2582, %v2982
      %2984 = vmatmul.f32.gmra.mxu0 %v2093
      %v2985 = vpop.f32.mrf.mxu0
      %v2986 = vadd.f32 %v2585, %v2985
      %2987 = vmatmul.f32.gmra.mxu0 %v2097
      %v2988 = vpop.f32.mrf.mxu0
      %v2989 = vadd.f32 %v2588, %v2988
      %2990 = vmatmul.f32.gmra.mxu0 %v2101
      %v2991 = vpop.f32.mrf.mxu0
      %v2992 = vadd.f32 %v2591, %v2991
      %2993 = vmatmul.f32.gmra.mxu0 %v2105
      %v2994 = vpop.f32.mrf.mxu0
      %v2995 = vadd.f32 %v2594, %v2994
      %2996 = vmatmul.f32.gmra.mxu0 %v2109
      %v2997 = vpop.f32.mrf.mxu0
      %v2998 = vadd.f32 %v2597, %v2997
      %2999 = vmatmul.f32.gmra.mxu0 %v2113
      %v3000 = vpop.f32.mrf.mxu0
      %v3001 = vadd.f32 %v2600, %v3000
      %3002 = vmatmul.f32.gmra.mxu0 %v2117
      %v3003 = vpop.f32.mrf.mxu0
      %v3004 = vadd.f32 %v2603, %v3003
      %3005 = vmatmul.f32.gmra.mxu0 %v2121
      %v3006 = vpop.f32.mrf.mxu0
      %v3007 = vadd.f32 %v2606, %v3006
      %3008 = vmatmul.f32.gmra.mxu0 %v2125
      %v3009 = vpop.f32.mrf.mxu0
      %v3010 = vadd.f32 %v2609, %v3009
      %3011 = vmatmul.f32.gmra.mxu0 %v2129
      %v3012 = vpop.f32.mrf.mxu0
      %v3013 = vadd.f32 %v2612, %v3012
      %3014 = vmatmul.f32.gmra.mxu0 %v2133
      %v3015 = vpop.f32.mrf.mxu0
      %v3016 = vadd.f32 %v2615, %v3015
      %3017 = vmatmul.f32.gmra.mxu0 %v2137
      %v3018 = vpop.f32.mrf.mxu0
      %v3019 = vadd.f32 %v2618, %v3018
      %3020 = vmatmul.f32.gmra.mxu0 %v2141
      %v3021 = vpop.f32.mrf.mxu0
      %v3022 = vadd.f32 %v2621, %v3021
      %3023 = vmatmul.f32.gmra.mxu0 %v2145
      %v3024 = vpop.f32.mrf.mxu0
      %v3025 = vadd.f32 %v2624, %v3024
      %3026 = vmatmul.f32.gmra.mxu0 %v2149
      %v3027 = vpop.f32.mrf.mxu0
      %v3028 = vadd.f32 %v2627, %v3027
      %3029 = vmatmul.f32.gmra.mxu0 %v2153
      %v3030 = vpop.f32.mrf.mxu0
      %v3031 = vadd.f32 %v2630, %v3030
      %3032 = vmatmul.f32.gmra.mxu0 %v2157
      %v3033 = vpop.f32.mrf.mxu0
      %v3034 = vadd.f32 %v2633, %v3033
      %3035 = vmatmul.f32.gmra.mxu0 %v2161
      %v3036 = vpop.f32.mrf.mxu0
      %v3037 = vadd.f32 %v2636, %v3036
      %3038 = vmatmul.f32.gmra.mxu0 %v2165
      %v3039 = vpop.f32.mrf.mxu0
      %v3040 = vadd.f32 %v2639, %v3039
      %3041 = vmatmul.f32.gmra.mxu0 %v2169
      %v3042 = vpop.f32.mrf.mxu0
      %v3043 = vadd.f32 %v2642, %v3042
      %3044 = vmatmul.f32.gmra.mxu0 %v2173
      %v3045 = vpop.f32.mrf.mxu0
      %v3046 = vadd.f32 %v2645, %v3045
      %3047 = vmatmul.f32.gmra.mxu0 %v2177
      %v3048 = vpop.f32.mrf.mxu0
      %v3049 = vadd.f32 %v2648, %v3048
      %3050 = vmatmul.f32.gmra.mxu0 %v2181
      %v3051 = vpop.f32.mrf.mxu0
      %v3052 = vadd.f32 %v2651, %v3051
      %3053 = vmatmul.f32.gmra.mxu0 %v2185
      %v3054 = vpop.f32.mrf.mxu0
      %v3055 = vadd.f32 %v2654, %v3054
      %3056 = vmatmul.f32.gmra.mxu0 %v2189
      %v3057 = vpop.f32.mrf.mxu0
      %v3058 = vadd.f32 %v2657, %v3057
      %3059 = vmatmul.f32.gmra.mxu0 %v2193
      %v3060 = vpop.f32.mrf.mxu0
      %v3061 = vadd.f32 %v2660, %v3060
      %3062 = vmatmul.f32.gmra.mxu0 %v2197
      %v3063 = vpop.f32.mrf.mxu0
      %v3064 = vadd.f32 %v2663, %v3063
      %3065 = vdwg.mxu0
      %3066 = vmatpush.msra.mxu0 %v2247
      %3067 = vmatpush.msra.mxu0 %v2246
      %3068 = vmatpush.msra.mxu0 %v2245
      %3069 = vmatpush.msra.mxu0 %v2244
      %3070 = vmatpush.msra.mxu0 %v2243
      %3071 = vmatpush.msra.mxu0 %v2242
      %3072 = vmatpush.msra.mxu0 %v2241
      %3073 = vmatpush.msra.mxu0 %v2240
      %3074 = vmatpush.msra.mxu0 %v2239
      %3075 = vmatpush.msra.mxu0 %v2238
      %3076 = vmatpush.msra.mxu0 %v2237
      %3077 = vmatpush.msra.mxu0 %v2236
      %3078 = vmatpush.msra.mxu0 %v2235
      %3079 = vmatpush.msra.mxu0 %v2234
      %3080 = vmatpush.msra.mxu0 %v2233
      %3081 = vmatpush.msra.mxu0 %v2232
      %3082 = vmatmul.f32.gmra.mxu0 %v1690
      %v3083 = vpop.f32.mrf.mxu0
      %v3084 = vadd.f32 %v2683, %v3083
      %3085 = vmatmul.f32.gmra.mxu0 %v1694
      %v3086 = vpop.f32.mrf.mxu0
      %v3087 = vadd.f32 %v2686, %v3086
      %3088 = vmatmul.f32.gmra.mxu0 %v1698
      %v3089 = vpop.f32.mrf.mxu0
      %v3090 = vadd.f32 %v2689, %v3089
      %3091 = vmatmul.f32.gmra.mxu0 %v1702
      %v3092 = vpop.f32.mrf.mxu0
      %v3093 = vadd.f32 %v2692, %v3092
      %3094 = vmatmul.f32.gmra.mxu0 %v1706
      %v3095 = vpop.f32.mrf.mxu0
      %v3096 = vadd.f32 %v2695, %v3095
      %3097 = vmatmul.f32.gmra.mxu0 %v1710
      %v3098 = vpop.f32.mrf.mxu0
      %v3099 = vadd.f32 %v2698, %v3098
      %3100 = vmatmul.f32.gmra.mxu0 %v1714
      %v3101 = vpop.f32.mrf.mxu0
      %v3102 = vadd.f32 %v2701, %v3101
      %3103 = vmatmul.f32.gmra.mxu0 %v1718
      %v3104 = vpop.f32.mrf.mxu0
      %v3105 = vadd.f32 %v2704, %v3104
      %3106 = vmatmul.f32.gmra.mxu0 %v1722
      %v3107 = vpop.f32.mrf.mxu0
      %v3108 = vadd.f32 %v2707, %v3107
      %3109 = vmatmul.f32.gmra.mxu0 %v1726
      %v3110 = vpop.f32.mrf.mxu0
      %v3111 = vadd.f32 %v2710, %v3110
      %3112 = vmatmul.f32.gmra.mxu0 %v1730
      %v3113 = vpop.f32.mrf.mxu0
      %v3114 = vadd.f32 %v2713, %v3113
      %3115 = vmatmul.f32.gmra.mxu0 %v1734
      %v3116 = vpop.f32.mrf.mxu0
      %v3117 = vadd.f32 %v2716, %v3116
      %3118 = vmatmul.f32.gmra.mxu0 %v1738
      %v3119 = vpop.f32.mrf.mxu0
      %v3120 = vadd.f32 %v2719, %v3119
      %3121 = vmatmul.f32.gmra.mxu0 %v1742
      %v3122 = vpop.f32.mrf.mxu0
      %v3123 = vadd.f32 %v2722, %v3122
      %3124 = vmatmul.f32.gmra.mxu0 %v1746
      %v3125 = vpop.f32.mrf.mxu0
      %v3126 = vadd.f32 %v2725, %v3125
      %3127 = vmatmul.f32.gmra.mxu0 %v1750
      %v3128 = vpop.f32.mrf.mxu0
      %v3129 = vadd.f32 %v2728, %v3128
      %3130 = vmatmul.f32.gmra.mxu0 %v1754
      %v3131 = vpop.f32.mrf.mxu0
      %v3132 = vadd.f32 %v2731, %v3131
      %3133 = vmatmul.f32.gmra.mxu0 %v1758
      %v3134 = vpop.f32.mrf.mxu0
      %v3135 = vadd.f32 %v2734, %v3134
      %3136 = vmatmul.f32.gmra.mxu0 %v1762
      %v3137 = vpop.f32.mrf.mxu0
      %v3138 = vadd.f32 %v2737, %v3137
      %3139 = vmatmul.f32.gmra.mxu0 %v1766
      %v3140 = vpop.f32.mrf.mxu0
      %v3141 = vadd.f32 %v2740, %v3140
      %3142 = vmatmul.f32.gmra.mxu0 %v1770
      %v3143 = vpop.f32.mrf.mxu0
      %v3144 = vadd.f32 %v2743, %v3143
      %3145 = vmatmul.f32.gmra.mxu0 %v1774
      %v3146 = vpop.f32.mrf.mxu0
      %v3147 = vadd.f32 %v2746, %v3146
      %3148 = vmatmul.f32.gmra.mxu0 %v1778
      %v3149 = vpop.f32.mrf.mxu0
      %v3150 = vadd.f32 %v2749, %v3149
      %3151 = vmatmul.f32.gmra.mxu0 %v1782
      %v3152 = vpop.f32.mrf.mxu0
      %v3153 = vadd.f32 %v2752, %v3152
      %3154 = vmatmul.f32.gmra.mxu0 %v1786
      %v3155 = vpop.f32.mrf.mxu0
      %v3156 = vadd.f32 %v2755, %v3155
      %3157 = vmatmul.f32.gmra.mxu0 %v1790
      %v3158 = vpop.f32.mrf.mxu0
      %v3159 = vadd.f32 %v2758, %v3158
      %3160 = vmatmul.f32.gmra.mxu0 %v1794
      %v3161 = vpop.f32.mrf.mxu0
      %v3162 = vadd.f32 %v2761, %v3161
      %3163 = vmatmul.f32.gmra.mxu0 %v1798
      %v3164 = vpop.f32.mrf.mxu0
      %v3165 = vadd.f32 %v2764, %v3164
      %3166 = vmatmul.f32.gmra.mxu0 %v1802
      %v3167 = vpop.f32.mrf.mxu0
      %v3168 = vadd.f32 %v2767, %v3167
      %3169 = vmatmul.f32.gmra.mxu0 %v1806
      %v3170 = vpop.f32.mrf.mxu0
      %v3171 = vadd.f32 %v2770, %v3170
      %3172 = vmatmul.f32.gmra.mxu0 %v1810
      %v3173 = vpop.f32.mrf.mxu0
      %v3174 = vadd.f32 %v2773, %v3173
      %3175 = vmatmul.f32.gmra.mxu0 %v1814
      %v3176 = vpop.f32.mrf.mxu0
      %v3177 = vadd.f32 %v2776, %v3176
      %3178 = vmatmul.f32.gmra.mxu0 %v1818
      %v3179 = vpop.f32.mrf.mxu0
      %v3180 = vadd.f32 %v2779, %v3179
      %3181 = vmatmul.f32.gmra.mxu0 %v1822
      %v3182 = vpop.f32.mrf.mxu0
      %v3183 = vadd.f32 %v2782, %v3182
      %3184 = vmatmul.f32.gmra.mxu0 %v1826
      %v3185 = vpop.f32.mrf.mxu0
      %v3186 = vadd.f32 %v2785, %v3185
      %3187 = vmatmul.f32.gmra.mxu0 %v1830
      %v3188 = vpop.f32.mrf.mxu0
      %v3189 = vadd.f32 %v2788, %v3188
      %3190 = vmatmul.f32.gmra.mxu0 %v1834
      %v3191 = vpop.f32.mrf.mxu0
      %v3192 = vadd.f32 %v2791, %v3191
      %3193 = vmatmul.f32.gmra.mxu0 %v1838
      %v3194 = vpop.f32.mrf.mxu0
      %v3195 = vadd.f32 %v2794, %v3194
      %3196 = vmatmul.f32.gmra.mxu0 %v1842
      %v3197 = vpop.f32.mrf.mxu0
      %v3198 = vadd.f32 %v2797, %v3197
      %3199 = vmatmul.f32.gmra.mxu0 %v1846
      %v3200 = vpop.f32.mrf.mxu0
      %v3201 = vadd.f32 %v2800, %v3200
      %3202 = vmatmul.f32.gmra.mxu0 %v1850
      %v3203 = vpop.f32.mrf.mxu0
      %v3204 = vadd.f32 %v2803, %v3203
      %3205 = vmatmul.f32.gmra.mxu0 %v1854
      %v3206 = vpop.f32.mrf.mxu0
      %v3207 = vadd.f32 %v2806, %v3206
      %3208 = vmatmul.f32.gmra.mxu0 %v1858
      %v3209 = vpop.f32.mrf.mxu0
      %v3210 = vadd.f32 %v2809, %v3209
      %3211 = vmatmul.f32.gmra.mxu0 %v1862
      %v3212 = vpop.f32.mrf.mxu0
      %v3213 = vadd.f32 %v2812, %v3212
      %3214 = vmatmul.f32.gmra.mxu0 %v1866
      %v3215 = vpop.f32.mrf.mxu0
      %v3216 = vadd.f32 %v2815, %v3215
      %3217 = vmatmul.f32.gmra.mxu0 %v1870
      %v3218 = vpop.f32.mrf.mxu0
      %v3219 = vadd.f32 %v2818, %v3218
      %3220 = vmatmul.f32.gmra.mxu0 %v1874
      %v3221 = vpop.f32.mrf.mxu0
      %v3222 = vadd.f32 %v2821, %v3221
      %3223 = vmatmul.f32.gmra.mxu0 %v1878
      %v3224 = vpop.f32.mrf.mxu0
      %v3225 = vadd.f32 %v2824, %v3224
      %3226 = vmatmul.f32.gmra.mxu0 %v1882
      %v3227 = vpop.f32.mrf.mxu0
      %v3228 = vadd.f32 %v2827, %v3227
      %3229 = vmatmul.f32.gmra.mxu0 %v1886
      %v3230 = vpop.f32.mrf.mxu0
      %v3231 = vadd.f32 %v2830, %v3230
      %3232 = vmatmul.f32.gmra.mxu0 %v1890
      %v3233 = vpop.f32.mrf.mxu0
      %v3234 = vadd.f32 %v2833, %v3233
      %3235 = vmatmul.f32.gmra.mxu0 %v1894
      %v3236 = vpop.f32.mrf.mxu0
      %v3237 = vadd.f32 %v2836, %v3236
      %3238 = vmatmul.f32.gmra.mxu0 %v1898
      %v3239 = vpop.f32.mrf.mxu0
      %v3240 = vadd.f32 %v2839, %v3239
      %3241 = vmatmul.f32.gmra.mxu0 %v1902
      %v3242 = vpop.f32.mrf.mxu0
      %v3243 = vadd.f32 %v2842, %v3242
      %3244 = vmatmul.f32.gmra.mxu0 %v1906
      %v3245 = vpop.f32.mrf.mxu0
      %v3246 = vadd.f32 %v2845, %v3245
      %3247 = vmatmul.f32.gmra.mxu0 %v1910
      %v3248 = vpop.f32.mrf.mxu0
      %v3249 = vadd.f32 %v2848, %v3248
      %3250 = vmatmul.f32.gmra.mxu0 %v1914
      %v3251 = vpop.f32.mrf.mxu0
      %v3252 = vadd.f32 %v2851, %v3251
      %3253 = vmatmul.f32.gmra.mxu0 %v1918
      %v3254 = vpop.f32.mrf.mxu0
      %v3255 = vadd.f32 %v2854, %v3254
      %3256 = vmatmul.f32.gmra.mxu0 %v1922
      %v3257 = vpop.f32.mrf.mxu0
      %v3258 = vadd.f32 %v2857, %v3257
      %3259 = vmatmul.f32.gmra.mxu0 %v1926
      %v3260 = vpop.f32.mrf.mxu0
      %v3261 = vadd.f32 %v2860, %v3260
      %3262 = vmatmul.f32.gmra.mxu0 %v1930
      %v3263 = vpop.f32.mrf.mxu0
      %v3264 = vadd.f32 %v2863, %v3263
      %3265 = vmatmul.f32.gmra.mxu0 %v1934
      %v3266 = vpop.f32.mrf.mxu0
      %v3267 = vadd.f32 %v2866, %v3266
      %3268 = vmatmul.f32.gmra.mxu0 %v1938
      %v3269 = vpop.f32.mrf.mxu0
      %v3270 = vadd.f32 %v2869, %v3269
      %3271 = vmatmul.f32.gmra.mxu0 %v1942
      %v3272 = vpop.f32.mrf.mxu0
      %v3273 = vadd.f32 %v2872, %v3272
      %3274 = vmatmul.f32.gmra.mxu0 %v1946
      %v3275 = vpop.f32.mrf.mxu0
      %v3276 = vadd.f32 %v2875, %v3275
      %3277 = vmatmul.f32.gmra.mxu0 %v1950
      %v3278 = vpop.f32.mrf.mxu0
      %v3279 = vadd.f32 %v2878, %v3278
      %3280 = vmatmul.f32.gmra.mxu0 %v1954
      %v3281 = vpop.f32.mrf.mxu0
      %v3282 = vadd.f32 %v2881, %v3281
      %3283 = vmatmul.f32.gmra.mxu0 %v1958
      %v3284 = vpop.f32.mrf.mxu0
      %v3285 = vadd.f32 %v2884, %v3284
      %3286 = vmatmul.f32.gmra.mxu0 %v1962
      %v3287 = vpop.f32.mrf.mxu0
      %v3288 = vadd.f32 %v2887, %v3287
      %3289 = vmatmul.f32.gmra.mxu0 %v1966
      %v3290 = vpop.f32.mrf.mxu0
      %v3291 = vadd.f32 %v2890, %v3290
      %3292 = vmatmul.f32.gmra.mxu0 %v1970
      %v3293 = vpop.f32.mrf.mxu0
      %v3294 = vadd.f32 %v2893, %v3293
      %3295 = vmatmul.f32.gmra.mxu0 %v1974
      %v3296 = vpop.f32.mrf.mxu0
      %v3297 = vadd.f32 %v2896, %v3296
      %3298 = vmatmul.f32.gmra.mxu0 %v1978
      %v3299 = vpop.f32.mrf.mxu0
      %v3300 = vadd.f32 %v2899, %v3299
      %3301 = vmatmul.f32.gmra.mxu0 %v1982
      %v3302 = vpop.f32.mrf.mxu0
      %v3303 = vadd.f32 %v2902, %v3302
      %3304 = vmatmul.f32.gmra.mxu0 %v1986
      %v3305 = vpop.f32.mrf.mxu0
      %v3306 = vadd.f32 %v2905, %v3305
      %3307 = vmatmul.f32.gmra.mxu0 %v1990
      %v3308 = vpop.f32.mrf.mxu0
      %v3309 = vadd.f32 %v2908, %v3308
      %3310 = vmatmul.f32.gmra.mxu0 %v1994
      %v3311 = vpop.f32.mrf.mxu0
      %v3312 = vadd.f32 %v2911, %v3311
      %3313 = vmatmul.f32.gmra.mxu0 %v1998
      %v3314 = vpop.f32.mrf.mxu0
      %v3315 = vadd.f32 %v2914, %v3314
      %3316 = vmatmul.f32.gmra.mxu0 %v2002
      %v3317 = vpop.f32.mrf.mxu0
      %v3318 = vadd.f32 %v2917, %v3317
      %3319 = vmatmul.f32.gmra.mxu0 %v2006
      %v3320 = vpop.f32.mrf.mxu0
      %v3321 = vadd.f32 %v2920, %v3320
      %3322 = vmatmul.f32.gmra.mxu0 %v2010
      %v3323 = vpop.f32.mrf.mxu0
      %v3324 = vadd.f32 %v2923, %v3323
      %3325 = vmatmul.f32.gmra.mxu0 %v2014
      %v3326 = vpop.f32.mrf.mxu0
      %v3327 = vadd.f32 %v2926, %v3326
      %3328 = vmatmul.f32.gmra.mxu0 %v2018
      %v3329 = vpop.f32.mrf.mxu0
      %v3330 = vadd.f32 %v2929, %v3329
      %3331 = vmatmul.f32.gmra.mxu0 %v2022
      %v3332 = vpop.f32.mrf.mxu0
      %v3333 = vadd.f32 %v2932, %v3332
      %3334 = vmatmul.f32.gmra.mxu0 %v2026
      %v3335 = vpop.f32.mrf.mxu0
      %v3336 = vadd.f32 %v2935, %v3335
      %3337 = vmatmul.f32.gmra.mxu0 %v2030
      %v3338 = vpop.f32.mrf.mxu0
      %v3339 = vadd.f32 %v2938, %v3338
      %3340 = vmatmul.f32.gmra.mxu0 %v2034
      %v3341 = vpop.f32.mrf.mxu0
      %v3342 = vadd.f32 %v2941, %v3341
      %3343 = vmatmul.f32.gmra.mxu0 %v2038
      %v3344 = vpop.f32.mrf.mxu0
      %v3345 = vadd.f32 %v2944, %v3344
      %3346 = vmatmul.f32.gmra.mxu0 %v2042
      %v3347 = vpop.f32.mrf.mxu0
      %v3348 = vadd.f32 %v2947, %v3347
      %3349 = vmatmul.f32.gmra.mxu0 %v2046
      %v3350 = vpop.f32.mrf.mxu0
      %v3351 = vadd.f32 %v2950, %v3350
      %3352 = vmatmul.f32.gmra.mxu0 %v2050
      %v3353 = vpop.f32.mrf.mxu0
      %v3354 = vadd.f32 %v2953, %v3353
      %3355 = vmatmul.f32.gmra.mxu0 %v2054
      %v3356 = vpop.f32.mrf.mxu0
      %v3357 = vadd.f32 %v2956, %v3356
      %3358 = vmatmul.f32.gmra.mxu0 %v2058
      %v3359 = vpop.f32.mrf.mxu0
      %v3360 = vadd.f32 %v2959, %v3359
      %3361 = vmatmul.f32.gmra.mxu0 %v2062
      %v3362 = vpop.f32.mrf.mxu0
      %v3363 = vadd.f32 %v2962, %v3362
      %3364 = vmatmul.f32.gmra.mxu0 %v2066
      %v3365 = vpop.f32.mrf.mxu0
      %v3366 = vadd.f32 %v2965, %v3365
      %3367 = vmatmul.f32.gmra.mxu0 %v2070
      %v3368 = vpop.f32.mrf.mxu0
      %v3369 = vadd.f32 %v2968, %v3368
      %3370 = vmatmul.f32.gmra.mxu0 %v2074
      %v3371 = vpop.f32.mrf.mxu0
      %v3372 = vadd.f32 %v2971, %v3371
      %3373 = vmatmul.f32.gmra.mxu0 %v2078
      %v3374 = vpop.f32.mrf.mxu0
      %v3375 = vadd.f32 %v2974, %v3374
      %3376 = vmatmul.f32.gmra.mxu0 %v2082
      %v3377 = vpop.f32.mrf.mxu0
      %v3378 = vadd.f32 %v2977, %v3377
      %3379 = vmatmul.f32.gmra.mxu0 %v2086
      %v3380 = vpop.f32.mrf.mxu0
      %v3381 = vadd.f32 %v2980, %v3380
      %3382 = vmatmul.f32.gmra.mxu0 %v2090
      %v3383 = vpop.f32.mrf.mxu0
      %v3384 = vadd.f32 %v2983, %v3383
      %3385 = vmatmul.f32.gmra.mxu0 %v2094
      %v3386 = vpop.f32.mrf.mxu0
      %v3387 = vadd.f32 %v2986, %v3386
      %3388 = vmatmul.f32.gmra.mxu0 %v2098
      %v3389 = vpop.f32.mrf.mxu0
      %v3390 = vadd.f32 %v2989, %v3389
      %3391 = vmatmul.f32.gmra.mxu0 %v2102
      %v3392 = vpop.f32.mrf.mxu0
      %v3393 = vadd.f32 %v2992, %v3392
      %3394 = vmatmul.f32.gmra.mxu0 %v2106
      %v3395 = vpop.f32.mrf.mxu0
      %v3396 = vadd.f32 %v2995, %v3395
      %3397 = vmatmul.f32.gmra.mxu0 %v2110
      %v3398 = vpop.f32.mrf.mxu0
      %v3399 = vadd.f32 %v2998, %v3398
      %3400 = vmatmul.f32.gmra.mxu0 %v2114
      %v3401 = vpop.f32.mrf.mxu0
      %v3402 = vadd.f32 %v3001, %v3401
      %3403 = vmatmul.f32.gmra.mxu0 %v2118
      %v3404 = vpop.f32.mrf.mxu0
      %v3405 = vadd.f32 %v3004, %v3404
      %3406 = vmatmul.f32.gmra.mxu0 %v2122
      %v3407 = vpop.f32.mrf.mxu0
      %v3408 = vadd.f32 %v3007, %v3407
      %3409 = vmatmul.f32.gmra.mxu0 %v2126
      %v3410 = vpop.f32.mrf.mxu0
      %v3411 = vadd.f32 %v3010, %v3410
      %3412 = vmatmul.f32.gmra.mxu0 %v2130
      %v3413 = vpop.f32.mrf.mxu0
      %v3414 = vadd.f32 %v3013, %v3413
      %3415 = vmatmul.f32.gmra.mxu0 %v2134
      %v3416 = vpop.f32.mrf.mxu0
      %v3417 = vadd.f32 %v3016, %v3416
      %3418 = vmatmul.f32.gmra.mxu0 %v2138
      %v3419 = vpop.f32.mrf.mxu0
      %v3420 = vadd.f32 %v3019, %v3419
      %3421 = vmatmul.f32.gmra.mxu0 %v2142
      %v3422 = vpop.f32.mrf.mxu0
      %v3423 = vadd.f32 %v3022, %v3422
      %3424 = vmatmul.f32.gmra.mxu0 %v2146
      %v3425 = vpop.f32.mrf.mxu0
      %v3426 = vadd.f32 %v3025, %v3425
      %3427 = vmatmul.f32.gmra.mxu0 %v2150
      %v3428 = vpop.f32.mrf.mxu0
      %v3429 = vadd.f32 %v3028, %v3428
      %3430 = vmatmul.f32.gmra.mxu0 %v2154
      %v3431 = vpop.f32.mrf.mxu0
      %v3432 = vadd.f32 %v3031, %v3431
      %3433 = vmatmul.f32.gmra.mxu0 %v2158
      %v3434 = vpop.f32.mrf.mxu0
      %v3435 = vadd.f32 %v3034, %v3434
      %3436 = vmatmul.f32.gmra.mxu0 %v2162
      %v3437 = vpop.f32.mrf.mxu0
      %v3438 = vadd.f32 %v3037, %v3437
      %3439 = vmatmul.f32.gmra.mxu0 %v2166
      %v3440 = vpop.f32.mrf.mxu0
      %v3441 = vadd.f32 %v3040, %v3440
      %3442 = vmatmul.f32.gmra.mxu0 %v2170
      %v3443 = vpop.f32.mrf.mxu0
      %v3444 = vadd.f32 %v3043, %v3443
      %3445 = vmatmul.f32.gmra.mxu0 %v2174
      %v3446 = vpop.f32.mrf.mxu0
      %v3447 = vadd.f32 %v3046, %v3446
      %3448 = vmatmul.f32.gmra.mxu0 %v2178
      %v3449 = vpop.f32.mrf.mxu0
      %v3450 = vadd.f32 %v3049, %v3449
      %3451 = vmatmul.f32.gmra.mxu0 %v2182
      %v3452 = vpop.f32.mrf.mxu0
      %v3453 = vadd.f32 %v3052, %v3452
      %3454 = vmatmul.f32.gmra.mxu0 %v2186
      %v3455 = vpop.f32.mrf.mxu0
      %v3456 = vadd.f32 %v3055, %v3455
      %3457 = vmatmul.f32.gmra.mxu0 %v2190
      %v3458 = vpop.f32.mrf.mxu0
      %v3459 = vadd.f32 %v3058, %v3458
      %3460 = vmatmul.f32.gmra.mxu0 %v2194
      %v3461 = vpop.f32.mrf.mxu0
      %v3462 = vadd.f32 %v3061, %v3461
      %3463 = vmatmul.f32.gmra.mxu0 %v2198
      %v3464 = vpop.f32.mrf.mxu0
      %v3465 = vadd.f32 %v3064, %v3464
      %3466 = vdwg.mxu0
      %3467 = vmatpush.msra.mxu0 %v2263
      %3468 = vmatpush.msra.mxu0 %v2262
      %3469 = vmatpush.msra.mxu0 %v2261
      %3470 = vmatpush.msra.mxu0 %v2260
      %3471 = vmatpush.msra.mxu0 %v2259
      %3472 = vmatpush.msra.mxu0 %v2258
      %3473 = vmatpush.msra.mxu0 %v2257
      %3474 = vmatpush.msra.mxu0 %v2256
      %3475 = vmatpush.msra.mxu0 %v2255
      %3476 = vmatpush.msra.mxu0 %v2254
      %3477 = vmatpush.msra.mxu0 %v2253
      %3478 = vmatpush.msra.mxu0 %v2252
      %3479 = vmatpush.msra.mxu0 %v2251
      %3480 = vmatpush.msra.mxu0 %v2250
      %3481 = vmatpush.msra.mxu0 %v2249
      %3482 = vmatpush.msra.mxu0 %v2248
      %3483 = vmatmul.f32.gmra.mxu0 %v1691
      %v3484 = vpop.f32.mrf.mxu0
      %v3485 = vadd.f32 %v3084, %v3484
      %3486 = vmatmul.f32.gmra.mxu0 %v1695
      %v3487 = vpop.f32.mrf.mxu0
      %v3488 = vadd.f32 %v3087, %v3487
      %3489 = vmatmul.f32.gmra.mxu0 %v1699
      %v3490 = vpop.f32.mrf.mxu0
      %v3491 = vadd.f32 %v3090, %v3490
      %3492 = vmatmul.f32.gmra.mxu0 %v1703
      %v3493 = vpop.f32.mrf.mxu0
      %v3494 = vadd.f32 %v3093, %v3493
      %3495 = vmatmul.f32.gmra.mxu0 %v1707
      %v3496 = vpop.f32.mrf.mxu0
      %v3497 = vadd.f32 %v3096, %v3496
      %3498 = vmatmul.f32.gmra.mxu0 %v1711
      %v3499 = vpop.f32.mrf.mxu0
      %v3500 = vadd.f32 %v3099, %v3499
      %3501 = vmatmul.f32.gmra.mxu0 %v1715
      %v3502 = vpop.f32.mrf.mxu0
      %v3503 = vadd.f32 %v3102, %v3502
      %3504 = vmatmul.f32.gmra.mxu0 %v1719
      %v3505 = vpop.f32.mrf.mxu0
      %v3506 = vadd.f32 %v3105, %v3505
      %3507 = vmatmul.f32.gmra.mxu0 %v1723
      %v3508 = vpop.f32.mrf.mxu0
      %v3509 = vadd.f32 %v3108, %v3508
      %3510 = vmatmul.f32.gmra.mxu0 %v1727
      %v3511 = vpop.f32.mrf.mxu0
      %v3512 = vadd.f32 %v3111, %v3511
      %3513 = vmatmul.f32.gmra.mxu0 %v1731
      %v3514 = vpop.f32.mrf.mxu0
      %v3515 = vadd.f32 %v3114, %v3514
      %3516 = vmatmul.f32.gmra.mxu0 %v1735
      %v3517 = vpop.f32.mrf.mxu0
      %v3518 = vadd.f32 %v3117, %v3517
      %3519 = vmatmul.f32.gmra.mxu0 %v1739
      %v3520 = vpop.f32.mrf.mxu0
      %v3521 = vadd.f32 %v3120, %v3520
      %3522 = vmatmul.f32.gmra.mxu0 %v1743
      %v3523 = vpop.f32.mrf.mxu0
      %v3524 = vadd.f32 %v3123, %v3523
      %3525 = vmatmul.f32.gmra.mxu0 %v1747
      %v3526 = vpop.f32.mrf.mxu0
      %v3527 = vadd.f32 %v3126, %v3526
      %3528 = vmatmul.f32.gmra.mxu0 %v1751
      %v3529 = vpop.f32.mrf.mxu0
      %v3530 = vadd.f32 %v3129, %v3529
      %3531 = vmatmul.f32.gmra.mxu0 %v1755
      %v3532 = vpop.f32.mrf.mxu0
      %v3533 = vadd.f32 %v3132, %v3532
      %3534 = vmatmul.f32.gmra.mxu0 %v1759
      %v3535 = vpop.f32.mrf.mxu0
      %v3536 = vadd.f32 %v3135, %v3535
      %3537 = vmatmul.f32.gmra.mxu0 %v1763
      %v3538 = vpop.f32.mrf.mxu0
      %v3539 = vadd.f32 %v3138, %v3538
      %3540 = vmatmul.f32.gmra.mxu0 %v1767
      %v3541 = vpop.f32.mrf.mxu0
      %v3542 = vadd.f32 %v3141, %v3541
      %3543 = vmatmul.f32.gmra.mxu0 %v1771
      %v3544 = vpop.f32.mrf.mxu0
      %v3545 = vadd.f32 %v3144, %v3544
      %3546 = vmatmul.f32.gmra.mxu0 %v1775
      %v3547 = vpop.f32.mrf.mxu0
      %v3548 = vadd.f32 %v3147, %v3547
      %3549 = vmatmul.f32.gmra.mxu0 %v1779
      %v3550 = vpop.f32.mrf.mxu0
      %v3551 = vadd.f32 %v3150, %v3550
      %3552 = vmatmul.f32.gmra.mxu0 %v1783
      %v3553 = vpop.f32.mrf.mxu0
      %v3554 = vadd.f32 %v3153, %v3553
      %3555 = vmatmul.f32.gmra.mxu0 %v1787
      %v3556 = vpop.f32.mrf.mxu0
      %v3557 = vadd.f32 %v3156, %v3556
      %3558 = vmatmul.f32.gmra.mxu0 %v1791
      %v3559 = vpop.f32.mrf.mxu0
      %v3560 = vadd.f32 %v3159, %v3559
      %3561 = vmatmul.f32.gmra.mxu0 %v1795
      %v3562 = vpop.f32.mrf.mxu0
      %v3563 = vadd.f32 %v3162, %v3562
      %3564 = vmatmul.f32.gmra.mxu0 %v1799
      %v3565 = vpop.f32.mrf.mxu0
      %v3566 = vadd.f32 %v3165, %v3565
      %3567 = vmatmul.f32.gmra.mxu0 %v1803
      %v3568 = vpop.f32.mrf.mxu0
      %v3569 = vadd.f32 %v3168, %v3568
      %3570 = vmatmul.f32.gmra.mxu0 %v1807
      %v3571 = vpop.f32.mrf.mxu0
      %v3572 = vadd.f32 %v3171, %v3571
      %3573 = vmatmul.f32.gmra.mxu0 %v1811
      %v3574 = vpop.f32.mrf.mxu0
      %v3575 = vadd.f32 %v3174, %v3574
      %3576 = vmatmul.f32.gmra.mxu0 %v1815
      %v3577 = vpop.f32.mrf.mxu0
      %v3578 = vadd.f32 %v3177, %v3577
      %3579 = vmatmul.f32.gmra.mxu0 %v1819
      %v3580 = vpop.f32.mrf.mxu0
      %v3581 = vadd.f32 %v3180, %v3580
      %3582 = vmatmul.f32.gmra.mxu0 %v1823
      %v3583 = vpop.f32.mrf.mxu0
      %v3584 = vadd.f32 %v3183, %v3583
      %3585 = vmatmul.f32.gmra.mxu0 %v1827
      %v3586 = vpop.f32.mrf.mxu0
      %v3587 = vadd.f32 %v3186, %v3586
      %3588 = vmatmul.f32.gmra.mxu0 %v1831
      %v3589 = vpop.f32.mrf.mxu0
      %v3590 = vadd.f32 %v3189, %v3589
      %3591 = vmatmul.f32.gmra.mxu0 %v1835
      %v3592 = vpop.f32.mrf.mxu0
      %v3593 = vadd.f32 %v3192, %v3592
      %3594 = vmatmul.f32.gmra.mxu0 %v1839
      %v3595 = vpop.f32.mrf.mxu0
      %v3596 = vadd.f32 %v3195, %v3595
      %3597 = vmatmul.f32.gmra.mxu0 %v1843
      %v3598 = vpop.f32.mrf.mxu0
      %v3599 = vadd.f32 %v3198, %v3598
      %3600 = vmatmul.f32.gmra.mxu0 %v1847
      %v3601 = vpop.f32.mrf.mxu0
      %v3602 = vadd.f32 %v3201, %v3601
      %3603 = vmatmul.f32.gmra.mxu0 %v1851
      %v3604 = vpop.f32.mrf.mxu0
      %v3605 = vadd.f32 %v3204, %v3604
      %3606 = vmatmul.f32.gmra.mxu0 %v1855
      %v3607 = vpop.f32.mrf.mxu0
      %v3608 = vadd.f32 %v3207, %v3607
      %3609 = vmatmul.f32.gmra.mxu0 %v1859
      %v3610 = vpop.f32.mrf.mxu0
      %v3611 = vadd.f32 %v3210, %v3610
      %3612 = vmatmul.f32.gmra.mxu0 %v1863
      %v3613 = vpop.f32.mrf.mxu0
      %v3614 = vadd.f32 %v3213, %v3613
      %3615 = vmatmul.f32.gmra.mxu0 %v1867
      %v3616 = vpop.f32.mrf.mxu0
      %v3617 = vadd.f32 %v3216, %v3616
      %3618 = vmatmul.f32.gmra.mxu0 %v1871
      %v3619 = vpop.f32.mrf.mxu0
      %v3620 = vadd.f32 %v3219, %v3619
      %3621 = vmatmul.f32.gmra.mxu0 %v1875
      %v3622 = vpop.f32.mrf.mxu0
      %v3623 = vadd.f32 %v3222, %v3622
      %3624 = vmatmul.f32.gmra.mxu0 %v1879
      %v3625 = vpop.f32.mrf.mxu0
      %v3626 = vadd.f32 %v3225, %v3625
      %3627 = vmatmul.f32.gmra.mxu0 %v1883
      %v3628 = vpop.f32.mrf.mxu0
      %v3629 = vadd.f32 %v3228, %v3628
      %3630 = vmatmul.f32.gmra.mxu0 %v1887
      %v3631 = vpop.f32.mrf.mxu0
      %v3632 = vadd.f32 %v3231, %v3631
      %3633 = vmatmul.f32.gmra.mxu0 %v1891
      %v3634 = vpop.f32.mrf.mxu0
      %v3635 = vadd.f32 %v3234, %v3634
      %3636 = vmatmul.f32.gmra.mxu0 %v1895
      %v3637 = vpop.f32.mrf.mxu0
      %v3638 = vadd.f32 %v3237, %v3637
      %3639 = vmatmul.f32.gmra.mxu0 %v1899
      %v3640 = vpop.f32.mrf.mxu0
      %v3641 = vadd.f32 %v3240, %v3640
      %3642 = vmatmul.f32.gmra.mxu0 %v1903
      %v3643 = vpop.f32.mrf.mxu0
      %v3644 = vadd.f32 %v3243, %v3643
      %3645 = vmatmul.f32.gmra.mxu0 %v1907
      %v3646 = vpop.f32.mrf.mxu0
      %v3647 = vadd.f32 %v3246, %v3646
      %3648 = vmatmul.f32.gmra.mxu0 %v1911
      %v3649 = vpop.f32.mrf.mxu0
      %v3650 = vadd.f32 %v3249, %v3649
      %3651 = vmatmul.f32.gmra.mxu0 %v1915
      %v3652 = vpop.f32.mrf.mxu0
      %v3653 = vadd.f32 %v3252, %v3652
      %3654 = vmatmul.f32.gmra.mxu0 %v1919
      %v3655 = vpop.f32.mrf.mxu0
      %v3656 = vadd.f32 %v3255, %v3655
      %3657 = vmatmul.f32.gmra.mxu0 %v1923
      %v3658 = vpop.f32.mrf.mxu0
      %v3659 = vadd.f32 %v3258, %v3658
      %3660 = vmatmul.f32.gmra.mxu0 %v1927
      %v3661 = vpop.f32.mrf.mxu0
      %v3662 = vadd.f32 %v3261, %v3661
      %3663 = vmatmul.f32.gmra.mxu0 %v1931
      %v3664 = vpop.f32.mrf.mxu0
      %v3665 = vadd.f32 %v3264, %v3664
      %3666 = vmatmul.f32.gmra.mxu0 %v1935
      %v3667 = vpop.f32.mrf.mxu0
      %v3668 = vadd.f32 %v3267, %v3667
      %3669 = vmatmul.f32.gmra.mxu0 %v1939
      %v3670 = vpop.f32.mrf.mxu0
      %v3671 = vadd.f32 %v3270, %v3670
      %3672 = vmatmul.f32.gmra.mxu0 %v1943
      %v3673 = vpop.f32.mrf.mxu0
      %v3674 = vadd.f32 %v3273, %v3673
      %3675 = vmatmul.f32.gmra.mxu0 %v1947
      %v3676 = vpop.f32.mrf.mxu0
      %v3677 = vadd.f32 %v3276, %v3676
      %3678 = vmatmul.f32.gmra.mxu0 %v1951
      %v3679 = vpop.f32.mrf.mxu0
      %v3680 = vadd.f32 %v3279, %v3679
      %3681 = vmatmul.f32.gmra.mxu0 %v1955
      %v3682 = vpop.f32.mrf.mxu0
      %v3683 = vadd.f32 %v3282, %v3682
      %3684 = vmatmul.f32.gmra.mxu0 %v1959
      %v3685 = vpop.f32.mrf.mxu0
      %v3686 = vadd.f32 %v3285, %v3685
      %3687 = vmatmul.f32.gmra.mxu0 %v1963
      %v3688 = vpop.f32.mrf.mxu0
      %v3689 = vadd.f32 %v3288, %v3688
      %3690 = vmatmul.f32.gmra.mxu0 %v1967
      %v3691 = vpop.f32.mrf.mxu0
      %v3692 = vadd.f32 %v3291, %v3691
      %3693 = vmatmul.f32.gmra.mxu0 %v1971
      %v3694 = vpop.f32.mrf.mxu0
      %v3695 = vadd.f32 %v3294, %v3694
      %3696 = vmatmul.f32.gmra.mxu0 %v1975
      %v3697 = vpop.f32.mrf.mxu0
      %v3698 = vadd.f32 %v3297, %v3697
      %3699 = vmatmul.f32.gmra.mxu0 %v1979
      %v3700 = vpop.f32.mrf.mxu0
      %v3701 = vadd.f32 %v3300, %v3700
      %3702 = vmatmul.f32.gmra.mxu0 %v1983
      %v3703 = vpop.f32.mrf.mxu0
      %v3704 = vadd.f32 %v3303, %v3703
      %3705 = vmatmul.f32.gmra.mxu0 %v1987
      %v3706 = vpop.f32.mrf.mxu0
      %v3707 = vadd.f32 %v3306, %v3706
      %3708 = vmatmul.f32.gmra.mxu0 %v1991
      %v3709 = vpop.f32.mrf.mxu0
      %v3710 = vadd.f32 %v3309, %v3709
      %3711 = vmatmul.f32.gmra.mxu0 %v1995
      %v3712 = vpop.f32.mrf.mxu0
      %v3713 = vadd.f32 %v3312, %v3712
      %3714 = vmatmul.f32.gmra.mxu0 %v1999
      %v3715 = vpop.f32.mrf.mxu0
      %v3716 = vadd.f32 %v3315, %v3715
      %3717 = vmatmul.f32.gmra.mxu0 %v2003
      %v3718 = vpop.f32.mrf.mxu0
      %v3719 = vadd.f32 %v3318, %v3718
      %3720 = vmatmul.f32.gmra.mxu0 %v2007
      %v3721 = vpop.f32.mrf.mxu0
      %v3722 = vadd.f32 %v3321, %v3721
      %3723 = vmatmul.f32.gmra.mxu0 %v2011
      %v3724 = vpop.f32.mrf.mxu0
      %v3725 = vadd.f32 %v3324, %v3724
      %3726 = vmatmul.f32.gmra.mxu0 %v2015
      %v3727 = vpop.f32.mrf.mxu0
      %v3728 = vadd.f32 %v3327, %v3727
      %3729 = vmatmul.f32.gmra.mxu0 %v2019
      %v3730 = vpop.f32.mrf.mxu0
      %v3731 = vadd.f32 %v3330, %v3730
      %3732 = vmatmul.f32.gmra.mxu0 %v2023
      %v3733 = vpop.f32.mrf.mxu0
      %v3734 = vadd.f32 %v3333, %v3733
      %3735 = vmatmul.f32.gmra.mxu0 %v2027
      %v3736 = vpop.f32.mrf.mxu0
      %v3737 = vadd.f32 %v3336, %v3736
      %3738 = vmatmul.f32.gmra.mxu0 %v2031
      %v3739 = vpop.f32.mrf.mxu0
      %v3740 = vadd.f32 %v3339, %v3739
      %3741 = vmatmul.f32.gmra.mxu0 %v2035
      %v3742 = vpop.f32.mrf.mxu0
      %v3743 = vadd.f32 %v3342, %v3742
      %3744 = vmatmul.f32.gmra.mxu0 %v2039
      %v3745 = vpop.f32.mrf.mxu0
      %v3746 = vadd.f32 %v3345, %v3745
      %3747 = vmatmul.f32.gmra.mxu0 %v2043
      %v3748 = vpop.f32.mrf.mxu0
      %v3749 = vadd.f32 %v3348, %v3748
      %3750 = vmatmul.f32.gmra.mxu0 %v2047
      %v3751 = vpop.f32.mrf.mxu0
      %v3752 = vadd.f32 %v3351, %v3751
      %3753 = vmatmul.f32.gmra.mxu0 %v2051
      %v3754 = vpop.f32.mrf.mxu0
      %v3755 = vadd.f32 %v3354, %v3754
      %3756 = vmatmul.f32.gmra.mxu0 %v2055
      %v3757 = vpop.f32.mrf.mxu0
      %v3758 = vadd.f32 %v3357, %v3757
      %3759 = vmatmul.f32.gmra.mxu0 %v2059
      %v3760 = vpop.f32.mrf.mxu0
      %v3761 = vadd.f32 %v3360, %v3760
      %3762 = vmatmul.f32.gmra.mxu0 %v2063
      %v3763 = vpop.f32.mrf.mxu0
      %v3764 = vadd.f32 %v3363, %v3763
      %3765 = vmatmul.f32.gmra.mxu0 %v2067
      %v3766 = vpop.f32.mrf.mxu0
      %v3767 = vadd.f32 %v3366, %v3766
      %3768 = vmatmul.f32.gmra.mxu0 %v2071
      %v3769 = vpop.f32.mrf.mxu0
      %v3770 = vadd.f32 %v3369, %v3769
      %3771 = vmatmul.f32.gmra.mxu0 %v2075
      %v3772 = vpop.f32.mrf.mxu0
      %v3773 = vadd.f32 %v3372, %v3772
      %3774 = vmatmul.f32.gmra.mxu0 %v2079
      %v3775 = vpop.f32.mrf.mxu0
      %v3776 = vadd.f32 %v3375, %v3775
      %3777 = vmatmul.f32.gmra.mxu0 %v2083
      %v3778 = vpop.f32.mrf.mxu0
      %v3779 = vadd.f32 %v3378, %v3778
      %3780 = vmatmul.f32.gmra.mxu0 %v2087
      %v3781 = vpop.f32.mrf.mxu0
      %v3782 = vadd.f32 %v3381, %v3781
      %3783 = vmatmul.f32.gmra.mxu0 %v2091
      %v3784 = vpop.f32.mrf.mxu0
      %v3785 = vadd.f32 %v3384, %v3784
      %3786 = vmatmul.f32.gmra.mxu0 %v2095
      %v3787 = vpop.f32.mrf.mxu0
      %v3788 = vadd.f32 %v3387, %v3787
      %3789 = vmatmul.f32.gmra.mxu0 %v2099
      %v3790 = vpop.f32.mrf.mxu0
      %v3791 = vadd.f32 %v3390, %v3790
      %3792 = vmatmul.f32.gmra.mxu0 %v2103
      %v3793 = vpop.f32.mrf.mxu0
      %v3794 = vadd.f32 %v3393, %v3793
      %3795 = vmatmul.f32.gmra.mxu0 %v2107
      %v3796 = vpop.f32.mrf.mxu0
      %v3797 = vadd.f32 %v3396, %v3796
      %3798 = vmatmul.f32.gmra.mxu0 %v2111
      %v3799 = vpop.f32.mrf.mxu0
      %v3800 = vadd.f32 %v3399, %v3799
      %3801 = vmatmul.f32.gmra.mxu0 %v2115
      %v3802 = vpop.f32.mrf.mxu0
      %v3803 = vadd.f32 %v3402, %v3802
      %3804 = vmatmul.f32.gmra.mxu0 %v2119
      %v3805 = vpop.f32.mrf.mxu0
      %v3806 = vadd.f32 %v3405, %v3805
      %3807 = vmatmul.f32.gmra.mxu0 %v2123
      %v3808 = vpop.f32.mrf.mxu0
      %v3809 = vadd.f32 %v3408, %v3808
      %3810 = vmatmul.f32.gmra.mxu0 %v2127
      %v3811 = vpop.f32.mrf.mxu0
      %v3812 = vadd.f32 %v3411, %v3811
      %3813 = vmatmul.f32.gmra.mxu0 %v2131
      %v3814 = vpop.f32.mrf.mxu0
      %v3815 = vadd.f32 %v3414, %v3814
      %3816 = vmatmul.f32.gmra.mxu0 %v2135
      %v3817 = vpop.f32.mrf.mxu0
      %v3818 = vadd.f32 %v3417, %v3817
      %3819 = vmatmul.f32.gmra.mxu0 %v2139
      %v3820 = vpop.f32.mrf.mxu0
      %v3821 = vadd.f32 %v3420, %v3820
      %3822 = vmatmul.f32.gmra.mxu0 %v2143
      %v3823 = vpop.f32.mrf.mxu0
      %v3824 = vadd.f32 %v3423, %v3823
      %3825 = vmatmul.f32.gmra.mxu0 %v2147
      %v3826 = vpop.f32.mrf.mxu0
      %v3827 = vadd.f32 %v3426, %v3826
      %3828 = vmatmul.f32.gmra.mxu0 %v2151
      %v3829 = vpop.f32.mrf.mxu0
      %v3830 = vadd.f32 %v3429, %v3829
      %3831 = vmatmul.f32.gmra.mxu0 %v2155
      %v3832 = vpop.f32.mrf.mxu0
      %v3833 = vadd.f32 %v3432, %v3832
      %3834 = vmatmul.f32.gmra.mxu0 %v2159
      %v3835 = vpop.f32.mrf.mxu0
      %v3836 = vadd.f32 %v3435, %v3835
      %3837 = vmatmul.f32.gmra.mxu0 %v2163
      %v3838 = vpop.f32.mrf.mxu0
      %v3839 = vadd.f32 %v3438, %v3838
      %3840 = vmatmul.f32.gmra.mxu0 %v2167
      %v3841 = vpop.f32.mrf.mxu0
      %v3842 = vadd.f32 %v3441, %v3841
      %3843 = vmatmul.f32.gmra.mxu0 %v2171
      %v3844 = vpop.f32.mrf.mxu0
      %v3845 = vadd.f32 %v3444, %v3844
      %3846 = vmatmul.f32.gmra.mxu0 %v2175
      %v3847 = vpop.f32.mrf.mxu0
      %v3848 = vadd.f32 %v3447, %v3847
      %3849 = vmatmul.f32.gmra.mxu0 %v2179
      %v3850 = vpop.f32.mrf.mxu0
      %v3851 = vadd.f32 %v3450, %v3850
      %3852 = vmatmul.f32.gmra.mxu0 %v2183
      %v3853 = vpop.f32.mrf.mxu0
      %v3854 = vadd.f32 %v3453, %v3853
      %3855 = vmatmul.f32.gmra.mxu0 %v2187
      %v3856 = vpop.f32.mrf.mxu0
      %v3857 = vadd.f32 %v3456, %v3856
      %3858 = vmatmul.f32.gmra.mxu0 %v2191
      %v3859 = vpop.f32.mrf.mxu0
      %v3860 = vadd.f32 %v3459, %v3859
      %3861 = vmatmul.f32.gmra.mxu0 %v2195
      %v3862 = vpop.f32.mrf.mxu0
      %v3863 = vadd.f32 %v3462, %v3862
      %3864 = vmatmul.f32.gmra.mxu0 %v2199
      %v3865 = vpop.f32.mrf.mxu0
      %v3866 = vadd.f32 %v3465, %v3865
      %3867 = vdwg.mxu0
      %vm3868 = vcmask 269312
      %3869 = vst.msk [vmem:[%s145] sm:$0xff] %vm3868, %v3485
      %3870 = vst.msk [vmem:[%s145 + $0x8] sm:$0xff] %vm3868, %v3488
      %3871 = vst.msk [vmem:[%s145 + $0x10] sm:$0xff] %vm3868, %v3491
      %3872 = vst.msk [vmem:[%s145 + $0x18] sm:$0xff] %vm3868, %v3494
      %3873 = vst.msk [vmem:[%s145 + $0x20] sm:$0xff] %vm3868, %v3497
      %3874 = vst.msk [vmem:[%s145 + $0x28] sm:$0xff] %vm3868, %v3500
      %3875 = vst.msk [vmem:[%s145 + $0x30] sm:$0xff] %vm3868, %v3503
      %3876 = vst.msk [vmem:[%s145 + $0x38] sm:$0xff] %vm3868, %v3506
      %3877 = vst.msk [vmem:[%s145 + $0x40] sm:$0xff] %vm3868, %v3509
      %3878 = vst.msk [vmem:[%s145 + $0x48] sm:$0xff] %vm3868, %v3512
      %3879 = vst.msk [vmem:[%s145 + $0x50] sm:$0xff] %vm3868, %v3515
      %3880 = vst.msk [vmem:[%s145 + $0x58] sm:$0xff] %vm3868, %v3518
      %3881 = vst.msk [vmem:[%s145 + $0x60] sm:$0xff] %vm3868, %v3521
      %3882 = vst.msk [vmem:[%s145 + $0x68] sm:$0xff] %vm3868, %v3524
      %3883 = vst.msk [vmem:[%s145 + $0x70] sm:$0xff] %vm3868, %v3527
      %3884 = vst.msk [vmem:[%s145 + $0x78] sm:$0xff] %vm3868, %v3530
      %3885 = vst.msk [vmem:[%s145 + $0x80] sm:$0xff] %vm3868, %v3533
      %3886 = vst.msk [vmem:[%s145 + $0x88] sm:$0xff] %vm3868, %v3536
      %3887 = vst.msk [vmem:[%s145 + $0x90] sm:$0xff] %vm3868, %v3539
      %3888 = vst.msk [vmem:[%s145 + $0x98] sm:$0xff] %vm3868, %v3542
      %3889 = vst.msk [vmem:[%s145 + $0xa0] sm:$0xff] %vm3868, %v3545
      %3890 = vst.msk [vmem:[%s145 + $0xa8] sm:$0xff] %vm3868, %v3548
      %3891 = vst.msk [vmem:[%s145 + $0xb0] sm:$0xff] %vm3868, %v3551
      %3892 = vst.msk [vmem:[%s145 + $0xb8] sm:$0xff] %vm3868, %v3554
      %3893 = vst.msk [vmem:[%s145 + $0xc0] sm:$0xff] %vm3868, %v3557
      %3894 = vst.msk [vmem:[%s145 + $0xc8] sm:$0xff] %vm3868, %v3560
      %3895 = vst.msk [vmem:[%s145 + $0xd0] sm:$0xff] %vm3868, %v3563
      %3896 = vst.msk [vmem:[%s145 + $0xd8] sm:$0xff] %vm3868, %v3566
      %3897 = vst.msk [vmem:[%s145 + $0xe0] sm:$0xff] %vm3868, %v3569
      %3898 = vst.msk [vmem:[%s145 + $0xe8] sm:$0xff] %vm3868, %v3572
      %3899 = vst.msk [vmem:[%s145 + $0xf0] sm:$0xff] %vm3868, %v3575
      %3900 = vst.msk [vmem:[%s145 + $0xf8] sm:$0xff] %vm3868, %v3578
      %3901 = vst.msk [vmem:[%s145 + $0x100] sm:$0xff] %vm3868, %v3581
      %3902 = vst.msk [vmem:[%s145 + $0x108] sm:$0xff] %vm3868, %v3584
      %3903 = vst.msk [vmem:[%s145 + $0x110] sm:$0xff] %vm3868, %v3587
      %3904 = vst.msk [vmem:[%s145 + $0x118] sm:$0xff] %vm3868, %v3590
      %3905 = vst.msk [vmem:[%s145 + $0x120] sm:$0xff] %vm3868, %v3593
      %3906 = vst.msk [vmem:[%s145 + $0x128] sm:$0xff] %vm3868, %v3596
      %3907 = vst.msk [vmem:[%s145 + $0x130] sm:$0xff] %vm3868, %v3599
      %3908 = vst.msk [vmem:[%s145 + $0x138] sm:$0xff] %vm3868, %v3602
      %3909 = vst.msk [vmem:[%s145 + $0x140] sm:$0xff] %vm3868, %v3605
      %3910 = vst.msk [vmem:[%s145 + $0x148] sm:$0xff] %vm3868, %v3608
      %3911 = vst.msk [vmem:[%s145 + $0x150] sm:$0xff] %vm3868, %v3611
      %3912 = vst.msk [vmem:[%s145 + $0x158] sm:$0xff] %vm3868, %v3614
      %3913 = vst.msk [vmem:[%s145 + $0x160] sm:$0xff] %vm3868, %v3617
      %3914 = vst.msk [vmem:[%s145 + $0x168] sm:$0xff] %vm3868, %v3620
      %3915 = vst.msk [vmem:[%s145 + $0x170] sm:$0xff] %vm3868, %v3623
      %3916 = vst.msk [vmem:[%s145 + $0x178] sm:$0xff] %vm3868, %v3626
      %3917 = vst.msk [vmem:[%s145 + $0x180] sm:$0xff] %vm3868, %v3629
      %3918 = vst.msk [vmem:[%s145 + $0x188] sm:$0xff] %vm3868, %v3632
      %3919 = vst.msk [vmem:[%s145 + $0x190] sm:$0xff] %vm3868, %v3635
      %3920 = vst.msk [vmem:[%s145 + $0x198] sm:$0xff] %vm3868, %v3638
      %3921 = vst.msk [vmem:[%s145 + $0x1a0] sm:$0xff] %vm3868, %v3641
      %3922 = vst.msk [vmem:[%s145 + $0x1a8] sm:$0xff] %vm3868, %v3644
      %3923 = vst.msk [vmem:[%s145 + $0x1b0] sm:$0xff] %vm3868, %v3647
      %3924 = vst.msk [vmem:[%s145 + $0x1b8] sm:$0xff] %vm3868, %v3650
      %3925 = vst.msk [vmem:[%s145 + $0x1c0] sm:$0xff] %vm3868, %v3653
      %3926 = vst.msk [vmem:[%s145 + $0x1c8] sm:$0xff] %vm3868, %v3656
      %3927 = vst.msk [vmem:[%s145 + $0x1d0] sm:$0xff] %vm3868, %v3659
      %3928 = vst.msk [vmem:[%s145 + $0x1d8] sm:$0xff] %vm3868, %v3662
      %3929 = vst.msk [vmem:[%s145 + $0x1e0] sm:$0xff] %vm3868, %v3665
      %3930 = vst.msk [vmem:[%s145 + $0x1e8] sm:$0xff] %vm3868, %v3668
      %3931 = vst.msk [vmem:[%s145 + $0x1f0] sm:$0xff] %vm3868, %v3671
      %3932 = vst.msk [vmem:[%s145 + $0x1f8] sm:$0xff] %vm3868, %v3674
      %3933 = vst.msk [vmem:[%s145 + $0x200] sm:$0xff] %vm3868, %v3677
      %3934 = vst.msk [vmem:[%s145 + $0x208] sm:$0xff] %vm3868, %v3680
      %3935 = vst.msk [vmem:[%s145 + $0x210] sm:$0xff] %vm3868, %v3683
      %3936 = vst.msk [vmem:[%s145 + $0x218] sm:$0xff] %vm3868, %v3686
      %3937 = vst.msk [vmem:[%s145 + $0x220] sm:$0xff] %vm3868, %v3689
      %3938 = vst.msk [vmem:[%s145 + $0x228] sm:$0xff] %vm3868, %v3692
      %3939 = vst.msk [vmem:[%s145 + $0x230] sm:$0xff] %vm3868, %v3695
      %3940 = vst.msk [vmem:[%s145 + $0x238] sm:$0xff] %vm3868, %v3698
      %3941 = vst.msk [vmem:[%s145 + $0x240] sm:$0xff] %vm3868, %v3701
      %3942 = vst.msk [vmem:[%s145 + $0x248] sm:$0xff] %vm3868, %v3704
      %3943 = vst.msk [vmem:[%s145 + $0x250] sm:$0xff] %vm3868, %v3707
      %3944 = vst.msk [vmem:[%s145 + $0x258] sm:$0xff] %vm3868, %v3710
      %3945 = vst.msk [vmem:[%s145 + $0x260] sm:$0xff] %vm3868, %v3713
      %3946 = vst.msk [vmem:[%s145 + $0x268] sm:$0xff] %vm3868, %v3716
      %3947 = vst.msk [vmem:[%s145 + $0x270] sm:$0xff] %vm3868, %v3719
      %3948 = vst.msk [vmem:[%s145 + $0x278] sm:$0xff] %vm3868, %v3722
      %3949 = vst.msk [vmem:[%s145 + $0x280] sm:$0xff] %vm3868, %v3725
      %3950 = vst.msk [vmem:[%s145 + $0x288] sm:$0xff] %vm3868, %v3728
      %3951 = vst.msk [vmem:[%s145 + $0x290] sm:$0xff] %vm3868, %v3731
      %3952 = vst.msk [vmem:[%s145 + $0x298] sm:$0xff] %vm3868, %v3734
      %3953 = vst.msk [vmem:[%s145 + $0x2a0] sm:$0xff] %vm3868, %v3737
      %3954 = vst.msk [vmem:[%s145 + $0x2a8] sm:$0xff] %vm3868, %v3740
      %3955 = vst.msk [vmem:[%s145 + $0x2b0] sm:$0xff] %vm3868, %v3743
      %3956 = vst.msk [vmem:[%s145 + $0x2b8] sm:$0xff] %vm3868, %v3746
      %3957 = vst.msk [vmem:[%s145 + $0x2c0] sm:$0xff] %vm3868, %v3749
      %3958 = vst.msk [vmem:[%s145 + $0x2c8] sm:$0xff] %vm3868, %v3752
      %3959 = vst.msk [vmem:[%s145 + $0x2d0] sm:$0xff] %vm3868, %v3755
      %3960 = vst.msk [vmem:[%s145 + $0x2d8] sm:$0xff] %vm3868, %v3758
      %3961 = vst.msk [vmem:[%s145 + $0x2e0] sm:$0xff] %vm3868, %v3761
      %3962 = vst.msk [vmem:[%s145 + $0x2e8] sm:$0xff] %vm3868, %v3764
      %3963 = vst.msk [vmem:[%s145 + $0x2f0] sm:$0xff] %vm3868, %v3767
      %3964 = vst.msk [vmem:[%s145 + $0x2f8] sm:$0xff] %vm3868, %v3770
      %3965 = vst.msk [vmem:[%s145 + $0x300] sm:$0xff] %vm3868, %v3773
      %3966 = vst.msk [vmem:[%s145 + $0x308] sm:$0xff] %vm3868, %v3776
      %3967 = vst.msk [vmem:[%s145 + $0x310] sm:$0xff] %vm3868, %v3779
      %3968 = vst.msk [vmem:[%s145 + $0x318] sm:$0xff] %vm3868, %v3782
      %3969 = vst.msk [vmem:[%s145 + $0x320] sm:$0xff] %vm3868, %v3785
      %3970 = vst.msk [vmem:[%s145 + $0x328] sm:$0xff] %vm3868, %v3788
      %3971 = vst.msk [vmem:[%s145 + $0x330] sm:$0xff] %vm3868, %v3791
      %3972 = vst.msk [vmem:[%s145 + $0x338] sm:$0xff] %vm3868, %v3794
      %3973 = vst.msk [vmem:[%s145 + $0x340] sm:$0xff] %vm3868, %v3797
      %3974 = vst.msk [vmem:[%s145 + $0x348] sm:$0xff] %vm3868, %v3800
      %3975 = vst.msk [vmem:[%s145 + $0x350] sm:$0xff] %vm3868, %v3803
      %3976 = vst.msk [vmem:[%s145 + $0x358] sm:$0xff] %vm3868, %v3806
      %3977 = vst.msk [vmem:[%s145 + $0x360] sm:$0xff] %vm3868, %v3809
      %3978 = vst.msk [vmem:[%s145 + $0x368] sm:$0xff] %vm3868, %v3812
      %3979 = vst.msk [vmem:[%s145 + $0x370] sm:$0xff] %vm3868, %v3815
      %3980 = vst.msk [vmem:[%s145 + $0x378] sm:$0xff] %vm3868, %v3818
      %3981 = vst.msk [vmem:[%s145 + $0x380] sm:$0xff] %vm3868, %v3821
      %3982 = vst.msk [vmem:[%s145 + $0x388] sm:$0xff] %vm3868, %v3824
      %3983 = vst.msk [vmem:[%s145 + $0x390] sm:$0xff] %vm3868, %v3827
      %3984 = vst.msk [vmem:[%s145 + $0x398] sm:$0xff] %vm3868, %v3830
      %3985 = vst.msk [vmem:[%s145 + $0x3a0] sm:$0xff] %vm3868, %v3833
      %3986 = vst.msk [vmem:[%s145 + $0x3a8] sm:$0xff] %vm3868, %v3836
      %3987 = vst.msk [vmem:[%s145 + $0x3b0] sm:$0xff] %vm3868, %v3839
      %3988 = vst.msk [vmem:[%s145 + $0x3b8] sm:$0xff] %vm3868, %v3842
      %3989 = vst.msk [vmem:[%s145 + $0x3c0] sm:$0xff] %vm3868, %v3845
      %3990 = vst.msk [vmem:[%s145 + $0x3c8] sm:$0xff] %vm3868, %v3848
      %3991 = vst.msk [vmem:[%s145 + $0x3d0] sm:$0xff] %vm3868, %v3851
      %3992 = vst.msk [vmem:[%s145 + $0x3d8] sm:$0xff] %vm3868, %v3854
      %3993 = vst.msk [vmem:[%s145 + $0x3e0] sm:$0xff] %vm3868, %v3857
      %3994 = vst.msk [vmem:[%s145 + $0x3e8] sm:$0xff] %vm3868, %v3860
      %3995 = vst.msk [vmem:[%s145 + $0x3f0] sm:$0xff] %vm3868, %v3863
      %3996 = vst.msk [vmem:[%s145 + $0x3f8] sm:$0xff] %vm3868, %v3866
      %s3997 = smul.u32 128, %s13
      %p3998 = scmp.lt.s32.totalorder %s3997, 511
      %s3999 = scalar_select %p3998, %s3997, 511
      %s4000 = smul.addr %s3999, 8
      %s4001 = scalar_lea.vmem %s2, %s4000
      // Predicated region
      $region29: #{tpu_custom_call.1} parent=27 // pred_check
        %p4002 = pneg %p78
      $region30: #{tpu_custom_call.1} parent=27 // pred_check_branch
        %4004 = sbr.rel (%p4002) target = $region32
      $region31: #{tpu_custom_call.1} parent=27 // pred_region
        %s4005 = smul.u32 128, %s13
      $region32: #{tpu_custom_call.1} parent=27 // pred_fallthru
        _
    $region28: #{tpu_custom_call.1} parent=5 // pred_fallthru
      _
    %p4006 = scmp.le.s32.totalorder 2, %s8
    // Predicated region
    $region33: #{tpu_custom_call.1} parent=5 // pred_check
      %p4007 = pneg %p4006
    $region34: #{tpu_custom_call.1} parent=5 // pred_check_branch
      %4009 = sbr.rel (%p4007) target = $region36
    $region35: #{tpu_custom_call.1} parent=5 // pred_region
      %s4010 = ssub.s32 %s8, 2
      // Predicated region
      $region37: #{tpu_custom_call.1} parent=35 // pred_check
        %p4011 = pneg %p84
      $region38: #{tpu_custom_call.1} parent=35 // pred_check_branch
        %4013 = sbr.rel (%p4011) target = $region40
      $region39: #{tpu_custom_call.1} parent=35 // pred_region
        %s4014 = smul.u32 128, %s14
        %p4015 = scmp.lt.s32.totalorder %s4014, 511
        %s4016 = scalar_select %p4015, %s4014, 511
        %s4017 = smul.addr %s4016, 8
        %s4018 = scalar_lea.vmem %s2, %s4017
      $region40: #{tpu_custom_call.1} parent=35 // pred_fallthru
        _
    $region36: #{tpu_custom_call.1} parent=5 // pred_fallthru
      _
  $region6: #{tpu_custom_call.1} parent=0 // loop_footer
    %s12 = sadd.s32 1, %s8
  $region7: #{tpu_custom_call.1} parent=0 // loop_footer_branch
    %7 = sbr.rel target = $region3
  $region8: #{tpu_custom_call.1} parent=0 // loop_exit
    _

</llo_original>
